<compile_context>
chip_gen: v6e
topology: v6e:2x2x1
jax: 0.10.0
libtpu: 0.0.40
codegen_flags: <defaults>
</compile_context>

<pallas_src>
import jax
import jax.numpy as jnp
from jax import lax
from jax.experimental import pallas as pl
from jax.experimental.pallas import tpu as pltpu

# ----------------------------- tiny BERT config ------------------------------
VOCAB = 128
HIDDEN = 32
LAYERS = 2
HEADS = 4
HEAD_DIM = HIDDEN // HEADS
INTER = 64
MAX_POS = 16
TYPE_VOCAB = 2
NUM_LABELS = 2
LN_EPS = 1e-12
ATTN_SCALE = 1.0 / (HEAD_DIM ** 0.5)


# ------------------------------ fused kernel ---------------------------------
def _layer_norm(h, g, b, eps=LN_EPS):
    mean = jnp.mean(h, axis=-1, keepdims=True)
    var = jnp.mean((h - mean) ** 2, axis=-1, keepdims=True)
    return (h - mean) * lax.rsqrt(var + eps) * g + b


def _bert_kernel(emb_ref, mask_ref,
                 emb_ln_g_ref, emb_ln_b_ref,
                 wqkv_ref, bqkv_ref, wo_ref, bo_ref,
                 ln1_g_ref, ln1_b_ref,
                 w1_ref, b1_ref, w2_ref, b2_ref,
                 ln2_g_ref, ln2_b_ref,
                 wp_ref, bp_ref, wc_ref, bc_ref,
                 logits_ref):
    # One grid step == one batch example.  Block shapes: emb (1,S,H), mask (1,1,S).
    H = emb_ref.shape[2]

    # Embedding LayerNorm (no zero residual).
    h = _layer_norm(emb_ref[0], emb_ln_g_ref[...], emb_ln_b_ref[...])          # [S, H]

    # Additive attention mask, computed once per example: [1, S] broadcasts over queries.
    add_mask = (1.0 - mask_ref[0]) * -1e9

    for l in range(LAYERS):                      # static unroll; weights VMEM resident
        # --- fused QKV projection: one [S,H] x [H,3H] MXU matmul + bias ---
        # (1/sqrt(dH) attention scale is pre-folded into the Q columns of wqkv/bqkv)
        qkv = jnp.dot(h, wqkv_ref[l], preferred_element_type=jnp.float32) + bqkv_ref[l]
        q = qkv[:, 0:H]
        k = qkv[:, H:2 * H]
        v = qkv[:, 2 * H:3 * H]

        # --- per-head attention; head merge fused into the output projection ---
        wo_l = wo_ref[l]                         # [H, H]
        attn = bo_ref[l]                         # [1, H] bias, broadcasts over rows
        for hd in range(HEADS):
            sl = slice(hd * HEAD_DIM, (hd + 1) * HEAD_DIM)
            qh = q[:, sl]                        # [S, dH]
            kh = k[:, sl]
            vh = v[:, sl]
            # scores = qh @ kh^T  (contract the dH axis of both operands)
            s = lax.dot_general(qh, kh, (((1,), (1,)), ((), ())),
                                preferred_element_type=jnp.float32)             # [S, S]
            s = s + add_mask
            s = s - jnp.max(s, axis=-1, keepdims=True)
            p = jnp.exp(s)
            p = p * pl.reciprocal(jnp.sum(p, axis=-1, keepdims=True), approx=True)
            ctx_h = jnp.dot(p, vh, preferred_element_type=jnp.float32)          # [S, dH]
            attn = attn + jnp.dot(ctx_h, wo_l[sl, :],
                                  preferred_element_type=jnp.float32)           # [S, H]

        h = _layer_norm(attn + h, ln1_g_ref[l], ln1_b_ref[l])

        # --- FFN with fused GELU ---
        ffn = jnp.dot(h, w1_ref[l], preferred_element_type=jnp.float32) + b1_ref[l]
        ffn = jax.nn.gelu(ffn, approximate=True)
        ffn = jnp.dot(ffn, w2_ref[l], preferred_element_type=jnp.float32) + b2_ref[l]
        h = _layer_norm(ffn + h, ln2_g_ref[l], ln2_b_ref[l])

    # --- pooler (CLS token) + classifier ---
    cls = h[0:1, :]                                                             # [1, H]
    pooled = jnp.tanh(jnp.dot(cls, wp_ref[...],
                              preferred_element_type=jnp.float32) + bp_ref[...])
    logits = jnp.dot(pooled, wc_ref[...],
                     preferred_element_type=jnp.float32) + bc_ref[...]          # [1, NUM_LABELS]
    logits_ref[0] = logits.astype(logits_ref.dtype)


# --------------------------- parameters (synthetic) ---------------------------
def init_params(key):
    def nrm(k, shape, scale=0.02):
        return scale * jax.random.normal(k, shape, jnp.float32)

    keys = jax.random.split(key, 8 + LAYERS)
    params = {
        "word_emb": nrm(keys[0], (VOCAB, HIDDEN)),
        "pos_emb": nrm(keys[1], (MAX_POS, HIDDEN)),
        "type_emb": nrm(keys[2], (TYPE_VOCAB, HIDDEN)),
        "emb_ln_g": jnp.ones((HIDDEN,), jnp.float32),
        "emb_ln_b": jnp.zeros((HIDDEN,), jnp.float32),
        "wp": nrm(keys[3], (HIDDEN, HIDDEN)),
        "bp": jnp.zeros((HIDDEN,), jnp.float32),
        "wc": nrm(keys[4], (HIDDEN, NUM_LABELS)),
        "bc": jnp.zeros((NUM_LABELS,), jnp.float32),
        "layers": [],
    }
    for l in range(LAYERS):
        lk = jax.random.split(keys[8 + l], 6)
        params["layers"].append({
            "wq": nrm(lk[0], (HIDDEN, HIDDEN)), "bq": jnp.zeros((HIDDEN,), jnp.float32),
            "wk": nrm(lk[1], (HIDDEN, HIDDEN)), "bk": jnp.zeros((HIDDEN,), jnp.float32),
            "wv": nrm(lk[2], (HIDDEN, HIDDEN)), "bv": jnp.zeros((HIDDEN,), jnp.float32),
            "wo": nrm(lk[3], (HIDDEN, HIDDEN)), "bo": jnp.zeros((HIDDEN,), jnp.float32),
            "ln1_g": jnp.ones((HIDDEN,), jnp.float32), "ln1_b": jnp.zeros((HIDDEN,), jnp.float32),
            "w1": nrm(lk[4], (HIDDEN, INTER)), "b1": jnp.zeros((INTER,), jnp.float32),
            "w2": nrm(lk[5], (INTER, HIDDEN)), "b2": jnp.zeros((HIDDEN,), jnp.float32),
            "ln2_g": jnp.ones((HIDDEN,), jnp.float32), "ln2_b": jnp.zeros((HIDDEN,), jnp.float32),
        })
    return params


def pack_params(params):
    """Stack per-layer weights so the fused kernel can index them statically.

    The 1/sqrt(head_dim) attention scale is folded into the Q projection
    (weights + bias) here — a one-time host-side transform that keeps kernel
    semantics identical while removing a per-layer VPU multiply.
    """
    L = params["layers"]
    stack = lambda k: jnp.stack([lyr[k] for lyr in L])
    row = lambda k, n: jnp.stack([lyr[k].reshape(1, n) for lyr in L])
    return {
        "emb_ln_g": params["emb_ln_g"].reshape(1, HIDDEN),
        "emb_ln_b": params["emb_ln_b"].reshape(1, HIDDEN),
        "wqkv": jnp.stack([
            jnp.concatenate([l["wq"] * ATTN_SCALE, l["wk"], l["wv"]], axis=1) for l in L]),
        "bqkv": jnp.stack([
            jnp.concatenate([l["bq"] * ATTN_SCALE, l["bk"], l["bv"]]).reshape(1, 3 * HIDDEN)
            for l in L]),
        "wo": stack("wo"), "bo": row("bo", HIDDEN),
        "ln1_g": row("ln1_g", HIDDEN), "ln1_b": row("ln1_b", HIDDEN),
        "w1": stack("w1"), "b1": row("b1", INTER),
        "w2": stack("w2"), "b2": row("b2", HIDDEN),
        "ln2_g": row("ln2_g", HIDDEN), "ln2_b": row("ln2_b", HIDDEN),
        "wp": params["wp"], "bp": params["bp"].reshape(1, HIDDEN),
        "wc": params["wc"], "bc": params["bc"].reshape(1, NUM_LABELS),
    }


# ---------------------------- BertWrapper.forward ------------------------------
def bert_wrapper_forward(params, x):
    # x: int32 [B, S, 3]
    input_ids = x[:, :, 0]
    attention_mask = x[:, :, 1]
    token_type_ids = x[:, :, 2]
    B, S = input_ids.shape
    H = HIDDEN

    # Embedding-table gathers (plain JAX glue; data-dependent gather stays in XLA).
    pos_ids = jnp.arange(S, dtype=jnp.int32)
    emb = (jnp.take(params["word_emb"], input_ids, axis=0)
           + jnp.take(params["pos_emb"], pos_ids, axis=0)[None, :, :]
           + jnp.take(params["type_emb"], token_type_ids, axis=0))          # [B, S, H] f32
    mask_f = attention_mask.astype(jnp.float32).reshape(B, 1, S)

    p = params["packed"]

    def full(a):  # whole-array block, constant index -> DMA'd once across the grid
        return pl.BlockSpec(a.shape, lambda b, _nd=a.ndim: (0,) * _nd)

    logits3 = pl.pallas_call(
        _bert_kernel,
        out_shape=jax.ShapeDtypeStruct((B, 1, NUM_LABELS), jnp.float32),
        grid=(B,),
        in_specs=[
            pl.BlockSpec((1, S, H), lambda b: (b, 0, 0)),
            pl.BlockSpec((1, 1, S), lambda b: (b, 0, 0)),
            full(p["emb_ln_g"]), full(p["emb_ln_b"]),
            full(p["wqkv"]), full(p["bqkv"]), full(p["wo"]), full(p["bo"]),
            full(p["ln1_g"]), full(p["ln1_b"]),
            full(p["w1"]), full(p["b1"]), full(p["w2"]), full(p["b2"]),
            full(p["ln2_g"]), full(p["ln2_b"]),
            full(p["wp"]), full(p["bp"]), full(p["wc"]), full(p["bc"]),
        ],
        out_specs=pl.BlockSpec((1, 1, NUM_LABELS), lambda b: (b, 0, 0)),
        compiler_params=pltpu.CompilerParams(dimension_semantics=("parallel",)),
    )(emb, mask_f,
      p["emb_ln_g"], p["emb_ln_b"],
      p["wqkv"], p["bqkv"], p["wo"], p["bo"],
      p["ln1_g"], p["ln1_b"],
      p["w1"], p["b1"], p["w2"], p["b2"],
      p["ln2_g"], p["ln2_b"],
      p["wp"], p["bp"], p["wc"], p["bc"])
    return logits3.reshape(B, NUM_LABELS)


if __name__ == "__main__":
    B, S = 2, 8
    key = jax.random.PRNGKey(0)
    kp, kids, kmask, ktype = jax.random.split(key, 4)

    params = init_params(kp)
    params["packed"] = pack_params(params)

    input_ids = jax.random.randint(kids, (B, S), 0, VOCAB, dtype=jnp.int32)
    # attention_mask: leading ones, a couple of trailing pad zeros for example 1
    attention_mask = (jnp.arange(S)[None, :] < jnp.array([[S], [S - 2]])).astype(jnp.int32)
    token_type_ids = jax.random.randint(ktype, (B, S), 0, TYPE_VOCAB, dtype=jnp.int32)

    x = jnp.stack([input_ids, attention_mask, token_type_ids], axis=-1)   # [B, S, 3]

    fwd = jax.jit(bert_wrapper_forward)
    logits = fwd(params, x)
    logits = jax.block_until_ready(logits)
    assert logits.shape == (B, NUM_LABELS)
    assert bool(jnp.all(jnp.isfinite(logits)))
    print("KERNEL_OK")
</pallas_src>

<mosaic_0001>
module attributes {stable_mosaic.version = 11 : i64} {
  func.func @_bert_kernel(%arg0: i32, %arg1: memref<1x8x32xf32, #tpu.memory_space<vmem>>, %arg2: memref<1x1x8xf32, #tpu.memory_space<vmem>>, %arg3: memref<1x32xf32, #tpu.memory_space<vmem>>, %arg4: memref<1x32xf32, #tpu.memory_space<vmem>>, %arg5: memref<2x32x96xf32, #tpu.memory_space<vmem>>, %arg6: memref<2x1x96xf32, #tpu.memory_space<vmem>>, %arg7: memref<2x32x32xf32, #tpu.memory_space<vmem>>, %arg8: memref<2x1x32xf32, #tpu.memory_space<vmem>>, %arg9: memref<2x1x32xf32, #tpu.memory_space<vmem>>, %arg10: memref<2x1x32xf32, #tpu.memory_space<vmem>>, %arg11: memref<2x32x64xf32, #tpu.memory_space<vmem>>, %arg12: memref<2x1x64xf32, #tpu.memory_space<vmem>>, %arg13: memref<2x64x32xf32, #tpu.memory_space<vmem>>, %arg14: memref<2x1x32xf32, #tpu.memory_space<vmem>>, %arg15: memref<2x1x32xf32, #tpu.memory_space<vmem>>, %arg16: memref<2x1x32xf32, #tpu.memory_space<vmem>>, %arg17: memref<32x32xf32, #tpu.memory_space<vmem>>, %arg18: memref<1x32xf32, #tpu.memory_space<vmem>>, %arg19: memref<32x2xf32, #tpu.memory_space<vmem>>, %arg20: memref<1x2xf32, #tpu.memory_space<vmem>>, %arg21: memref<1x1x2xf32, #tpu.memory_space<vmem>>) attributes {dimension_semantics = [#tpu.dimension_semantics<parallel>], iteration_bounds = array<i64: 2>, scalar_prefetch = 0 : i64, scratch_operands = 0 : i64, tpu.core_type = #tpu.core_type<tc>, window_params = [{transform_indices = @transform_0, window_bounds = array<i64: 1, 8, 32>}, {transform_indices = @transform_1, window_bounds = array<i64: 1, 1, 8>}, {pipeline_mode = #tpu.pipeline_mode<synchronous>, transform_indices = @transform_2, window_bounds = array<i64: 1, 32>}, {pipeline_mode = #tpu.pipeline_mode<synchronous>, transform_indices = @transform_3, window_bounds = array<i64: 1, 32>}, {pipeline_mode = #tpu.pipeline_mode<synchronous>, transform_indices = @transform_4, window_bounds = array<i64: 2, 32, 96>}, {pipeline_mode = #tpu.pipeline_mode<synchronous>, transform_indices = @transform_5, window_bounds = array<i64: 2, 1, 96>}, {pipeline_mode = #tpu.pipeline_mode<synchronous>, transform_indices = @transform_6, window_bounds = array<i64: 2, 32, 32>}, {pipeline_mode = #tpu.pipeline_mode<synchronous>, transform_indices = @transform_7, window_bounds = array<i64: 2, 1, 32>}, {pipeline_mode = #tpu.pipeline_mode<synchronous>, transform_indices = @transform_8, window_bounds = array<i64: 2, 1, 32>}, {pipeline_mode = #tpu.pipeline_mode<synchronous>, transform_indices = @transform_9, window_bounds = array<i64: 2, 1, 32>}, {pipeline_mode = #tpu.pipeline_mode<synchronous>, transform_indices = @transform_10, window_bounds = array<i64: 2, 32, 64>}, {pipeline_mode = #tpu.pipeline_mode<synchronous>, transform_indices = @transform_11, window_bounds = array<i64: 2, 1, 64>}, {pipeline_mode = #tpu.pipeline_mode<synchronous>, transform_indices = @transform_12, window_bounds = array<i64: 2, 64, 32>}, {pipeline_mode = #tpu.pipeline_mode<synchronous>, transform_indices = @transform_13, window_bounds = array<i64: 2, 1, 32>}, {pipeline_mode = #tpu.pipeline_mode<synchronous>, transform_indices = @transform_14, window_bounds = array<i64: 2, 1, 32>}, {pipeline_mode = #tpu.pipeline_mode<synchronous>, transform_indices = @transform_15, window_bounds = array<i64: 2, 1, 32>}, {pipeline_mode = #tpu.pipeline_mode<synchronous>, transform_indices = @transform_16, window_bounds = array<i64: 32, 32>}, {pipeline_mode = #tpu.pipeline_mode<synchronous>, transform_indices = @transform_17, window_bounds = array<i64: 1, 32>}, {pipeline_mode = #tpu.pipeline_mode<synchronous>, transform_indices = @transform_18, window_bounds = array<i64: 32, 2>}, {pipeline_mode = #tpu.pipeline_mode<synchronous>, transform_indices = @transform_19, window_bounds = array<i64: 1, 2>}, {transform_indices = @transform_20, window_bounds = array<i64: 1, 1, 2>}]} {
    %c0 = arith.constant 0 : index
    %c0_0 = arith.constant 0 : index
    %c0_1 = arith.constant 0 : index
    %0 = vector.load %arg1[%c0, %c0_0, %c0_1] : memref<1x8x32xf32, #tpu.memory_space<vmem>>, vector<1x8x32xf32>
    %1 = vector.shape_cast %0 : vector<1x8x32xf32> to vector<8x32xf32>
    %c0_2 = arith.constant 0 : index
    %c0_3 = arith.constant 0 : index
    %2 = vector.load %arg3[%c0_2, %c0_3] : memref<1x32xf32, #tpu.memory_space<vmem>>, vector<1x32xf32>
    %c0_4 = arith.constant 0 : index
    %c0_5 = arith.constant 0 : index
    %3 = vector.load %arg4[%c0_4, %c0_5] : memref<1x32xf32, #tpu.memory_space<vmem>>, vector<1x32xf32>
    %cst = arith.constant dense<0.000000e+00> : vector<8xf32>
    %4 = vector.multi_reduction <add>, %1, %cst [1] : vector<8x32xf32> to vector<8xf32>
    %5 = vector.shape_cast %4 : vector<8xf32> to vector<8x1xf32>
    %cst_6 = arith.constant 3.200000e+01 : f32
    %6 = vector.broadcast %cst_6 : f32 to vector<8x1xf32>
    %7 = arith.divf %5, %6 : vector<8x1xf32>
    %8 = vector.broadcast %7 : vector<8x1xf32> to vector<8x32xf32>
    %9 = arith.subf %1, %8 : vector<8x32xf32>
    %10 = arith.mulf %9, %9 : vector<8x32xf32>
    %cst_7 = arith.constant dense<0.000000e+00> : vector<8xf32>
    %11 = vector.multi_reduction <add>, %10, %cst_7 [1] : vector<8x32xf32> to vector<8xf32>
    %12 = vector.shape_cast %11 : vector<8xf32> to vector<8x1xf32>
    %cst_8 = arith.constant 3.200000e+01 : f32
    %13 = vector.broadcast %cst_8 : f32 to vector<8x1xf32>
    %14 = arith.divf %12, %13 : vector<8x1xf32>
    %15 = vector.broadcast %7 : vector<8x1xf32> to vector<8x32xf32>
    %16 = arith.subf %1, %15 : vector<8x32xf32>
    %cst_9 = arith.constant 9.99999996E-13 : f32
    %17 = vector.broadcast %cst_9 : f32 to vector<8x1xf32>
    %18 = arith.addf %14, %17 : vector<8x1xf32>
    %19 = math.rsqrt %18 : vector<8x1xf32>
    %20 = vector.broadcast %19 : vector<8x1xf32> to vector<8x32xf32>
    %21 = arith.mulf %16, %20 : vector<8x32xf32>
    %22 = vector.broadcast %2 : vector<1x32xf32> to vector<8x32xf32>
    %23 = arith.mulf %21, %22 : vector<8x32xf32>
    %24 = vector.broadcast %3 : vector<1x32xf32> to vector<8x32xf32>
    %25 = arith.addf %23, %24 : vector<8x32xf32>
    %c0_10 = arith.constant 0 : index
    %c0_11 = arith.constant 0 : index
    %c0_12 = arith.constant 0 : index
    %26 = vector.load %arg2[%c0_10, %c0_11, %c0_12] : memref<1x1x8xf32, #tpu.memory_space<vmem>>, vector<1x1x8xf32>
    %27 = vector.shape_cast %26 : vector<1x1x8xf32> to vector<1x8xf32>
    %cst_13 = arith.constant 1.000000e+00 : f32
    %28 = vector.broadcast %cst_13 : f32 to vector<1x8xf32>
    %29 = arith.subf %28, %27 : vector<1x8xf32>
    %cst_14 = arith.constant -1.000000e+09 : f32
    %30 = vector.broadcast %cst_14 : f32 to vector<1x8xf32>
    %31 = arith.mulf %29, %30 : vector<1x8xf32>
    %c0_15 = arith.constant 0 : index
    %c0_16 = arith.constant 0 : index
    %c0_17 = arith.constant 0 : index
    %32 = vector.load %arg5[%c0_15, %c0_16, %c0_17] : memref<2x32x96xf32, #tpu.memory_space<vmem>>, vector<1x32x96xf32>
    %33 = vector.shape_cast %32 : vector<1x32x96xf32> to vector<32x96xf32>
    %cst_18 = arith.constant dense<0.000000e+00> : vector<8x96xf32>
    %34 = tpu.matmul %25, %33, %cst_18 {dimension_numbers = #tpu.dot_dimension_numbers<[1], [0], [0], [1], [0, 0, 1, 1], [], []>} : vector<8x32xf32>, vector<32x96xf32>, vector<8x96xf32> -> vector<8x96xf32>
    %c0_19 = arith.constant 0 : index
    %c0_20 = arith.constant 0 : index
    %c0_21 = arith.constant 0 : index
    %35 = vector.load %arg6[%c0_19, %c0_20, %c0_21] : memref<2x1x96xf32, #tpu.memory_space<vmem>>, vector<1x1x96xf32>
    %36 = vector.shape_cast %35 : vector<1x1x96xf32> to vector<1x96xf32>
    %37 = vector.broadcast %36 : vector<1x96xf32> to vector<8x96xf32>
    %38 = arith.addf %34, %37 : vector<8x96xf32>
    %39 = vector.extract_strided_slice %38 {offsets = [0, 0], sizes = [8, 32], strides = [1, 1]} : vector<8x96xf32> to vector<8x32xf32>
    %40 = vector.extract_strided_slice %38 {offsets = [0, 32], sizes = [8, 32], strides = [1, 1]} : vector<8x96xf32> to vector<8x32xf32>
    %41 = vector.extract_strided_slice %38 {offsets = [0, 64], sizes = [8, 32], strides = [1, 1]} : vector<8x96xf32> to vector<8x32xf32>
    %c0_22 = arith.constant 0 : index
    %c0_23 = arith.constant 0 : index
    %c0_24 = arith.constant 0 : index
    %42 = vector.load %arg7[%c0_22, %c0_23, %c0_24] : memref<2x32x32xf32, #tpu.memory_space<vmem>>, vector<1x32x32xf32>
    %43 = vector.shape_cast %42 : vector<1x32x32xf32> to vector<32x32xf32>
    %c0_25 = arith.constant 0 : index
    %c0_26 = arith.constant 0 : index
    %c0_27 = arith.constant 0 : index
    %44 = vector.load %arg8[%c0_25, %c0_26, %c0_27] : memref<2x1x32xf32, #tpu.memory_space<vmem>>, vector<1x1x32xf32>
    %45 = vector.shape_cast %44 : vector<1x1x32xf32> to vector<1x32xf32>
    %46 = vector.extract_strided_slice %39 {offsets = [0, 0], sizes = [8, 8], strides = [1, 1]} : vector<8x32xf32> to vector<8x8xf32>
    %47 = vector.extract_strided_slice %40 {offsets = [0, 0], sizes = [8, 8], strides = [1, 1]} : vector<8x32xf32> to vector<8x8xf32>
    %48 = vector.extract_strided_slice %41 {offsets = [0, 0], sizes = [8, 8], strides = [1, 1]} : vector<8x32xf32> to vector<8x8xf32>
    %cst_28 = arith.constant dense<0.000000e+00> : vector<8x8xf32>
    %49 = tpu.matmul %46, %47, %cst_28 {dimension_numbers = #tpu.dot_dimension_numbers<[1], [1], [0], [0], [0, 0, 1, 0], [], []>} : vector<8x8xf32>, vector<8x8xf32>, vector<8x8xf32> -> vector<8x8xf32>
    %50 = vector.broadcast %31 : vector<1x8xf32> to vector<8x8xf32>
    %51 = arith.addf %49, %50 : vector<8x8xf32>
    %cst_29 = arith.constant dense<0xFF800000> : vector<8xf32>
    %52 = vector.multi_reduction <maximumf>, %51, %cst_29 [1] : vector<8x8xf32> to vector<8xf32>
    %53 = vector.shape_cast %52 : vector<8xf32> to vector<8x1xf32>
    %54 = vector.broadcast %53 : vector<8x1xf32> to vector<8x8xf32>
    %55 = arith.subf %51, %54 : vector<8x8xf32>
    %56 = math.exp %55 : vector<8x8xf32>
    %cst_30 = arith.constant dense<0.000000e+00> : vector<8xf32>
    %57 = vector.multi_reduction <add>, %56, %cst_30 [1] : vector<8x8xf32> to vector<8xf32>
    %58 = vector.shape_cast %57 : vector<8xf32> to vector<8x1xf32>
    %59 = tpu.reciprocal %58 {approx = true} : vector<8x1xf32> -> vector<8x1xf32>
    %60 = vector.broadcast %59 : vector<8x1xf32> to vector<8x8xf32>
    %61 = arith.mulf %56, %60 : vector<8x8xf32>
    %cst_31 = arith.constant dense<0.000000e+00> : vector<8x8xf32>
    %62 = tpu.matmul %61, %48, %cst_31 {dimension_numbers = #tpu.dot_dimension_numbers<[1], [0], [0], [1], [0, 0, 1, 1], [], []>} : vector<8x8xf32>, vector<8x8xf32>, vector<8x8xf32> -> vector<8x8xf32>
    %63 = vector.extract_strided_slice %43 {offsets = [0, 0], sizes = [8, 32], strides = [1, 1]} : vector<32x32xf32> to vector<8x32xf32>
    %cst_32 = arith.constant dense<0.000000e+00> : vector<8x32xf32>
    %64 = tpu.matmul %62, %63, %cst_32 {dimension_numbers = #tpu.dot_dimension_numbers<[1], [0], [0], [1], [0, 0, 1, 1], [], []>} : vector<8x8xf32>, vector<8x32xf32>, vector<8x32xf32> -> vector<8x32xf32>
    %65 = vector.broadcast %45 : vector<1x32xf32> to vector<8x32xf32>
    %66 = arith.addf %65, %64 : vector<8x32xf32>
    %67 = vector.extract_strided_slice %39 {offsets = [0, 8], sizes = [8, 8], strides = [1, 1]} : vector<8x32xf32> to vector<8x8xf32>
    %68 = vector.extract_strided_slice %40 {offsets = [0, 8], sizes = [8, 8], strides = [1, 1]} : vector<8x32xf32> to vector<8x8xf32>
    %69 = vector.extract_strided_slice %41 {offsets = [0, 8], sizes = [8, 8], strides = [1, 1]} : vector<8x32xf32> to vector<8x8xf32>
    %cst_33 = arith.constant dense<0.000000e+00> : vector<8x8xf32>
    %70 = tpu.matmul %67, %68, %cst_33 {dimension_numbers = #tpu.dot_dimension_numbers<[1], [1], [0], [0], [0, 0, 1, 0], [], []>} : vector<8x8xf32>, vector<8x8xf32>, vector<8x8xf32> -> vector<8x8xf32>
    %71 = vector.broadcast %31 : vector<1x8xf32> to vector<8x8xf32>
    %72 = arith.addf %70, %71 : vector<8x8xf32>
    %cst_34 = arith.constant dense<0xFF800000> : vector<8xf32>
    %73 = vector.multi_reduction <maximumf>, %72, %cst_34 [1] : vector<8x8xf32> to vector<8xf32>
    %74 = vector.shape_cast %73 : vector<8xf32> to vector<8x1xf32>
    %75 = vector.broadcast %74 : vector<8x1xf32> to vector<8x8xf32>
    %76 = arith.subf %72, %75 : vector<8x8xf32>
    %77 = math.exp %76 : vector<8x8xf32>
    %cst_35 = arith.constant dense<0.000000e+00> : vector<8xf32>
    %78 = vector.multi_reduction <add>, %77, %cst_35 [1] : vector<8x8xf32> to vector<8xf32>
    %79 = vector.shape_cast %78 : vector<8xf32> to vector<8x1xf32>
    %80 = tpu.reciprocal %79 {approx = true} : vector<8x1xf32> -> vector<8x1xf32>
    %81 = vector.broadcast %80 : vector<8x1xf32> to vector<8x8xf32>
    %82 = arith.mulf %77, %81 : vector<8x8xf32>
    %cst_36 = arith.constant dense<0.000000e+00> : vector<8x8xf32>
    %83 = tpu.matmul %82, %69, %cst_36 {dimension_numbers = #tpu.dot_dimension_numbers<[1], [0], [0], [1], [0, 0, 1, 1], [], []>} : vector<8x8xf32>, vector<8x8xf32>, vector<8x8xf32> -> vector<8x8xf32>
    %84 = vector.extract_strided_slice %43 {offsets = [8, 0], sizes = [8, 32], strides = [1, 1]} : vector<32x32xf32> to vector<8x32xf32>
    %cst_37 = arith.constant dense<0.000000e+00> : vector<8x32xf32>
    %85 = tpu.matmul %83, %84, %cst_37 {dimension_numbers = #tpu.dot_dimension_numbers<[1], [0], [0], [1], [0, 0, 1, 1], [], []>} : vector<8x8xf32>, vector<8x32xf32>, vector<8x32xf32> -> vector<8x32xf32>
    %86 = arith.addf %66, %85 : vector<8x32xf32>
    %87 = vector.extract_strided_slice %39 {offsets = [0, 16], sizes = [8, 8], strides = [1, 1]} : vector<8x32xf32> to vector<8x8xf32>
    %88 = vector.extract_strided_slice %40 {offsets = [0, 16], sizes = [8, 8], strides = [1, 1]} : vector<8x32xf32> to vector<8x8xf32>
    %89 = vector.extract_strided_slice %41 {offsets = [0, 16], sizes = [8, 8], strides = [1, 1]} : vector<8x32xf32> to vector<8x8xf32>
    %cst_38 = arith.constant dense<0.000000e+00> : vector<8x8xf32>
    %90 = tpu.matmul %87, %88, %cst_38 {dimension_numbers = #tpu.dot_dimension_numbers<[1], [1], [0], [0], [0, 0, 1, 0], [], []>} : vector<8x8xf32>, vector<8x8xf32>, vector<8x8xf32> -> vector<8x8xf32>
    %91 = vector.broadcast %31 : vector<1x8xf32> to vector<8x8xf32>
    %92 = arith.addf %90, %91 : vector<8x8xf32>
    %cst_39 = arith.constant dense<0xFF800000> : vector<8xf32>
    %93 = vector.multi_reduction <maximumf>, %92, %cst_39 [1] : vector<8x8xf32> to vector<8xf32>
    %94 = vector.shape_cast %93 : vector<8xf32> to vector<8x1xf32>
    %95 = vector.broadcast %94 : vector<8x1xf32> to vector<8x8xf32>
    %96 = arith.subf %92, %95 : vector<8x8xf32>
    %97 = math.exp %96 : vector<8x8xf32>
    %cst_40 = arith.constant dense<0.000000e+00> : vector<8xf32>
    %98 = vector.multi_reduction <add>, %97, %cst_40 [1] : vector<8x8xf32> to vector<8xf32>
    %99 = vector.shape_cast %98 : vector<8xf32> to vector<8x1xf32>
    %100 = tpu.reciprocal %99 {approx = true} : vector<8x1xf32> -> vector<8x1xf32>
    %101 = vector.broadcast %100 : vector<8x1xf32> to vector<8x8xf32>
    %102 = arith.mulf %97, %101 : vector<8x8xf32>
    %cst_41 = arith.constant dense<0.000000e+00> : vector<8x8xf32>
    %103 = tpu.matmul %102, %89, %cst_41 {dimension_numbers = #tpu.dot_dimension_numbers<[1], [0], [0], [1], [0, 0, 1, 1], [], []>} : vector<8x8xf32>, vector<8x8xf32>, vector<8x8xf32> -> vector<8x8xf32>
    %104 = vector.extract_strided_slice %43 {offsets = [16, 0], sizes = [8, 32], strides = [1, 1]} : vector<32x32xf32> to vector<8x32xf32>
    %cst_42 = arith.constant dense<0.000000e+00> : vector<8x32xf32>
    %105 = tpu.matmul %103, %104, %cst_42 {dimension_numbers = #tpu.dot_dimension_numbers<[1], [0], [0], [1], [0, 0, 1, 1], [], []>} : vector<8x8xf32>, vector<8x32xf32>, vector<8x32xf32> -> vector<8x32xf32>
    %106 = arith.addf %86, %105 : vector<8x32xf32>
    %107 = vector.extract_strided_slice %39 {offsets = [0, 24], sizes = [8, 8], strides = [1, 1]} : vector<8x32xf32> to vector<8x8xf32>
    %108 = vector.extract_strided_slice %40 {offsets = [0, 24], sizes = [8, 8], strides = [1, 1]} : vector<8x32xf32> to vector<8x8xf32>
    %109 = vector.extract_strided_slice %41 {offsets = [0, 24], sizes = [8, 8], strides = [1, 1]} : vector<8x32xf32> to vector<8x8xf32>
    %cst_43 = arith.constant dense<0.000000e+00> : vector<8x8xf32>
    %110 = tpu.matmul %107, %108, %cst_43 {dimension_numbers = #tpu.dot_dimension_numbers<[1], [1], [0], [0], [0, 0, 1, 0], [], []>} : vector<8x8xf32>, vector<8x8xf32>, vector<8x8xf32> -> vector<8x8xf32>
    %111 = vector.broadcast %31 : vector<1x8xf32> to vector<8x8xf32>
    %112 = arith.addf %110, %111 : vector<8x8xf32>
    %cst_44 = arith.constant dense<0xFF800000> : vector<8xf32>
    %113 = vector.multi_reduction <maximumf>, %112, %cst_44 [1] : vector<8x8xf32> to vector<8xf32>
    %114 = vector.shape_cast %113 : vector<8xf32> to vector<8x1xf32>
    %115 = vector.broadcast %114 : vector<8x1xf32> to vector<8x8xf32>
    %116 = arith.subf %112, %115 : vector<8x8xf32>
    %117 = math.exp %116 : vector<8x8xf32>
    %cst_45 = arith.constant dense<0.000000e+00> : vector<8xf32>
    %118 = vector.multi_reduction <add>, %117, %cst_45 [1] : vector<8x8xf32> to vector<8xf32>
    %119 = vector.shape_cast %118 : vector<8xf32> to vector<8x1xf32>
    %120 = tpu.reciprocal %119 {approx = true} : vector<8x1xf32> -> vector<8x1xf32>
    %121 = vector.broadcast %120 : vector<8x1xf32> to vector<8x8xf32>
    %122 = arith.mulf %117, %121 : vector<8x8xf32>
    %cst_46 = arith.constant dense<0.000000e+00> : vector<8x8xf32>
    %123 = tpu.matmul %122, %109, %cst_46 {dimension_numbers = #tpu.dot_dimension_numbers<[1], [0], [0], [1], [0, 0, 1, 1], [], []>} : vector<8x8xf32>, vector<8x8xf32>, vector<8x8xf32> -> vector<8x8xf32>
    %124 = vector.extract_strided_slice %43 {offsets = [24, 0], sizes = [8, 32], strides = [1, 1]} : vector<32x32xf32> to vector<8x32xf32>
    %cst_47 = arith.constant dense<0.000000e+00> : vector<8x32xf32>
    %125 = tpu.matmul %123, %124, %cst_47 {dimension_numbers = #tpu.dot_dimension_numbers<[1], [0], [0], [1], [0, 0, 1, 1], [], []>} : vector<8x8xf32>, vector<8x32xf32>, vector<8x32xf32> -> vector<8x32xf32>
    %126 = arith.addf %106, %125 : vector<8x32xf32>
    %127 = arith.addf %126, %25 : vector<8x32xf32>
    %c0_48 = arith.constant 0 : index
    %c0_49 = arith.constant 0 : index
    %c0_50 = arith.constant 0 : index
    %128 = vector.load %arg9[%c0_48, %c0_49, %c0_50] : memref<2x1x32xf32, #tpu.memory_space<vmem>>, vector<1x1x32xf32>
    %129 = vector.shape_cast %128 : vector<1x1x32xf32> to vector<1x32xf32>
    %c0_51 = arith.constant 0 : index
    %c0_52 = arith.constant 0 : index
    %c0_53 = arith.constant 0 : index
    %130 = vector.load %arg10[%c0_51, %c0_52, %c0_53] : memref<2x1x32xf32, #tpu.memory_space<vmem>>, vector<1x1x32xf32>
    %131 = vector.shape_cast %130 : vector<1x1x32xf32> to vector<1x32xf32>
    %cst_54 = arith.constant dense<0.000000e+00> : vector<8xf32>
    %132 = vector.multi_reduction <add>, %127, %cst_54 [1] : vector<8x32xf32> to vector<8xf32>
    %133 = vector.shape_cast %132 : vector<8xf32> to vector<8x1xf32>
    %cst_55 = arith.constant 3.200000e+01 : f32
    %134 = vector.broadcast %cst_55 : f32 to vector<8x1xf32>
    %135 = arith.divf %133, %134 : vector<8x1xf32>
    %136 = vector.broadcast %135 : vector<8x1xf32> to vector<8x32xf32>
    %137 = arith.subf %127, %136 : vector<8x32xf32>
    %138 = arith.mulf %137, %137 : vector<8x32xf32>
    %cst_56 = arith.constant dense<0.000000e+00> : vector<8xf32>
    %139 = vector.multi_reduction <add>, %138, %cst_56 [1] : vector<8x32xf32> to vector<8xf32>
    %140 = vector.shape_cast %139 : vector<8xf32> to vector<8x1xf32>
    %cst_57 = arith.constant 3.200000e+01 : f32
    %141 = vector.broadcast %cst_57 : f32 to vector<8x1xf32>
    %142 = arith.divf %140, %141 : vector<8x1xf32>
    %143 = vector.broadcast %135 : vector<8x1xf32> to vector<8x32xf32>
    %144 = arith.subf %127, %143 : vector<8x32xf32>
    %cst_58 = arith.constant 9.99999996E-13 : f32
    %145 = vector.broadcast %cst_58 : f32 to vector<8x1xf32>
    %146 = arith.addf %142, %145 : vector<8x1xf32>
    %147 = math.rsqrt %146 : vector<8x1xf32>
    %148 = vector.broadcast %147 : vector<8x1xf32> to vector<8x32xf32>
    %149 = arith.mulf %144, %148 : vector<8x32xf32>
    %150 = vector.broadcast %129 : vector<1x32xf32> to vector<8x32xf32>
    %151 = arith.mulf %149, %150 : vector<8x32xf32>
    %152 = vector.broadcast %131 : vector<1x32xf32> to vector<8x32xf32>
    %153 = arith.addf %151, %152 : vector<8x32xf32>
    %c0_59 = arith.constant 0 : index
    %c0_60 = arith.constant 0 : index
    %c0_61 = arith.constant 0 : index
    %154 = vector.load %arg11[%c0_59, %c0_60, %c0_61] : memref<2x32x64xf32, #tpu.memory_space<vmem>>, vector<1x32x64xf32>
    %155 = vector.shape_cast %154 : vector<1x32x64xf32> to vector<32x64xf32>
    %cst_62 = arith.constant dense<0.000000e+00> : vector<8x64xf32>
    %156 = tpu.matmul %153, %155, %cst_62 {dimension_numbers = #tpu.dot_dimension_numbers<[1], [0], [0], [1], [0, 0, 1, 1], [], []>} : vector<8x32xf32>, vector<32x64xf32>, vector<8x64xf32> -> vector<8x64xf32>
    %c0_63 = arith.constant 0 : index
    %c0_64 = arith.constant 0 : index
    %c0_65 = arith.constant 0 : index
    %157 = vector.load %arg12[%c0_63, %c0_64, %c0_65] : memref<2x1x64xf32, #tpu.memory_space<vmem>>, vector<1x1x64xf32>
    %158 = vector.shape_cast %157 : vector<1x1x64xf32> to vector<1x64xf32>
    %159 = vector.broadcast %158 : vector<1x64xf32> to vector<8x64xf32>
    %160 = arith.addf %156, %159 : vector<8x64xf32>
    %161 = arith.mulf %160, %160 : vector<8x64xf32>
    %162 = arith.mulf %160, %161 : vector<8x64xf32>
    %cst_66 = arith.constant 4.471500e-02 : f32
    %163 = vector.broadcast %cst_66 : f32 to vector<8x64xf32>
    %164 = arith.mulf %163, %162 : vector<8x64xf32>
    %165 = arith.addf %160, %164 : vector<8x64xf32>
    %cst_67 = arith.constant 0.797884583 : f32
    %166 = vector.broadcast %cst_67 : f32 to vector<8x64xf32>
    %167 = arith.mulf %166, %165 : vector<8x64xf32>
    %168 = math.tanh %167 : vector<8x64xf32>
    %cst_68 = arith.constant 1.000000e+00 : f32
    %169 = vector.broadcast %cst_68 : f32 to vector<8x64xf32>
    %170 = arith.addf %169, %168 : vector<8x64xf32>
    %cst_69 = arith.constant 5.000000e-01 : f32
    %171 = vector.broadcast %cst_69 : f32 to vector<8x64xf32>
    %172 = arith.mulf %171, %170 : vector<8x64xf32>
    %173 = arith.mulf %160, %172 : vector<8x64xf32>
    %c0_70 = arith.constant 0 : index
    %c0_71 = arith.constant 0 : index
    %c0_72 = arith.constant 0 : index
    %174 = vector.load %arg13[%c0_70, %c0_71, %c0_72] : memref<2x64x32xf32, #tpu.memory_space<vmem>>, vector<1x64x32xf32>
    %175 = vector.shape_cast %174 : vector<1x64x32xf32> to vector<64x32xf32>
    %cst_73 = arith.constant dense<0.000000e+00> : vector<8x32xf32>
    %176 = tpu.matmul %173, %175, %cst_73 {dimension_numbers = #tpu.dot_dimension_numbers<[1], [0], [0], [1], [0, 0, 1, 1], [], []>} : vector<8x64xf32>, vector<64x32xf32>, vector<8x32xf32> -> vector<8x32xf32>
    %c0_74 = arith.constant 0 : index
    %c0_75 = arith.constant 0 : index
    %c0_76 = arith.constant 0 : index
    %177 = vector.load %arg14[%c0_74, %c0_75, %c0_76] : memref<2x1x32xf32, #tpu.memory_space<vmem>>, vector<1x1x32xf32>
    %178 = vector.shape_cast %177 : vector<1x1x32xf32> to vector<1x32xf32>
    %179 = vector.broadcast %178 : vector<1x32xf32> to vector<8x32xf32>
    %180 = arith.addf %176, %179 : vector<8x32xf32>
    %181 = arith.addf %180, %153 : vector<8x32xf32>
    %c0_77 = arith.constant 0 : index
    %c0_78 = arith.constant 0 : index
    %c0_79 = arith.constant 0 : index
    %182 = vector.load %arg15[%c0_77, %c0_78, %c0_79] : memref<2x1x32xf32, #tpu.memory_space<vmem>>, vector<1x1x32xf32>
    %183 = vector.shape_cast %182 : vector<1x1x32xf32> to vector<1x32xf32>
    %c0_80 = arith.constant 0 : index
    %c0_81 = arith.constant 0 : index
    %c0_82 = arith.constant 0 : index
    %184 = vector.load %arg16[%c0_80, %c0_81, %c0_82] : memref<2x1x32xf32, #tpu.memory_space<vmem>>, vector<1x1x32xf32>
    %185 = vector.shape_cast %184 : vector<1x1x32xf32> to vector<1x32xf32>
    %cst_83 = arith.constant dense<0.000000e+00> : vector<8xf32>
    %186 = vector.multi_reduction <add>, %181, %cst_83 [1] : vector<8x32xf32> to vector<8xf32>
    %187 = vector.shape_cast %186 : vector<8xf32> to vector<8x1xf32>
    %cst_84 = arith.constant 3.200000e+01 : f32
    %188 = vector.broadcast %cst_84 : f32 to vector<8x1xf32>
    %189 = arith.divf %187, %188 : vector<8x1xf32>
    %190 = vector.broadcast %189 : vector<8x1xf32> to vector<8x32xf32>
    %191 = arith.subf %181, %190 : vector<8x32xf32>
    %192 = arith.mulf %191, %191 : vector<8x32xf32>
    %cst_85 = arith.constant dense<0.000000e+00> : vector<8xf32>
    %193 = vector.multi_reduction <add>, %192, %cst_85 [1] : vector<8x32xf32> to vector<8xf32>
    %194 = vector.shape_cast %193 : vector<8xf32> to vector<8x1xf32>
    %cst_86 = arith.constant 3.200000e+01 : f32
    %195 = vector.broadcast %cst_86 : f32 to vector<8x1xf32>
    %196 = arith.divf %194, %195 : vector<8x1xf32>
    %197 = vector.broadcast %189 : vector<8x1xf32> to vector<8x32xf32>
    %198 = arith.subf %181, %197 : vector<8x32xf32>
    %cst_87 = arith.constant 9.99999996E-13 : f32
    %199 = vector.broadcast %cst_87 : f32 to vector<8x1xf32>
    %200 = arith.addf %196, %199 : vector<8x1xf32>
    %201 = math.rsqrt %200 : vector<8x1xf32>
    %202 = vector.broadcast %201 : vector<8x1xf32> to vector<8x32xf32>
    %203 = arith.mulf %198, %202 : vector<8x32xf32>
    %204 = vector.broadcast %183 : vector<1x32xf32> to vector<8x32xf32>
    %205 = arith.mulf %203, %204 : vector<8x32xf32>
    %206 = vector.broadcast %185 : vector<1x32xf32> to vector<8x32xf32>
    %207 = arith.addf %205, %206 : vector<8x32xf32>
    %c1 = arith.constant 1 : index
    %c0_88 = arith.constant 0 : index
    %c0_89 = arith.constant 0 : index
    %208 = vector.load %arg5[%c1, %c0_88, %c0_89] : memref<2x32x96xf32, #tpu.memory_space<vmem>>, vector<1x32x96xf32>
    %209 = vector.shape_cast %208 : vector<1x32x96xf32> to vector<32x96xf32>
    %cst_90 = arith.constant dense<0.000000e+00> : vector<8x96xf32>
    %210 = tpu.matmul %207, %209, %cst_90 {dimension_numbers = #tpu.dot_dimension_numbers<[1], [0], [0], [1], [0, 0, 1, 1], [], []>} : vector<8x32xf32>, vector<32x96xf32>, vector<8x96xf32> -> vector<8x96xf32>
    %c1_91 = arith.constant 1 : index
    %c0_92 = arith.constant 0 : index
    %c0_93 = arith.constant 0 : index
    %211 = vector.load %arg6[%c1_91, %c0_92, %c0_93] : memref<2x1x96xf32, #tpu.memory_space<vmem>>, vector<1x1x96xf32>
    %212 = vector.shape_cast %211 : vector<1x1x96xf32> to vector<1x96xf32>
    %213 = vector.broadcast %212 : vector<1x96xf32> to vector<8x96xf32>
    %214 = arith.addf %210, %213 : vector<8x96xf32>
    %215 = vector.extract_strided_slice %214 {offsets = [0, 0], sizes = [8, 32], strides = [1, 1]} : vector<8x96xf32> to vector<8x32xf32>
    %216 = vector.extract_strided_slice %214 {offsets = [0, 32], sizes = [8, 32], strides = [1, 1]} : vector<8x96xf32> to vector<8x32xf32>
    %217 = vector.extract_strided_slice %214 {offsets = [0, 64], sizes = [8, 32], strides = [1, 1]} : vector<8x96xf32> to vector<8x32xf32>
    %c1_94 = arith.constant 1 : index
    %c0_95 = arith.constant 0 : index
    %c0_96 = arith.constant 0 : index
    %218 = vector.load %arg7[%c1_94, %c0_95, %c0_96] : memref<2x32x32xf32, #tpu.memory_space<vmem>>, vector<1x32x32xf32>
    %219 = vector.shape_cast %218 : vector<1x32x32xf32> to vector<32x32xf32>
    %c1_97 = arith.constant 1 : index
    %c0_98 = arith.constant 0 : index
    %c0_99 = arith.constant 0 : index
    %220 = vector.load %arg8[%c1_97, %c0_98, %c0_99] : memref<2x1x32xf32, #tpu.memory_space<vmem>>, vector<1x1x32xf32>
    %221 = vector.shape_cast %220 : vector<1x1x32xf32> to vector<1x32xf32>
    %222 = vector.extract_strided_slice %215 {offsets = [0, 0], sizes = [8, 8], strides = [1, 1]} : vector<8x32xf32> to vector<8x8xf32>
    %223 = vector.extract_strided_slice %216 {offsets = [0, 0], sizes = [8, 8], strides = [1, 1]} : vector<8x32xf32> to vector<8x8xf32>
    %224 = vector.extract_strided_slice %217 {offsets = [0, 0], sizes = [8, 8], strides = [1, 1]} : vector<8x32xf32> to vector<8x8xf32>
    %cst_100 = arith.constant dense<0.000000e+00> : vector<8x8xf32>
    %225 = tpu.matmul %222, %223, %cst_100 {dimension_numbers = #tpu.dot_dimension_numbers<[1], [1], [0], [0], [0, 0, 1, 0], [], []>} : vector<8x8xf32>, vector<8x8xf32>, vector<8x8xf32> -> vector<8x8xf32>
    %226 = vector.broadcast %31 : vector<1x8xf32> to vector<8x8xf32>
    %227 = arith.addf %225, %226 : vector<8x8xf32>
    %cst_101 = arith.constant dense<0xFF800000> : vector<8xf32>
    %228 = vector.multi_reduction <maximumf>, %227, %cst_101 [1] : vector<8x8xf32> to vector<8xf32>
    %229 = vector.shape_cast %228 : vector<8xf32> to vector<8x1xf32>
    %230 = vector.broadcast %229 : vector<8x1xf32> to vector<8x8xf32>
    %231 = arith.subf %227, %230 : vector<8x8xf32>
    %232 = math.exp %231 : vector<8x8xf32>
    %cst_102 = arith.constant dense<0.000000e+00> : vector<8xf32>
    %233 = vector.multi_reduction <add>, %232, %cst_102 [1] : vector<8x8xf32> to vector<8xf32>
    %234 = vector.shape_cast %233 : vector<8xf32> to vector<8x1xf32>
    %235 = tpu.reciprocal %234 {approx = true} : vector<8x1xf32> -> vector<8x1xf32>
    %236 = vector.broadcast %235 : vector<8x1xf32> to vector<8x8xf32>
    %237 = arith.mulf %232, %236 : vector<8x8xf32>
    %cst_103 = arith.constant dense<0.000000e+00> : vector<8x8xf32>
    %238 = tpu.matmul %237, %224, %cst_103 {dimension_numbers = #tpu.dot_dimension_numbers<[1], [0], [0], [1], [0, 0, 1, 1], [], []>} : vector<8x8xf32>, vector<8x8xf32>, vector<8x8xf32> -> vector<8x8xf32>
    %239 = vector.extract_strided_slice %219 {offsets = [0, 0], sizes = [8, 32], strides = [1, 1]} : vector<32x32xf32> to vector<8x32xf32>
    %cst_104 = arith.constant dense<0.000000e+00> : vector<8x32xf32>
    %240 = tpu.matmul %238, %239, %cst_104 {dimension_numbers = #tpu.dot_dimension_numbers<[1], [0], [0], [1], [0, 0, 1, 1], [], []>} : vector<8x8xf32>, vector<8x32xf32>, vector<8x32xf32> -> vector<8x32xf32>
    %241 = vector.broadcast %221 : vector<1x32xf32> to vector<8x32xf32>
    %242 = arith.addf %241, %240 : vector<8x32xf32>
    %243 = vector.extract_strided_slice %215 {offsets = [0, 8], sizes = [8, 8], strides = [1, 1]} : vector<8x32xf32> to vector<8x8xf32>
    %244 = vector.extract_strided_slice %216 {offsets = [0, 8], sizes = [8, 8], strides = [1, 1]} : vector<8x32xf32> to vector<8x8xf32>
    %245 = vector.extract_strided_slice %217 {offsets = [0, 8], sizes = [8, 8], strides = [1, 1]} : vector<8x32xf32> to vector<8x8xf32>
    %cst_105 = arith.constant dense<0.000000e+00> : vector<8x8xf32>
    %246 = tpu.matmul %243, %244, %cst_105 {dimension_numbers = #tpu.dot_dimension_numbers<[1], [1], [0], [0], [0, 0, 1, 0], [], []>} : vector<8x8xf32>, vector<8x8xf32>, vector<8x8xf32> -> vector<8x8xf32>
    %247 = vector.broadcast %31 : vector<1x8xf32> to vector<8x8xf32>
    %248 = arith.addf %246, %247 : vector<8x8xf32>
    %cst_106 = arith.constant dense<0xFF800000> : vector<8xf32>
    %249 = vector.multi_reduction <maximumf>, %248, %cst_106 [1] : vector<8x8xf32> to vector<8xf32>
    %250 = vector.shape_cast %249 : vector<8xf32> to vector<8x1xf32>
    %251 = vector.broadcast %250 : vector<8x1xf32> to vector<8x8xf32>
    %252 = arith.subf %248, %251 : vector<8x8xf32>
    %253 = math.exp %252 : vector<8x8xf32>
    %cst_107 = arith.constant dense<0.000000e+00> : vector<8xf32>
    %254 = vector.multi_reduction <add>, %253, %cst_107 [1] : vector<8x8xf32> to vector<8xf32>
    %255 = vector.shape_cast %254 : vector<8xf32> to vector<8x1xf32>
    %256 = tpu.reciprocal %255 {approx = true} : vector<8x1xf32> -> vector<8x1xf32>
    %257 = vector.broadcast %256 : vector<8x1xf32> to vector<8x8xf32>
    %258 = arith.mulf %253, %257 : vector<8x8xf32>
    %cst_108 = arith.constant dense<0.000000e+00> : vector<8x8xf32>
    %259 = tpu.matmul %258, %245, %cst_108 {dimension_numbers = #tpu.dot_dimension_numbers<[1], [0], [0], [1], [0, 0, 1, 1], [], []>} : vector<8x8xf32>, vector<8x8xf32>, vector<8x8xf32> -> vector<8x8xf32>
    %260 = vector.extract_strided_slice %219 {offsets = [8, 0], sizes = [8, 32], strides = [1, 1]} : vector<32x32xf32> to vector<8x32xf32>
    %cst_109 = arith.constant dense<0.000000e+00> : vector<8x32xf32>
    %261 = tpu.matmul %259, %260, %cst_109 {dimension_numbers = #tpu.dot_dimension_numbers<[1], [0], [0], [1], [0, 0, 1, 1], [], []>} : vector<8x8xf32>, vector<8x32xf32>, vector<8x32xf32> -> vector<8x32xf32>
    %262 = arith.addf %242, %261 : vector<8x32xf32>
    %263 = vector.extract_strided_slice %215 {offsets = [0, 16], sizes = [8, 8], strides = [1, 1]} : vector<8x32xf32> to vector<8x8xf32>
    %264 = vector.extract_strided_slice %216 {offsets = [0, 16], sizes = [8, 8], strides = [1, 1]} : vector<8x32xf32> to vector<8x8xf32>
    %265 = vector.extract_strided_slice %217 {offsets = [0, 16], sizes = [8, 8], strides = [1, 1]} : vector<8x32xf32> to vector<8x8xf32>
    %cst_110 = arith.constant dense<0.000000e+00> : vector<8x8xf32>
    %266 = tpu.matmul %263, %264, %cst_110 {dimension_numbers = #tpu.dot_dimension_numbers<[1], [1], [0], [0], [0, 0, 1, 0], [], []>} : vector<8x8xf32>, vector<8x8xf32>, vector<8x8xf32> -> vector<8x8xf32>
    %267 = vector.broadcast %31 : vector<1x8xf32> to vector<8x8xf32>
    %268 = arith.addf %266, %267 : vector<8x8xf32>
    %cst_111 = arith.constant dense<0xFF800000> : vector<8xf32>
    %269 = vector.multi_reduction <maximumf>, %268, %cst_111 [1] : vector<8x8xf32> to vector<8xf32>
    %270 = vector.shape_cast %269 : vector<8xf32> to vector<8x1xf32>
    %271 = vector.broadcast %270 : vector<8x1xf32> to vector<8x8xf32>
    %272 = arith.subf %268, %271 : vector<8x8xf32>
    %273 = math.exp %272 : vector<8x8xf32>
    %cst_112 = arith.constant dense<0.000000e+00> : vector<8xf32>
    %274 = vector.multi_reduction <add>, %273, %cst_112 [1] : vector<8x8xf32> to vector<8xf32>
    %275 = vector.shape_cast %274 : vector<8xf32> to vector<8x1xf32>
    %276 = tpu.reciprocal %275 {approx = true} : vector<8x1xf32> -> vector<8x1xf32>
    %277 = vector.broadcast %276 : vector<8x1xf32> to vector<8x8xf32>
    %278 = arith.mulf %273, %277 : vector<8x8xf32>
    %cst_113 = arith.constant dense<0.000000e+00> : vector<8x8xf32>
    %279 = tpu.matmul %278, %265, %cst_113 {dimension_numbers = #tpu.dot_dimension_numbers<[1], [0], [0], [1], [0, 0, 1, 1], [], []>} : vector<8x8xf32>, vector<8x8xf32>, vector<8x8xf32> -> vector<8x8xf32>
    %280 = vector.extract_strided_slice %219 {offsets = [16, 0], sizes = [8, 32], strides = [1, 1]} : vector<32x32xf32> to vector<8x32xf32>
    %cst_114 = arith.constant dense<0.000000e+00> : vector<8x32xf32>
    %281 = tpu.matmul %279, %280, %cst_114 {dimension_numbers = #tpu.dot_dimension_numbers<[1], [0], [0], [1], [0, 0, 1, 1], [], []>} : vector<8x8xf32>, vector<8x32xf32>, vector<8x32xf32> -> vector<8x32xf32>
    %282 = arith.addf %262, %281 : vector<8x32xf32>
    %283 = vector.extract_strided_slice %215 {offsets = [0, 24], sizes = [8, 8], strides = [1, 1]} : vector<8x32xf32> to vector<8x8xf32>
    %284 = vector.extract_strided_slice %216 {offsets = [0, 24], sizes = [8, 8], strides = [1, 1]} : vector<8x32xf32> to vector<8x8xf32>
    %285 = vector.extract_strided_slice %217 {offsets = [0, 24], sizes = [8, 8], strides = [1, 1]} : vector<8x32xf32> to vector<8x8xf32>
    %cst_115 = arith.constant dense<0.000000e+00> : vector<8x8xf32>
    %286 = tpu.matmul %283, %284, %cst_115 {dimension_numbers = #tpu.dot_dimension_numbers<[1], [1], [0], [0], [0, 0, 1, 0], [], []>} : vector<8x8xf32>, vector<8x8xf32>, vector<8x8xf32> -> vector<8x8xf32>
    %287 = vector.broadcast %31 : vector<1x8xf32> to vector<8x8xf32>
    %288 = arith.addf %286, %287 : vector<8x8xf32>
    %cst_116 = arith.constant dense<0xFF800000> : vector<8xf32>
    %289 = vector.multi_reduction <maximumf>, %288, %cst_116 [1] : vector<8x8xf32> to vector<8xf32>
    %290 = vector.shape_cast %289 : vector<8xf32> to vector<8x1xf32>
    %291 = vector.broadcast %290 : vector<8x1xf32> to vector<8x8xf32>
    %292 = arith.subf %288, %291 : vector<8x8xf32>
    %293 = math.exp %292 : vector<8x8xf32>
    %cst_117 = arith.constant dense<0.000000e+00> : vector<8xf32>
    %294 = vector.multi_reduction <add>, %293, %cst_117 [1] : vector<8x8xf32> to vector<8xf32>
    %295 = vector.shape_cast %294 : vector<8xf32> to vector<8x1xf32>
    %296 = tpu.reciprocal %295 {approx = true} : vector<8x1xf32> -> vector<8x1xf32>
    %297 = vector.broadcast %296 : vector<8x1xf32> to vector<8x8xf32>
    %298 = arith.mulf %293, %297 : vector<8x8xf32>
    %cst_118 = arith.constant dense<0.000000e+00> : vector<8x8xf32>
    %299 = tpu.matmul %298, %285, %cst_118 {dimension_numbers = #tpu.dot_dimension_numbers<[1], [0], [0], [1], [0, 0, 1, 1], [], []>} : vector<8x8xf32>, vector<8x8xf32>, vector<8x8xf32> -> vector<8x8xf32>
    %300 = vector.extract_strided_slice %219 {offsets = [24, 0], sizes = [8, 32], strides = [1, 1]} : vector<32x32xf32> to vector<8x32xf32>
    %cst_119 = arith.constant dense<0.000000e+00> : vector<8x32xf32>
    %301 = tpu.matmul %299, %300, %cst_119 {dimension_numbers = #tpu.dot_dimension_numbers<[1], [0], [0], [1], [0, 0, 1, 1], [], []>} : vector<8x8xf32>, vector<8x32xf32>, vector<8x32xf32> -> vector<8x32xf32>
    %302 = arith.addf %282, %301 : vector<8x32xf32>
    %303 = arith.addf %302, %207 : vector<8x32xf32>
    %c1_120 = arith.constant 1 : index
    %c0_121 = arith.constant 0 : index
    %c0_122 = arith.constant 0 : index
    %304 = vector.load %arg9[%c1_120, %c0_121, %c0_122] : memref<2x1x32xf32, #tpu.memory_space<vmem>>, vector<1x1x32xf32>
    %305 = vector.shape_cast %304 : vector<1x1x32xf32> to vector<1x32xf32>
    %c1_123 = arith.constant 1 : index
    %c0_124 = arith.constant 0 : index
    %c0_125 = arith.constant 0 : index
    %306 = vector.load %arg10[%c1_123, %c0_124, %c0_125] : memref<2x1x32xf32, #tpu.memory_space<vmem>>, vector<1x1x32xf32>
    %307 = vector.shape_cast %306 : vector<1x1x32xf32> to vector<1x32xf32>
    %cst_126 = arith.constant dense<0.000000e+00> : vector<8xf32>
    %308 = vector.multi_reduction <add>, %303, %cst_126 [1] : vector<8x32xf32> to vector<8xf32>
    %309 = vector.shape_cast %308 : vector<8xf32> to vector<8x1xf32>
    %cst_127 = arith.constant 3.200000e+01 : f32
    %310 = vector.broadcast %cst_127 : f32 to vector<8x1xf32>
    %311 = arith.divf %309, %310 : vector<8x1xf32>
    %312 = vector.broadcast %311 : vector<8x1xf32> to vector<8x32xf32>
    %313 = arith.subf %303, %312 : vector<8x32xf32>
    %314 = arith.mulf %313, %313 : vector<8x32xf32>
    %cst_128 = arith.constant dense<0.000000e+00> : vector<8xf32>
    %315 = vector.multi_reduction <add>, %314, %cst_128 [1] : vector<8x32xf32> to vector<8xf32>
    %316 = vector.shape_cast %315 : vector<8xf32> to vector<8x1xf32>
    %cst_129 = arith.constant 3.200000e+01 : f32
    %317 = vector.broadcast %cst_129 : f32 to vector<8x1xf32>
    %318 = arith.divf %316, %317 : vector<8x1xf32>
    %319 = vector.broadcast %311 : vector<8x1xf32> to vector<8x32xf32>
    %320 = arith.subf %303, %319 : vector<8x32xf32>
    %cst_130 = arith.constant 9.99999996E-13 : f32
    %321 = vector.broadcast %cst_130 : f32 to vector<8x1xf32>
    %322 = arith.addf %318, %321 : vector<8x1xf32>
    %323 = math.rsqrt %322 : vector<8x1xf32>
    %324 = vector.broadcast %323 : vector<8x1xf32> to vector<8x32xf32>
    %325 = arith.mulf %320, %324 : vector<8x32xf32>
    %326 = vector.broadcast %305 : vector<1x32xf32> to vector<8x32xf32>
    %327 = arith.mulf %325, %326 : vector<8x32xf32>
    %328 = vector.broadcast %307 : vector<1x32xf32> to vector<8x32xf32>
    %329 = arith.addf %327, %328 : vector<8x32xf32>
    %c1_131 = arith.constant 1 : index
    %c0_132 = arith.constant 0 : index
    %c0_133 = arith.constant 0 : index
    %330 = vector.load %arg11[%c1_131, %c0_132, %c0_133] : memref<2x32x64xf32, #tpu.memory_space<vmem>>, vector<1x32x64xf32>
    %331 = vector.shape_cast %330 : vector<1x32x64xf32> to vector<32x64xf32>
    %cst_134 = arith.constant dense<0.000000e+00> : vector<8x64xf32>
    %332 = tpu.matmul %329, %331, %cst_134 {dimension_numbers = #tpu.dot_dimension_numbers<[1], [0], [0], [1], [0, 0, 1, 1], [], []>} : vector<8x32xf32>, vector<32x64xf32>, vector<8x64xf32> -> vector<8x64xf32>
    %c1_135 = arith.constant 1 : index
    %c0_136 = arith.constant 0 : index
    %c0_137 = arith.constant 0 : index
    %333 = vector.load %arg12[%c1_135, %c0_136, %c0_137] : memref<2x1x64xf32, #tpu.memory_space<vmem>>, vector<1x1x64xf32>
    %334 = vector.shape_cast %333 : vector<1x1x64xf32> to vector<1x64xf32>
    %335 = vector.broadcast %334 : vector<1x64xf32> to vector<8x64xf32>
    %336 = arith.addf %332, %335 : vector<8x64xf32>
    %337 = arith.mulf %336, %336 : vector<8x64xf32>
    %338 = arith.mulf %336, %337 : vector<8x64xf32>
    %cst_138 = arith.constant 4.471500e-02 : f32
    %339 = vector.broadcast %cst_138 : f32 to vector<8x64xf32>
    %340 = arith.mulf %339, %338 : vector<8x64xf32>
    %341 = arith.addf %336, %340 : vector<8x64xf32>
    %cst_139 = arith.constant 0.797884583 : f32
    %342 = vector.broadcast %cst_139 : f32 to vector<8x64xf32>
    %343 = arith.mulf %342, %341 : vector<8x64xf32>
    %344 = math.tanh %343 : vector<8x64xf32>
    %cst_140 = arith.constant 1.000000e+00 : f32
    %345 = vector.broadcast %cst_140 : f32 to vector<8x64xf32>
    %346 = arith.addf %345, %344 : vector<8x64xf32>
    %cst_141 = arith.constant 5.000000e-01 : f32
    %347 = vector.broadcast %cst_141 : f32 to vector<8x64xf32>
    %348 = arith.mulf %347, %346 : vector<8x64xf32>
    %349 = arith.mulf %336, %348 : vector<8x64xf32>
    %c1_142 = arith.constant 1 : index
    %c0_143 = arith.constant 0 : index
    %c0_144 = arith.constant 0 : index
    %350 = vector.load %arg13[%c1_142, %c0_143, %c0_144] : memref<2x64x32xf32, #tpu.memory_space<vmem>>, vector<1x64x32xf32>
    %351 = vector.shape_cast %350 : vector<1x64x32xf32> to vector<64x32xf32>
    %cst_145 = arith.constant dense<0.000000e+00> : vector<8x32xf32>
    %352 = tpu.matmul %349, %351, %cst_145 {dimension_numbers = #tpu.dot_dimension_numbers<[1], [0], [0], [1], [0, 0, 1, 1], [], []>} : vector<8x64xf32>, vector<64x32xf32>, vector<8x32xf32> -> vector<8x32xf32>
    %c1_146 = arith.constant 1 : index
    %c0_147 = arith.constant 0 : index
    %c0_148 = arith.constant 0 : index
    %353 = vector.load %arg14[%c1_146, %c0_147, %c0_148] : memref<2x1x32xf32, #tpu.memory_space<vmem>>, vector<1x1x32xf32>
    %354 = vector.shape_cast %353 : vector<1x1x32xf32> to vector<1x32xf32>
    %355 = vector.broadcast %354 : vector<1x32xf32> to vector<8x32xf32>
    %356 = arith.addf %352, %355 : vector<8x32xf32>
    %357 = arith.addf %356, %329 : vector<8x32xf32>
    %c1_149 = arith.constant 1 : index
    %c0_150 = arith.constant 0 : index
    %c0_151 = arith.constant 0 : index
    %358 = vector.load %arg15[%c1_149, %c0_150, %c0_151] : memref<2x1x32xf32, #tpu.memory_space<vmem>>, vector<1x1x32xf32>
    %359 = vector.shape_cast %358 : vector<1x1x32xf32> to vector<1x32xf32>
    %c1_152 = arith.constant 1 : index
    %c0_153 = arith.constant 0 : index
    %c0_154 = arith.constant 0 : index
    %360 = vector.load %arg16[%c1_152, %c0_153, %c0_154] : memref<2x1x32xf32, #tpu.memory_space<vmem>>, vector<1x1x32xf32>
    %361 = vector.shape_cast %360 : vector<1x1x32xf32> to vector<1x32xf32>
    %cst_155 = arith.constant dense<0.000000e+00> : vector<8xf32>
    %362 = vector.multi_reduction <add>, %357, %cst_155 [1] : vector<8x32xf32> to vector<8xf32>
    %363 = vector.shape_cast %362 : vector<8xf32> to vector<8x1xf32>
    %cst_156 = arith.constant 3.200000e+01 : f32
    %364 = vector.broadcast %cst_156 : f32 to vector<8x1xf32>
    %365 = arith.divf %363, %364 : vector<8x1xf32>
    %366 = vector.broadcast %365 : vector<8x1xf32> to vector<8x32xf32>
    %367 = arith.subf %357, %366 : vector<8x32xf32>
    %368 = arith.mulf %367, %367 : vector<8x32xf32>
    %cst_157 = arith.constant dense<0.000000e+00> : vector<8xf32>
    %369 = vector.multi_reduction <add>, %368, %cst_157 [1] : vector<8x32xf32> to vector<8xf32>
    %370 = vector.shape_cast %369 : vector<8xf32> to vector<8x1xf32>
    %cst_158 = arith.constant 3.200000e+01 : f32
    %371 = vector.broadcast %cst_158 : f32 to vector<8x1xf32>
    %372 = arith.divf %370, %371 : vector<8x1xf32>
    %373 = vector.broadcast %365 : vector<8x1xf32> to vector<8x32xf32>
    %374 = arith.subf %357, %373 : vector<8x32xf32>
    %cst_159 = arith.constant 9.99999996E-13 : f32
    %375 = vector.broadcast %cst_159 : f32 to vector<8x1xf32>
    %376 = arith.addf %372, %375 : vector<8x1xf32>
    %377 = math.rsqrt %376 : vector<8x1xf32>
    %378 = vector.broadcast %377 : vector<8x1xf32> to vector<8x32xf32>
    %379 = arith.mulf %374, %378 : vector<8x32xf32>
    %380 = vector.broadcast %359 : vector<1x32xf32> to vector<8x32xf32>
    %381 = arith.mulf %379, %380 : vector<8x32xf32>
    %382 = vector.broadcast %361 : vector<1x32xf32> to vector<8x32xf32>
    %383 = arith.addf %381, %382 : vector<8x32xf32>
    %384 = vector.extract_strided_slice %383 {offsets = [0, 0], sizes = [1, 32], strides = [1, 1]} : vector<8x32xf32> to vector<1x32xf32>
    %c0_160 = arith.constant 0 : index
    %c0_161 = arith.constant 0 : index
    %385 = vector.load %arg17[%c0_160, %c0_161] : memref<32x32xf32, #tpu.memory_space<vmem>>, vector<32x32xf32>
    %cst_162 = arith.constant dense<0.000000e+00> : vector<1x32xf32>
    %386 = tpu.matmul %384, %385, %cst_162 {dimension_numbers = #tpu.dot_dimension_numbers<[1], [0], [0], [1], [0, 0, 1, 1], [], []>} : vector<1x32xf32>, vector<32x32xf32>, vector<1x32xf32> -> vector<1x32xf32>
    %c0_163 = arith.constant 0 : index
    %c0_164 = arith.constant 0 : index
    %387 = vector.load %arg18[%c0_163, %c0_164] : memref<1x32xf32, #tpu.memory_space<vmem>>, vector<1x32xf32>
    %388 = arith.addf %386, %387 : vector<1x32xf32>
    %389 = math.tanh %388 : vector<1x32xf32>
    %c0_165 = arith.constant 0 : index
    %c0_166 = arith.constant 0 : index
    %390 = vector.load %arg19[%c0_165, %c0_166] : memref<32x2xf32, #tpu.memory_space<vmem>>, vector<32x2xf32>
    %cst_167 = arith.constant dense<0.000000e+00> : vector<1x2xf32>
    %391 = tpu.matmul %389, %390, %cst_167 {dimension_numbers = #tpu.dot_dimension_numbers<[1], [0], [0], [1], [0, 0, 1, 1], [], []>} : vector<1x32xf32>, vector<32x2xf32>, vector<1x2xf32> -> vector<1x2xf32>
    %c0_168 = arith.constant 0 : index
    %c0_169 = arith.constant 0 : index
    %392 = vector.load %arg20[%c0_168, %c0_169] : memref<1x2xf32, #tpu.memory_space<vmem>>, vector<1x2xf32>
    %393 = arith.addf %391, %392 : vector<1x2xf32>
    %c0_170 = arith.constant 0 : index
    %c0_171 = arith.constant 0 : index
    %c0_172 = arith.constant 0 : index
    %394 = vector.load %arg21[%c0_170, %c0_171, %c0_172] : memref<1x1x2xf32, #tpu.memory_space<vmem>>, vector<1x1x2xf32>
    %395 = vector.shape_cast %394 : vector<1x1x2xf32> to vector<1x2xf32>
    %396 = vector.shape_cast %393 : vector<1x2xf32> to vector<1x1x2xf32>
    tpu.vector_store %arg21[%c0_170, %c0_171, %c0_172], %396 {strides = array<i32>} : memref<1x1x2xf32, #tpu.memory_space<vmem>>, vector<1x1x2xf32>,
    return
  }
  func.func @transform_0(%arg0: i32) -> (i32, i32, i32) {
    %c0_i32 = arith.constant 0 : i32
    %c0_i32_0 = arith.constant 0 : i32
    %c0_i32_1 = arith.constant 0 : i32
    return %arg0, %c0_i32, %c0_i32_0 : i32, i32, i32
  }
  func.func @transform_1(%arg0: i32) -> (i32, i32, i32) {
    %c0_i32 = arith.constant 0 : i32
    %c0_i32_0 = arith.constant 0 : i32
    %c0_i32_1 = arith.constant 0 : i32
    return %arg0, %c0_i32, %c0_i32_0 : i32, i32, i32
  }
  func.func @transform_2(%arg0: i32) -> (i32, i32) {
    %c0_i32 = arith.constant 0 : i32
    %c0_i32_0 = arith.constant 0 : i32
    %c0_i32_1 = arith.constant 0 : i32
    return %c0_i32, %c0_i32_0 : i32, i32
  }
  func.func @transform_3(%arg0: i32) -> (i32, i32) {
    %c0_i32 = arith.constant 0 : i32
    %c0_i32_0 = arith.constant 0 : i32
    %c0_i32_1 = arith.constant 0 : i32
    return %c0_i32, %c0_i32_0 : i32, i32
  }
  func.func @transform_4(%arg0: i32) -> (i32, i32, i32) {
    %c0_i32 = arith.constant 0 : i32
    %c0_i32_0 = arith.constant 0 : i32
    %c0_i32_1 = arith.constant 0 : i32
    %c0_i32_2 = arith.constant 0 : i32
    return %c0_i32, %c0_i32_0, %c0_i32_1 : i32, i32, i32
  }
  func.func @transform_5(%arg0: i32) -> (i32, i32, i32) {
    %c0_i32 = arith.constant 0 : i32
    %c0_i32_0 = arith.constant 0 : i32
    %c0_i32_1 = arith.constant 0 : i32
    %c0_i32_2 = arith.constant 0 : i32
    return %c0_i32, %c0_i32_0, %c0_i32_1 : i32, i32, i32
  }
  func.func @transform_6(%arg0: i32) -> (i32, i32, i32) {
    %c0_i32 = arith.constant 0 : i32
    %c0_i32_0 = arith.constant 0 : i32
    %c0_i32_1 = arith.constant 0 : i32
    %c0_i32_2 = arith.constant 0 : i32
    return %c0_i32, %c0_i32_0, %c0_i32_1 : i32, i32, i32
  }
  func.func @transform_7(%arg0: i32) -> (i32, i32, i32) {
    %c0_i32 = arith.constant 0 : i32
    %c0_i32_0 = arith.constant 0 : i32
    %c0_i32_1 = arith.constant 0 : i32
    %c0_i32_2 = arith.constant 0 : i32
    return %c0_i32, %c0_i32_0, %c0_i32_1 : i32, i32, i32
  }
  func.func @transform_8(%arg0: i32) -> (i32, i32, i32) {
    %c0_i32 = arith.constant 0 : i32
    %c0_i32_0 = arith.constant 0 : i32
    %c0_i32_1 = arith.constant 0 : i32
    %c0_i32_2 = arith.constant 0 : i32
    return %c0_i32, %c0_i32_0, %c0_i32_1 : i32, i32, i32
  }
  func.func @transform_9(%arg0: i32) -> (i32, i32, i32) {
    %c0_i32 = arith.constant 0 : i32
    %c0_i32_0 = arith.constant 0 : i32
    %c0_i32_1 = arith.constant 0 : i32
    %c0_i32_2 = arith.constant 0 : i32
    return %c0_i32, %c0_i32_0, %c0_i32_1 : i32, i32, i32
  }
  func.func @transform_10(%arg0: i32) -> (i32, i32, i32) {
    %c0_i32 = arith.constant 0 : i32
    %c0_i32_0 = arith.constant 0 : i32
    %c0_i32_1 = arith.constant 0 : i32
    %c0_i32_2 = arith.constant 0 : i32
    return %c0_i32, %c0_i32_0, %c0_i32_1 : i32, i32, i32
  }
  func.func @transform_11(%arg0: i32) -> (i32, i32, i32) {
    %c0_i32 = arith.constant 0 : i32
    %c0_i32_0 = arith.constant 0 : i32
    %c0_i32_1 = arith.constant 0 : i32
    %c0_i32_2 = arith.constant 0 : i32
    return %c0_i32, %c0_i32_0, %c0_i32_1 : i32, i32, i32
  }
  func.func @transform_12(%arg0: i32) -> (i32, i32, i32) {
    %c0_i32 = arith.constant 0 : i32
    %c0_i32_0 = arith.constant 0 : i32
    %c0_i32_1 = arith.constant 0 : i32
    %c0_i32_2 = arith.constant 0 : i32
    return %c0_i32, %c0_i32_0, %c0_i32_1 : i32, i32, i32
  }
  func.func @transform_13(%arg0: i32) -> (i32, i32, i32) {
    %c0_i32 = arith.constant 0 : i32
    %c0_i32_0 = arith.constant 0 : i32
    %c0_i32_1 = arith.constant 0 : i32
    %c0_i32_2 = arith.constant 0 : i32
    return %c0_i32, %c0_i32_0, %c0_i32_1 : i32, i32, i32
  }
  func.func @transform_14(%arg0: i32) -> (i32, i32, i32) {
    %c0_i32 = arith.constant 0 : i32
    %c0_i32_0 = arith.constant 0 : i32
    %c0_i32_1 = arith.constant 0 : i32
    %c0_i32_2 = arith.constant 0 : i32
    return %c0_i32, %c0_i32_0, %c0_i32_1 : i32, i32, i32
  }
  func.func @transform_15(%arg0: i32) -> (i32, i32, i32) {
    %c0_i32 = arith.constant 0 : i32
    %c0_i32_0 = arith.constant 0 : i32
    %c0_i32_1 = arith.constant 0 : i32
    %c0_i32_2 = arith.constant 0 : i32
    return %c0_i32, %c0_i32_0, %c0_i32_1 : i32, i32, i32
  }
  func.func @transform_16(%arg0: i32) -> (i32, i32) {
    %c0_i32 = arith.constant 0 : i32
    %c0_i32_0 = arith.constant 0 : i32
    %c0_i32_1 = arith.constant 0 : i32
    return %c0_i32, %c0_i32_0 : i32, i32
  }
  func.func @transform_17(%arg0: i32) -> (i32, i32) {
    %c0_i32 = arith.constant 0 : i32
    %c0_i32_0 = arith.constant 0 : i32
    %c0_i32_1 = arith.constant 0 : i32
    return %c0_i32, %c0_i32_0 : i32, i32
  }
  func.func @transform_18(%arg0: i32) -> (i32, i32) {
    %c0_i32 = arith.constant 0 : i32
    %c0_i32_0 = arith.constant 0 : i32
    %c0_i32_1 = arith.constant 0 : i32
    return %c0_i32, %c0_i32_0 : i32, i32
  }
  func.func @transform_19(%arg0: i32) -> (i32, i32) {
    %c0_i32 = arith.constant 0 : i32
    %c0_i32_0 = arith.constant 0 : i32
    %c0_i32_1 = arith.constant 0 : i32
    return %c0_i32, %c0_i32_0 : i32, i32
  }
  func.func @transform_20(%arg0: i32) -> (i32, i32, i32) {
    %c0_i32 = arith.constant 0 : i32
    %c0_i32_0 = arith.constant 0 : i32
    %c0_i32_1 = arith.constant 0 : i32
    return %arg0, %c0_i32, %c0_i32_0 : i32, i32, i32
  }
}

</mosaic_0001>

<llo_original>
// kernel: bert_wrapper_forward.1
$region0: #{bert_wrapper_forward.1}
  #allocation0 [shape = 'u32[]', space=smem, size = 0x4, offset = 0x4, fixed_abs, tag = 'smem constant byte address 0x4 - core index']
  #allocation1 [shape = 'u32[144,128]{1,0:T(1,128)}', space=vmem, size = 0x12000, scoped, tag = 'internal scratch']
  %s0 = inlined_call_operand.vmem [shape: f32[2,8,32], index: 0, kind: input, shape index: {}]
  %s1 = inlined_call_operand.vmem [shape: f32[2,1,8], index: 1, kind: input, shape index: {}]
  %s2 = inlined_call_operand.vmem [shape: f32[1,32], index: 2, kind: input, shape index: {}]
  %s3 = inlined_call_operand.vmem [shape: f32[1,32], index: 3, kind: input, shape index: {}]
  %s4 = inlined_call_operand.vmem [shape: f32[2,32,96], index: 4, kind: input, shape index: {}]
  %s5 = inlined_call_operand.vmem [shape: f32[2,1,96], index: 5, kind: input, shape index: {}]
  %s6 = inlined_call_operand.vmem [shape: f32[2,32,32], index: 6, kind: input, shape index: {}]
  %s7 = inlined_call_operand.vmem [shape: f32[2,1,32], index: 7, kind: input, shape index: {}]
  %s8 = inlined_call_operand.vmem [shape: f32[2,1,32], index: 8, kind: input, shape index: {}]
  %s9 = inlined_call_operand.vmem [shape: f32[2,1,32], index: 9, kind: input, shape index: {}]
  %s10 = inlined_call_operand.vmem [shape: f32[2,32,64], index: 10, kind: input, shape index: {}]
  %s11 = inlined_call_operand.vmem [shape: f32[2,1,64], index: 11, kind: input, shape index: {}]
  %s12 = inlined_call_operand.vmem [shape: f32[2,64,32], index: 12, kind: input, shape index: {}]
  %s13 = inlined_call_operand.vmem [shape: f32[2,1,32], index: 13, kind: input, shape index: {}]
  %s14 = inlined_call_operand.vmem [shape: f32[2,1,32], index: 14, kind: input, shape index: {}]
  %s15 = inlined_call_operand.vmem [shape: f32[2,1,32], index: 15, kind: input, shape index: {}]
  %s16 = inlined_call_operand.vmem [shape: f32[32,32], index: 16, kind: input, shape index: {}]
  %s17 = inlined_call_operand.vmem [shape: f32[1,32], index: 17, kind: input, shape index: {}]
  %s18 = inlined_call_operand.vmem [shape: f32[32,2], index: 18, kind: input, shape index: {}]
  %s19 = inlined_call_operand.vmem [shape: f32[1,2], index: 19, kind: input, shape index: {}]
  %s20 = inlined_call_operand.hbm [shape: f32[2,1,2], index: 20, kind: output, shape index: {}]
  %s21 = sld [smem:[#allocation0]]
  $region113: #{bert_wrapper_forward.1} parent=0
    _
  %s23 = ssub.s32 1, %s21
  %s24 = scalar_select 0, %s23, %s21
  $region1: #{bert_wrapper_forward.1} parent=0
    #allocation2 [shape = 'u8[1024]{0}', space=vmem, size = 0x400, scoped, tag = 'output window, operand 0']
    #allocation3 [shape = 's32[2]{0}', space=sflag, size = 0x8, scoped, tag = 'scoped memory for bert_wrapper_forward.1']
    %25 = vsyncpa [#allocation3], 0
    %s26 = scalar_lea.sflag [#allocation3], 1
    %27 = vsyncpa %s26, 0
    loop: start=0, step=1, limit=4
    $region2: #{bert_wrapper_forward.1} parent=1 // loop_pre_header
      _
    $region3: #{bert_wrapper_forward.1} parent=1 // loop_header
      %s29 = sphi 0, %s33
      %p30 = scmp.ge.s32.totalorder %s29, 4
      %s39 = sphi 0, %s41
      %s42 = sphi 0, %s39
      %s43 = sphi 0, %s42
      %s59 = sphi 0, %s43
      %s65 = sphi 0, %s67
      %s68 = sphi 0, %s65
      %s69 = sphi 0, %s68
      %s85 = sphi 0, %s69
      %s89 = sphi 0, %s89
      %s91 = sphi 0, %s89
      %s92 = sphi 0, %s91
      %s106 = sphi 0, %s92
      %s110 = sphi 0, %s110
      %s112 = sphi 0, %s110
      %s113 = sphi 0, %s112
      %s127 = sphi 0, %s113
      %s131 = sphi 0, %s131
      %s133 = sphi 0, %s131
      %s134 = sphi 0, %s133
      %s148 = sphi 0, %s134
      %s152 = sphi 0, %s152
      %s154 = sphi 0, %s152
      %s155 = sphi 0, %s154
      %s169 = sphi 0, %s155
      %s173 = sphi 0, %s173
      %s175 = sphi 0, %s173
      %s176 = sphi 0, %s175
      %s190 = sphi 0, %s176
      %s194 = sphi 0, %s194
      %s196 = sphi 0, %s194
      %s197 = sphi 0, %s196
      %s211 = sphi 0, %s197
      %s215 = sphi 0, %s215
      %s217 = sphi 0, %s215
      %s218 = sphi 0, %s217
      %s232 = sphi 0, %s218
      %s236 = sphi 0, %s236
      %s238 = sphi 0, %s236
      %s239 = sphi 0, %s238
      %s253 = sphi 0, %s239
      %s257 = sphi 0, %s257
      %s259 = sphi 0, %s257
      %s260 = sphi 0, %s259
      %s274 = sphi 0, %s260
      %s278 = sphi 0, %s278
      %s280 = sphi 0, %s278
      %s281 = sphi 0, %s280
      %s295 = sphi 0, %s281
      %s299 = sphi 0, %s299
      %s301 = sphi 0, %s299
      %s302 = sphi 0, %s301
      %s316 = sphi 0, %s302
      %s320 = sphi 0, %s320
      %s322 = sphi 0, %s320
      %s323 = sphi 0, %s322
      %s337 = sphi 0, %s323
      %s341 = sphi 0, %s341
      %s343 = sphi 0, %s341
      %s344 = sphi 0, %s343
      %s358 = sphi 0, %s344
      %s362 = sphi 0, %s362
      %s364 = sphi 0, %s362
      %s365 = sphi 0, %s364
      %s379 = sphi 0, %s365
      %s383 = sphi 0, %s383
      %s385 = sphi 0, %s383
      %s386 = sphi 0, %s385
      %s400 = sphi 0, %s386
      %s404 = sphi 0, %s404
      %s406 = sphi 0, %s404
      %s407 = sphi 0, %s406
      %s421 = sphi 0, %s407
      %s425 = sphi 0, %s425
      %s427 = sphi 0, %s425
      %s428 = sphi 0, %s427
      %s442 = sphi 0, %s428
      %s446 = sphi 0, %s446
      %s448 = sphi 0, %s446
      %s449 = sphi 0, %s448
      %s463 = sphi 0, %s449
      %s469 = sphi 0, %s471
      %s472 = sphi 0, %s469
      %s473 = sphi 0, %s472
      %s489 = sphi 0, %s473
    $region4: #{bert_wrapper_forward.1} parent=1 // loop_header_branch
      %32 = sbr.rel (%p30) target = $region8
    $region5: #{bert_wrapper_forward.1} parent=1 // loop_body
      %s34 = ssub.s32 %s29, 1
      %s35 = ssub.s32 %s29, 2
      %s36 = sadd.s32 %s29, 1
      %s37 = ssub.s32 %s29, %s36
      %p38 = scmp.eq.s32.totalorder %s37, 0
      %s40 = sadd.s32 %s39, 1
      %s41 = scalar_select %p38, %s39, %s40
      %p44 = pneg %p38
      %p45 = scmp.eq.s32.totalorder %s29, 1
      %p46 = por %p44, %p45
      %p47 = scmp.ne.s32.totalorder %s39, %s42
      %p48 = scmp.eq.s32.totalorder %s29, 0
      %p49 = por %p47, %p48
      %p50 = scmp.ne.s32.totalorder %s39, %s42
      %p51 = scmp.eq.s32.totalorder %s34, 1
      %p52 = por %p50, %p51
      %p53 = scmp.ne.s32.totalorder %s42, %s43
      %p54 = scmp.eq.s32.totalorder %s34, 0
      %p55 = por %p53, %p54
      %p56 = scmp.ne.s32.totalorder %s42, %s43
      %p57 = scmp.eq.s32.totalorder %s35, 1
      %p58 = por %p56, %p57
      %p60 = scmp.ne.s32.totalorder %s43, %s59
      %p61 = scmp.eq.s32.totalorder %s35, 0
      %p62 = por %p60, %p61
      %s63 = ssub.s32 %s29, %s36
      %p64 = scmp.eq.s32.totalorder %s63, 0
      %s66 = sadd.s32 %s65, 1
      %s67 = scalar_select %p64, %s65, %s66
      %p70 = pneg %p64
      %p71 = scmp.eq.s32.totalorder %s29, 1
      %p72 = por %p70, %p71
      %p73 = scmp.ne.s32.totalorder %s65, %s68
      %p74 = scmp.eq.s32.totalorder %s29, 0
      %p75 = por %p73, %p74
      %p76 = scmp.ne.s32.totalorder %s65, %s68
      %p77 = scmp.eq.s32.totalorder %s34, 1
      %p78 = por %p76, %p77
      %p79 = scmp.ne.s32.totalorder %s68, %s69
      %p80 = scmp.eq.s32.totalorder %s34, 0
      %p81 = por %p79, %p80
      %p82 = scmp.ne.s32.totalorder %s68, %s69
      %p83 = scmp.eq.s32.totalorder %s35, 1
      %p84 = por %p82, %p83
      %p86 = scmp.ne.s32.totalorder %s69, %s85
      %p87 = scmp.eq.s32.totalorder %s35, 0
      %p88 = por %p86, %p87
      %s90 = sadd.s32 %s89, 1
      %p93 = scmp.eq.s32.totalorder %s29, 1
      %p94 = scmp.ne.s32.totalorder %s89, %s91
      %p95 = scmp.eq.s32.totalorder %s29, 0
      %p96 = por %p94, %p95
      %p97 = scmp.ne.s32.totalorder %s89, %s91
      %p98 = scmp.eq.s32.totalorder %s34, 1
      %p99 = por %p97, %p98
      %p100 = scmp.ne.s32.totalorder %s91, %s92
      %p101 = scmp.eq.s32.totalorder %s34, 0
      %p102 = por %p100, %p101
      %p103 = scmp.ne.s32.totalorder %s91, %s92
      %p104 = scmp.eq.s32.totalorder %s35, 1
      %p105 = por %p103, %p104
      %p107 = scmp.ne.s32.totalorder %s92, %s106
      %p108 = scmp.eq.s32.totalorder %s35, 0
      %p109 = por %p107, %p108
      %s111 = sadd.s32 %s110, 1
      %p114 = scmp.eq.s32.totalorder %s29, 1
      %p115 = scmp.ne.s32.totalorder %s110, %s112
      %p116 = scmp.eq.s32.totalorder %s29, 0
      %p117 = por %p115, %p116
      %p118 = scmp.ne.s32.totalorder %s110, %s112
      %p119 = scmp.eq.s32.totalorder %s34, 1
      %p120 = por %p118, %p119
      %p121 = scmp.ne.s32.totalorder %s112, %s113
      %p122 = scmp.eq.s32.totalorder %s34, 0
      %p123 = por %p121, %p122
      %p124 = scmp.ne.s32.totalorder %s112, %s113
      %p125 = scmp.eq.s32.totalorder %s35, 1
      %p126 = por %p124, %p125
      %p128 = scmp.ne.s32.totalorder %s113, %s127
      %p129 = scmp.eq.s32.totalorder %s35, 0
      %p130 = por %p128, %p129
      %s132 = sadd.s32 %s131, 1
      %p135 = scmp.eq.s32.totalorder %s29, 1
      %p136 = scmp.ne.s32.totalorder %s131, %s133
      %p137 = scmp.eq.s32.totalorder %s29, 0
      %p138 = por %p136, %p137
      %p139 = scmp.ne.s32.totalorder %s131, %s133
      %p140 = scmp.eq.s32.totalorder %s34, 1
      %p141 = por %p139, %p140
      %p142 = scmp.ne.s32.totalorder %s133, %s134
      %p143 = scmp.eq.s32.totalorder %s34, 0
      %p144 = por %p142, %p143
      %p145 = scmp.ne.s32.totalorder %s133, %s134
      %p146 = scmp.eq.s32.totalorder %s35, 1
      %p147 = por %p145, %p146
      %p149 = scmp.ne.s32.totalorder %s134, %s148
      %p150 = scmp.eq.s32.totalorder %s35, 0
      %p151 = por %p149, %p150
      %s153 = sadd.s32 %s152, 1
      %p156 = scmp.eq.s32.totalorder %s29, 1
      %p157 = scmp.ne.s32.totalorder %s152, %s154
      %p158 = scmp.eq.s32.totalorder %s29, 0
      %p159 = por %p157, %p158
      %p160 = scmp.ne.s32.totalorder %s152, %s154
      %p161 = scmp.eq.s32.totalorder %s34, 1
      %p162 = por %p160, %p161
      %p163 = scmp.ne.s32.totalorder %s154, %s155
      %p164 = scmp.eq.s32.totalorder %s34, 0
      %p165 = por %p163, %p164
      %p166 = scmp.ne.s32.totalorder %s154, %s155
      %p167 = scmp.eq.s32.totalorder %s35, 1
      %p168 = por %p166, %p167
      %p170 = scmp.ne.s32.totalorder %s155, %s169
      %p171 = scmp.eq.s32.totalorder %s35, 0
      %p172 = por %p170, %p171
      %s174 = sadd.s32 %s173, 1
      %p177 = scmp.eq.s32.totalorder %s29, 1
      %p178 = scmp.ne.s32.totalorder %s173, %s175
      %p179 = scmp.eq.s32.totalorder %s29, 0
      %p180 = por %p178, %p179
      %p181 = scmp.ne.s32.totalorder %s173, %s175
      %p182 = scmp.eq.s32.totalorder %s34, 1
      %p183 = por %p181, %p182
      %p184 = scmp.ne.s32.totalorder %s175, %s176
      %p185 = scmp.eq.s32.totalorder %s34, 0
      %p186 = por %p184, %p185
      %p187 = scmp.ne.s32.totalorder %s175, %s176
      %p188 = scmp.eq.s32.totalorder %s35, 1
      %p189 = por %p187, %p188
      %p191 = scmp.ne.s32.totalorder %s176, %s190
      %p192 = scmp.eq.s32.totalorder %s35, 0
      %p193 = por %p191, %p192
      %s195 = sadd.s32 %s194, 1
      %p198 = scmp.eq.s32.totalorder %s29, 1
      %p199 = scmp.ne.s32.totalorder %s194, %s196
      %p200 = scmp.eq.s32.totalorder %s29, 0
      %p201 = por %p199, %p200
      %p202 = scmp.ne.s32.totalorder %s194, %s196
      %p203 = scmp.eq.s32.totalorder %s34, 1
      %p204 = por %p202, %p203
      %p205 = scmp.ne.s32.totalorder %s196, %s197
      %p206 = scmp.eq.s32.totalorder %s34, 0
      %p207 = por %p205, %p206
      %p208 = scmp.ne.s32.totalorder %s196, %s197
      %p209 = scmp.eq.s32.totalorder %s35, 1
      %p210 = por %p208, %p209
      %p212 = scmp.ne.s32.totalorder %s197, %s211
      %p213 = scmp.eq.s32.totalorder %s35, 0
      %p214 = por %p212, %p213
      %s216 = sadd.s32 %s215, 1
      %p219 = scmp.eq.s32.totalorder %s29, 1
      %p220 = scmp.ne.s32.totalorder %s215, %s217
      %p221 = scmp.eq.s32.totalorder %s29, 0
      %p222 = por %p220, %p221
      %p223 = scmp.ne.s32.totalorder %s215, %s217
      %p224 = scmp.eq.s32.totalorder %s34, 1
      %p225 = por %p223, %p224
      %p226 = scmp.ne.s32.totalorder %s217, %s218
      %p227 = scmp.eq.s32.totalorder %s34, 0
      %p228 = por %p226, %p227
      %p229 = scmp.ne.s32.totalorder %s217, %s218
      %p230 = scmp.eq.s32.totalorder %s35, 1
      %p231 = por %p229, %p230
      %p233 = scmp.ne.s32.totalorder %s218, %s232
      %p234 = scmp.eq.s32.totalorder %s35, 0
      %p235 = por %p233, %p234
      %s237 = sadd.s32 %s236, 1
      %p240 = scmp.eq.s32.totalorder %s29, 1
      %p241 = scmp.ne.s32.totalorder %s236, %s238
      %p242 = scmp.eq.s32.totalorder %s29, 0
      %p243 = por %p241, %p242
      %p244 = scmp.ne.s32.totalorder %s236, %s238
      %p245 = scmp.eq.s32.totalorder %s34, 1
      %p246 = por %p244, %p245
      %p247 = scmp.ne.s32.totalorder %s238, %s239
      %p248 = scmp.eq.s32.totalorder %s34, 0
      %p249 = por %p247, %p248
      %p250 = scmp.ne.s32.totalorder %s238, %s239
      %p251 = scmp.eq.s32.totalorder %s35, 1
      %p252 = por %p250, %p251
      %p254 = scmp.ne.s32.totalorder %s239, %s253
      %p255 = scmp.eq.s32.totalorder %s35, 0
      %p256 = por %p254, %p255
      %s258 = sadd.s32 %s257, 1
      %p261 = scmp.eq.s32.totalorder %s29, 1
      %p262 = scmp.ne.s32.totalorder %s257, %s259
      %p263 = scmp.eq.s32.totalorder %s29, 0
      %p264 = por %p262, %p263
      %p265 = scmp.ne.s32.totalorder %s257, %s259
      %p266 = scmp.eq.s32.totalorder %s34, 1
      %p267 = por %p265, %p266
      %p268 = scmp.ne.s32.totalorder %s259, %s260
      %p269 = scmp.eq.s32.totalorder %s34, 0
      %p270 = por %p268, %p269
      %p271 = scmp.ne.s32.totalorder %s259, %s260
      %p272 = scmp.eq.s32.totalorder %s35, 1
      %p273 = por %p271, %p272
      %p275 = scmp.ne.s32.totalorder %s260, %s274
      %p276 = scmp.eq.s32.totalorder %s35, 0
      %p277 = por %p275, %p276
      %s279 = sadd.s32 %s278, 1
      %p282 = scmp.eq.s32.totalorder %s29, 1
      %p283 = scmp.ne.s32.totalorder %s278, %s280
      %p284 = scmp.eq.s32.totalorder %s29, 0
      %p285 = por %p283, %p284
      %p286 = scmp.ne.s32.totalorder %s278, %s280
      %p287 = scmp.eq.s32.totalorder %s34, 1
      %p288 = por %p286, %p287
      %p289 = scmp.ne.s32.totalorder %s280, %s281
      %p290 = scmp.eq.s32.totalorder %s34, 0
      %p291 = por %p289, %p290
      %p292 = scmp.ne.s32.totalorder %s280, %s281
      %p293 = scmp.eq.s32.totalorder %s35, 1
      %p294 = por %p292, %p293
      %p296 = scmp.ne.s32.totalorder %s281, %s295
      %p297 = scmp.eq.s32.totalorder %s35, 0
      %p298 = por %p296, %p297
      %s300 = sadd.s32 %s299, 1
      %p303 = scmp.eq.s32.totalorder %s29, 1
      %p304 = scmp.ne.s32.totalorder %s299, %s301
      %p305 = scmp.eq.s32.totalorder %s29, 0
      %p306 = por %p304, %p305
      %p307 = scmp.ne.s32.totalorder %s299, %s301
      %p308 = scmp.eq.s32.totalorder %s34, 1
      %p309 = por %p307, %p308
      %p310 = scmp.ne.s32.totalorder %s301, %s302
      %p311 = scmp.eq.s32.totalorder %s34, 0
      %p312 = por %p310, %p311
      %p313 = scmp.ne.s32.totalorder %s301, %s302
      %p314 = scmp.eq.s32.totalorder %s35, 1
      %p315 = por %p313, %p314
      %p317 = scmp.ne.s32.totalorder %s302, %s316
      %p318 = scmp.eq.s32.totalorder %s35, 0
      %p319 = por %p317, %p318
      %s321 = sadd.s32 %s320, 1
      %p324 = scmp.eq.s32.totalorder %s29, 1
      %p325 = scmp.ne.s32.totalorder %s320, %s322
      %p326 = scmp.eq.s32.totalorder %s29, 0
      %p327 = por %p325, %p326
      %p328 = scmp.ne.s32.totalorder %s320, %s322
      %p329 = scmp.eq.s32.totalorder %s34, 1
      %p330 = por %p328, %p329
      %p331 = scmp.ne.s32.totalorder %s322, %s323
      %p332 = scmp.eq.s32.totalorder %s34, 0
      %p333 = por %p331, %p332
      %p334 = scmp.ne.s32.totalorder %s322, %s323
      %p335 = scmp.eq.s32.totalorder %s35, 1
      %p336 = por %p334, %p335
      %p338 = scmp.ne.s32.totalorder %s323, %s337
      %p339 = scmp.eq.s32.totalorder %s35, 0
      %p340 = por %p338, %p339
      %s342 = sadd.s32 %s341, 1
      %p345 = scmp.eq.s32.totalorder %s29, 1
      %p346 = scmp.ne.s32.totalorder %s341, %s343
      %p347 = scmp.eq.s32.totalorder %s29, 0
      %p348 = por %p346, %p347
      %p349 = scmp.ne.s32.totalorder %s341, %s343
      %p350 = scmp.eq.s32.totalorder %s34, 1
      %p351 = por %p349, %p350
      %p352 = scmp.ne.s32.totalorder %s343, %s344
      %p353 = scmp.eq.s32.totalorder %s34, 0
      %p354 = por %p352, %p353
      %p355 = scmp.ne.s32.totalorder %s343, %s344
      %p356 = scmp.eq.s32.totalorder %s35, 1
      %p357 = por %p355, %p356
      %p359 = scmp.ne.s32.totalorder %s344, %s358
      %p360 = scmp.eq.s32.totalorder %s35, 0
      %p361 = por %p359, %p360
      %s363 = sadd.s32 %s362, 1
      %p366 = scmp.eq.s32.totalorder %s29, 1
      %p367 = scmp.ne.s32.totalorder %s362, %s364
      %p368 = scmp.eq.s32.totalorder %s29, 0
      %p369 = por %p367, %p368
      %p370 = scmp.ne.s32.totalorder %s362, %s364
      %p371 = scmp.eq.s32.totalorder %s34, 1
      %p372 = por %p370, %p371
      %p373 = scmp.ne.s32.totalorder %s364, %s365
      %p374 = scmp.eq.s32.totalorder %s34, 0
      %p375 = por %p373, %p374
      %p376 = scmp.ne.s32.totalorder %s364, %s365
      %p377 = scmp.eq.s32.totalorder %s35, 1
      %p378 = por %p376, %p377
      %p380 = scmp.ne.s32.totalorder %s365, %s379
      %p381 = scmp.eq.s32.totalorder %s35, 0
      %p382 = por %p380, %p381
      %s384 = sadd.s32 %s383, 1
      %p387 = scmp.eq.s32.totalorder %s29, 1
      %p388 = scmp.ne.s32.totalorder %s383, %s385
      %p389 = scmp.eq.s32.totalorder %s29, 0
      %p390 = por %p388, %p389
      %p391 = scmp.ne.s32.totalorder %s383, %s385
      %p392 = scmp.eq.s32.totalorder %s34, 1
      %p393 = por %p391, %p392
      %p394 = scmp.ne.s32.totalorder %s385, %s386
      %p395 = scmp.eq.s32.totalorder %s34, 0
      %p396 = por %p394, %p395
      %p397 = scmp.ne.s32.totalorder %s385, %s386
      %p398 = scmp.eq.s32.totalorder %s35, 1
      %p399 = por %p397, %p398
      %p401 = scmp.ne.s32.totalorder %s386, %s400
      %p402 = scmp.eq.s32.totalorder %s35, 0
      %p403 = por %p401, %p402
      %s405 = sadd.s32 %s404, 1
      %p408 = scmp.eq.s32.totalorder %s29, 1
      %p409 = scmp.ne.s32.totalorder %s404, %s406
      %p410 = scmp.eq.s32.totalorder %s29, 0
      %p411 = por %p409, %p410
      %p412 = scmp.ne.s32.totalorder %s404, %s406
      %p413 = scmp.eq.s32.totalorder %s34, 1
      %p414 = por %p412, %p413
      %p415 = scmp.ne.s32.totalorder %s406, %s407
      %p416 = scmp.eq.s32.totalorder %s34, 0
      %p417 = por %p415, %p416
      %p418 = scmp.ne.s32.totalorder %s406, %s407
      %p419 = scmp.eq.s32.totalorder %s35, 1
      %p420 = por %p418, %p419
      %p422 = scmp.ne.s32.totalorder %s407, %s421
      %p423 = scmp.eq.s32.totalorder %s35, 0
      %p424 = por %p422, %p423
      %s426 = sadd.s32 %s425, 1
      %p429 = scmp.eq.s32.totalorder %s29, 1
      %p430 = scmp.ne.s32.totalorder %s425, %s427
      %p431 = scmp.eq.s32.totalorder %s29, 0
      %p432 = por %p430, %p431
      %p433 = scmp.ne.s32.totalorder %s425, %s427
      %p434 = scmp.eq.s32.totalorder %s34, 1
      %p435 = por %p433, %p434
      %p436 = scmp.ne.s32.totalorder %s427, %s428
      %p437 = scmp.eq.s32.totalorder %s34, 0
      %p438 = por %p436, %p437
      %p439 = scmp.ne.s32.totalorder %s427, %s428
      %p440 = scmp.eq.s32.totalorder %s35, 1
      %p441 = por %p439, %p440
      %p443 = scmp.ne.s32.totalorder %s428, %s442
      %p444 = scmp.eq.s32.totalorder %s35, 0
      %p445 = por %p443, %p444
      %s447 = sadd.s32 %s446, 1
      %p450 = scmp.eq.s32.totalorder %s29, 1
      %p451 = scmp.ne.s32.totalorder %s446, %s448
      %p452 = scmp.eq.s32.totalorder %s29, 0
      %p453 = por %p451, %p452
      %p454 = scmp.ne.s32.totalorder %s446, %s448
      %p455 = scmp.eq.s32.totalorder %s34, 1
      %p456 = por %p454, %p455
      %p457 = scmp.ne.s32.totalorder %s448, %s449
      %p458 = scmp.eq.s32.totalorder %s34, 0
      %p459 = por %p457, %p458
      %p460 = scmp.ne.s32.totalorder %s448, %s449
      %p461 = scmp.eq.s32.totalorder %s35, 1
      %p462 = por %p460, %p461
      %p464 = scmp.ne.s32.totalorder %s449, %s463
      %p465 = scmp.eq.s32.totalorder %s35, 0
      %p466 = por %p464, %p465
      %s467 = ssub.s32 %s29, %s36
      %p468 = scmp.eq.s32.totalorder %s467, 0
      %s470 = sadd.s32 %s469, 1
      %s471 = scalar_select %p468, %s469, %s470
      %p474 = pneg %p468
      %p475 = scmp.eq.s32.totalorder %s29, 1
      %p476 = por %p474, %p475
      %p477 = scmp.ne.s32.totalorder %s469, %s472
      %p478 = scmp.eq.s32.totalorder %s29, 0
      %p479 = por %p477, %p478
      %p480 = scmp.ne.s32.totalorder %s469, %s472
      %p481 = scmp.eq.s32.totalorder %s34, 1
      %p482 = por %p480, %p481
      %p483 = scmp.ne.s32.totalorder %s472, %s473
      %p484 = scmp.eq.s32.totalorder %s34, 0
      %p485 = por %p483, %p484
      %p486 = scmp.ne.s32.totalorder %s472, %s473
      %p487 = scmp.eq.s32.totalorder %s35, 1
      %p488 = por %p486, %p487
      %p490 = scmp.ne.s32.totalorder %s473, %s489
      %p491 = scmp.eq.s32.totalorder %s35, 0
      %p492 = por %p490, %p491
      %p493 = scmp.le.s32.totalorder 1, %s29
      %p494 = scmp.lt.s32.totalorder %s29, 3
      %p495 = pnand %p493, %p494
      %p496 = pneg %p495
      // Predicated region
      $region9: #{bert_wrapper_forward.1} parent=5 // pred_check
        _
      $region10: #{bert_wrapper_forward.1} parent=5 // pred_check_branch
        %498 = sbr.rel (%p495) target = $region12
      $region11: #{bert_wrapper_forward.1} parent=5 // pred_region
        %s499 = ssub.s32 %s29, 1
        // Predicated region
        $region13: #{bert_wrapper_forward.1} parent=11 // pred_check
          %p500 = pneg %p102
        $region14: #{bert_wrapper_forward.1} parent=11 // pred_check_branch
          %502 = sbr.rel (%p500) target = $region16
        $region15: #{bert_wrapper_forward.1} parent=11 // pred_region
          _
        $region16: #{bert_wrapper_forward.1} parent=11 // pred_fallthru
          _
        // Predicated region
        $region17: #{bert_wrapper_forward.1} parent=11 // pred_check
          %p503 = pneg %p123
        $region18: #{bert_wrapper_forward.1} parent=11 // pred_check_branch
          %505 = sbr.rel (%p503) target = $region20
        $region19: #{bert_wrapper_forward.1} parent=11 // pred_region
          _
        $region20: #{bert_wrapper_forward.1} parent=11 // pred_fallthru
          _
        // Predicated region
        $region21: #{bert_wrapper_forward.1} parent=11 // pred_check
          %p506 = pneg %p144
        $region22: #{bert_wrapper_forward.1} parent=11 // pred_check_branch
          %508 = sbr.rel (%p506) target = $region24
        $region23: #{bert_wrapper_forward.1} parent=11 // pred_region
          _
        $region24: #{bert_wrapper_forward.1} parent=11 // pred_fallthru
          _
        // Predicated region
        $region25: #{bert_wrapper_forward.1} parent=11 // pred_check
          %p509 = pneg %p165
        $region26: #{bert_wrapper_forward.1} parent=11 // pred_check_branch
          %511 = sbr.rel (%p509) target = $region28
        $region27: #{bert_wrapper_forward.1} parent=11 // pred_region
          _
        $region28: #{bert_wrapper_forward.1} parent=11 // pred_fallthru
          _
        // Predicated region
        $region29: #{bert_wrapper_forward.1} parent=11 // pred_check
          %p512 = pneg %p186
        $region30: #{bert_wrapper_forward.1} parent=11 // pred_check_branch
          %514 = sbr.rel (%p512) target = $region32
        $region31: #{bert_wrapper_forward.1} parent=11 // pred_region
          _
        $region32: #{bert_wrapper_forward.1} parent=11 // pred_fallthru
          _
        // Predicated region
        $region33: #{bert_wrapper_forward.1} parent=11 // pred_check
          %p515 = pneg %p207
        $region34: #{bert_wrapper_forward.1} parent=11 // pred_check_branch
          %517 = sbr.rel (%p515) target = $region36
        $region35: #{bert_wrapper_forward.1} parent=11 // pred_region
          _
        $region36: #{bert_wrapper_forward.1} parent=11 // pred_fallthru
          _
        // Predicated region
        $region37: #{bert_wrapper_forward.1} parent=11 // pred_check
          %p518 = pneg %p228
        $region38: #{bert_wrapper_forward.1} parent=11 // pred_check_branch
          %520 = sbr.rel (%p518) target = $region40
        $region39: #{bert_wrapper_forward.1} parent=11 // pred_region
          _
        $region40: #{bert_wrapper_forward.1} parent=11 // pred_fallthru
          _
        // Predicated region
        $region41: #{bert_wrapper_forward.1} parent=11 // pred_check
          %p521 = pneg %p249
        $region42: #{bert_wrapper_forward.1} parent=11 // pred_check_branch
          %523 = sbr.rel (%p521) target = $region44
        $region43: #{bert_wrapper_forward.1} parent=11 // pred_region
          _
        $region44: #{bert_wrapper_forward.1} parent=11 // pred_fallthru
          _
        // Predicated region
        $region45: #{bert_wrapper_forward.1} parent=11 // pred_check
          %p524 = pneg %p270
        $region46: #{bert_wrapper_forward.1} parent=11 // pred_check_branch
          %526 = sbr.rel (%p524) target = $region48
        $region47: #{bert_wrapper_forward.1} parent=11 // pred_region
          _
        $region48: #{bert_wrapper_forward.1} parent=11 // pred_fallthru
          _
        // Predicated region
        $region49: #{bert_wrapper_forward.1} parent=11 // pred_check
          %p527 = pneg %p291
        $region50: #{bert_wrapper_forward.1} parent=11 // pred_check_branch
          %529 = sbr.rel (%p527) target = $region52
        $region51: #{bert_wrapper_forward.1} parent=11 // pred_region
          _
        $region52: #{bert_wrapper_forward.1} parent=11 // pred_fallthru
          _
        // Predicated region
        $region53: #{bert_wrapper_forward.1} parent=11 // pred_check
          %p530 = pneg %p312
        $region54: #{bert_wrapper_forward.1} parent=11 // pred_check_branch
          %532 = sbr.rel (%p530) target = $region56
        $region55: #{bert_wrapper_forward.1} parent=11 // pred_region
          _
        $region56: #{bert_wrapper_forward.1} parent=11 // pred_fallthru
          _
        // Predicated region
        $region57: #{bert_wrapper_forward.1} parent=11 // pred_check
          %p533 = pneg %p333
        $region58: #{bert_wrapper_forward.1} parent=11 // pred_check_branch
          %535 = sbr.rel (%p533) target = $region60
        $region59: #{bert_wrapper_forward.1} parent=11 // pred_region
          _
        $region60: #{bert_wrapper_forward.1} parent=11 // pred_fallthru
          _
        // Predicated region
        $region61: #{bert_wrapper_forward.1} parent=11 // pred_check
          %p536 = pneg %p354
        $region62: #{bert_wrapper_forward.1} parent=11 // pred_check_branch
          %538 = sbr.rel (%p536) target = $region64
        $region63: #{bert_wrapper_forward.1} parent=11 // pred_region
          _
        $region64: #{bert_wrapper_forward.1} parent=11 // pred_fallthru
          _
        // Predicated region
        $region65: #{bert_wrapper_forward.1} parent=11 // pred_check
          %p539 = pneg %p375
        $region66: #{bert_wrapper_forward.1} parent=11 // pred_check_branch
          %541 = sbr.rel (%p539) target = $region68
        $region67: #{bert_wrapper_forward.1} parent=11 // pred_region
          _
        $region68: #{bert_wrapper_forward.1} parent=11 // pred_fallthru
          _
        // Predicated region
        $region69: #{bert_wrapper_forward.1} parent=11 // pred_check
          %p542 = pneg %p396
        $region70: #{bert_wrapper_forward.1} parent=11 // pred_check_branch
          %544 = sbr.rel (%p542) target = $region72
        $region71: #{bert_wrapper_forward.1} parent=11 // pred_region
          _
        $region72: #{bert_wrapper_forward.1} parent=11 // pred_fallthru
          _
        // Predicated region
        $region73: #{bert_wrapper_forward.1} parent=11 // pred_check
          %p545 = pneg %p417
        $region74: #{bert_wrapper_forward.1} parent=11 // pred_check_branch
          %547 = sbr.rel (%p545) target = $region76
        $region75: #{bert_wrapper_forward.1} parent=11 // pred_region
          _
        $region76: #{bert_wrapper_forward.1} parent=11 // pred_fallthru
          _
        // Predicated region
        $region77: #{bert_wrapper_forward.1} parent=11 // pred_check
          %p548 = pneg %p438
        $region78: #{bert_wrapper_forward.1} parent=11 // pred_check_branch
          %550 = sbr.rel (%p548) target = $region80
        $region79: #{bert_wrapper_forward.1} parent=11 // pred_region
          _
        $region80: #{bert_wrapper_forward.1} parent=11 // pred_fallthru
          _
        // Predicated region
        $region81: #{bert_wrapper_forward.1} parent=11 // pred_check
          %p551 = pneg %p459
        $region82: #{bert_wrapper_forward.1} parent=11 // pred_check_branch
          %553 = sbr.rel (%p551) target = $region84
        $region83: #{bert_wrapper_forward.1} parent=11 // pred_region
          _
        $region84: #{bert_wrapper_forward.1} parent=11 // pred_fallthru
          _
      $region12: #{bert_wrapper_forward.1} parent=5 // pred_fallthru
        _
      %p554 = scmp.lt.s32.totalorder %s29, 2
      // Predicated region
      $region85: #{bert_wrapper_forward.1} parent=5 // pred_check
        %p555 = pneg %p554
      $region86: #{bert_wrapper_forward.1} parent=5 // pred_check_branch
        %557 = sbr.rel (%p555) target = $region88
      $region87: #{bert_wrapper_forward.1} parent=5 // pred_region
        // Predicated region
        $region89: #{bert_wrapper_forward.1} parent=87 // pred_check
          %p558 = pneg %p49
        $region90: #{bert_wrapper_forward.1} parent=87 // pred_check_branch
          %560 = sbr.rel (%p558) target = $region92
        $region91: #{bert_wrapper_forward.1} parent=87 // pred_region
          %p561 = scmp.lt.s32.totalorder %s29, 1
          %s562 = scalar_select %p561, %s29, 1
          %s563 = smul.addr %s562, 8
          %s564 = scalar_lea.vmem %s0, %s563
        $region92: #{bert_wrapper_forward.1} parent=87 // pred_fallthru
          _
        // Predicated region
        $region93: #{bert_wrapper_forward.1} parent=87 // pred_check
          %p565 = pneg %p75
        $region94: #{bert_wrapper_forward.1} parent=87 // pred_check_branch
          %567 = sbr.rel (%p565) target = $region96
        $region95: #{bert_wrapper_forward.1} parent=87 // pred_region
          %p568 = scmp.lt.s32.totalorder %s29, 1
          %s569 = scalar_select %p568, %s29, 1
          %s570 = scalar_lea.vmem %s1, %s569
        $region96: #{bert_wrapper_forward.1} parent=87 // pred_fallthru
          _
      $region88: #{bert_wrapper_forward.1} parent=5 // pred_fallthru
        _
      %p571 = scmp.le.s32.totalorder 1, %s29
      %p572 = scmp.lt.s32.totalorder %s29, 3
      %p573 = pnand %p571, %p572
      %p574 = pneg %p573
      // Predicated region
      $region97: #{bert_wrapper_forward.1} parent=5 // pred_check
        _
      $region98: #{bert_wrapper_forward.1} parent=5 // pred_check_branch
        %576 = sbr.rel (%p573) target = $region100
      $region99: #{bert_wrapper_forward.1} parent=5 // pred_region
        %s577 = ssub.s32 %s29, 1
        %p578 = scmp.lt.s32.totalorder %s34, 1
        %s579 = scalar_select %p578, %s34, 1
        %s580 = smul.addr %s579, 8
        %s581 = scalar_lea.vmem %s0, %s580
        %p582 = pneg %p55
        %p583 = pneg %p52
        %p584 = scmp.lt.s32.totalorder %s34, 1
        %s585 = scalar_select %p584, %s34, 1
        %s586 = scalar_lea.vmem %s1, %s585
        %p587 = pneg %p81
        %p588 = pneg %p78
        %p589 = pneg %p102
        %p590 = pneg %p99
        %p591 = pneg %p123
        %p592 = pneg %p120
        %p593 = pneg %p144
        %p594 = pneg %p141
        %p595 = pneg %p165
        %p596 = pneg %p162
        %p597 = pneg %p186
        %p598 = pneg %p183
        %p599 = pneg %p207
        %p600 = pneg %p204
        %p601 = pneg %p228
        %p602 = pneg %p225
        %p603 = pneg %p249
        %p604 = pneg %p246
        %p605 = pneg %p270
        %p606 = pneg %p267
        %p607 = pneg %p291
        %p608 = pneg %p288
        %p609 = pneg %p312
        %p610 = pneg %p309
        %p611 = pneg %p333
        %p612 = pneg %p330
        %p613 = pneg %p354
        %p614 = pneg %p351
        %p615 = pneg %p375
        %p616 = pneg %p372
        %p617 = pneg %p396
        %p618 = pneg %p393
        %p619 = pneg %p417
        %p620 = pneg %p414
        %p621 = pneg %p438
        %p622 = pneg %p435
        %p623 = pneg %p459
        %p624 = pneg %p456
        %p625 = pneg %p485
        %p626 = pneg %p482
        %s627 = sand.u32 %s472, 1
        %s628 = scalar_lea.sflag [#allocation3], %s627
        %s629 = sand.u32 %s472, 1
        %s630 = scalar_lea.vmem [#allocation2], %s629
        %p631 = scmp.lt.s32.totalorder %s34, 1
        %s632 = scalar_select %p631, %s34, 1
        %s633 = smul.addr %s632, 8
        %s634 = scalar_lea.vmem %s0, %s633
        %p635 = scmp.lt.s32.totalorder %s34, 1
        %s636 = scalar_select %p635, %s34, 1
        %s637 = scalar_lea.vmem %s1, %s636
        %v638 = vld [vmem:[%s634] sm:$0xff]
        %v639 = vld [vmem:[%s2] sm:$0x1]
        %v640 = vld [vmem:[%s3] sm:$0x1]
        %vm641 = vcmask 261120
        %v642 = vsel %vm641, %v638, 0.0
        %643 = vadd.xlane.f32.xlu0 %v642
        %v644 = vpop.xlane.xlu0 %643
        %v645 = vrcp.pop 32.0
        %v646 = vmul.f32 %v644, %v645
        %v647 = vsub.f32 %v638, %v646
        %v648 = vmul.f32 %v647, %v647
        %v649 = vsel %vm641, %v648, 0.0
        %650 = vadd.xlane.f32.xlu0 %v649
        %v651 = vpop.xlane.xlu0 %650
        %v652 = vmul.f32 %v651, %v645
        %v653 = vadd.f32 %v652, 1e-12
        %v654 = vrsqrt.pop %v653
        %v655 = vmul.f32 %v647, %v654
        %v657 = vlaneseq
        %v658 = vshrl.u32 %v657, 7
        %v659 = vsub.s32 0, %v658
        %v660 = vrot.slane %v639, %v659
        %v662 = vmul.f32 %v655, %v660
        %v664 = vlaneseq
        %v665 = vshrl.u32 %v664, 7
        %v666 = vsub.s32 0, %v665
        %v667 = vrot.slane %v640, %v666
        %v669 = vadd.f32 %v662, %v667
        %v670 = vld [vmem:[%s637] sm:$0x1]
        %v671 = vsub.f32 1.0, %v670
        %v672 = vmul.f32 %v671, -1e+09
        %v673 = vld [vmem:[%s4] sm:$0xff]
        %v674 = vld [vmem:[%s4 + $0x8] sm:$0xff]
        %v675 = vld [vmem:[%s4 + $0x10] sm:$0xff]
        %v676 = vld [vmem:[%s4 + $0x18] sm:$0xff]
        %v677 = vld [vmem:[%s5] sm:$0x1]
        %v679 = vlaneseq
        %v680 = vshrl.u32 %v679, 7
        %v681 = vsub.s32 0, %v680
        %v682 = vrot.slane %v677, %v681
        %v685 = vsel %vm641, %v669, 0
        %687 = vmatprep.subr.mxu0 0.0
        %688 = vmatpush1.msra.mxu0 0.0
        %689 = vmatprep.subr.mxu0 0.0
        %690 = vmatpush1.msra.mxu0 0.0
        %691 = vmatprep.subr.mxu0 0.0
        %692 = vmatpush1.msra.mxu0 0.0
        %693 = vmatprep.subr.mxu0 0.0
        %694 = vmatpush1.msra.mxu0 0.0
        %695 = vmatprep.subr.mxu0 0.0
        %696 = vmatpush1.msra.mxu0 0.0
        %697 = vmatprep.subr.mxu0 0.0
        %698 = vmatpush1.msra.mxu0 0.0
        %699 = vmatprep.subr.mxu0 0.0
        %700 = vmatpush1.msra.mxu0 0.0
        %701 = vmatprep.subr.mxu0 0.0
        %702 = vmatpush1.msra.mxu0 0.0
        %703 = vmatprep.subr.mxu0 0.0
        %704 = vmatpush1.msra.mxu0 0.0
        %705 = vmatprep.subr.mxu0 0.0
        %706 = vmatpush1.msra.mxu0 0.0
        %707 = vmatprep.subr.mxu0 0.0
        %708 = vmatpush1.msra.mxu0 0.0
        %709 = vmatprep.subr.mxu0 0.0
        %710 = vmatpush1.msra.mxu0 0.0
        %711 = vmatprep.subr.mxu0 0.0
        %712 = vmatpush1.msra.mxu0 %v676
        %713 = vmatprep.subr.mxu0 0.0
        %714 = vmatpush1.msra.mxu0 %v675
        %715 = vmatprep.subr.mxu0 0.0
        %716 = vmatpush1.msra.mxu0 %v674
        %717 = vmatprep.subr.mxu0 0.0
        %718 = vmatpush1.msra.mxu0 %v673
        %719 = vmatprep.subr.mxu0 0.0
        %720 = vmatpush2.msra.mxu0 0.0
        %721 = vmatprep.subr.mxu0 0.0
        %722 = vmatpush2.msra.mxu0 0.0
        %723 = vmatprep.subr.mxu0 0.0
        %724 = vmatpush2.msra.mxu0 0.0
        %725 = vmatprep.subr.mxu0 0.0
        %726 = vmatpush2.msra.mxu0 0.0
        %727 = vmatprep.subr.mxu0 0.0
        %728 = vmatpush2.msra.mxu0 0.0
        %729 = vmatprep.subr.mxu0 0.0
        %730 = vmatpush2.msra.mxu0 0.0
        %731 = vmatprep.subr.mxu0 0.0
        %732 = vmatpush2.msra.mxu0 0.0
        %733 = vmatprep.subr.mxu0 0.0
        %734 = vmatpush2.msra.mxu0 0.0
        %735 = vmatprep.subr.mxu0 0.0
        %736 = vmatpush2.msra.mxu0 0.0
        %737 = vmatprep.subr.mxu0 0.0
        %738 = vmatpush2.msra.mxu0 0.0
        %739 = vmatprep.subr.mxu0 0.0
        %740 = vmatpush2.msra.mxu0 0.0
        %741 = vmatprep.subr.mxu0 0.0
        %742 = vmatpush2.msra.mxu0 0.0
        %743 = vmatprep.subr.mxu0 0.0
        %744 = vmatpush2.msra.mxu0 0.0
        %745 = vmatprep.subr.mxu0 0.0
        %746 = vmatpush2.msra.mxu0 0.0
        %747 = vmatprep.subr.mxu0 0.0
        %748 = vmatpush2.msra.mxu0 0.0
        %749 = vmatprep.subr.mxu0 0.0
        %750 = vmatpush2.msra.mxu0 0.0
        %751 = vmatprep.mubr.f32.mxu0 0.0
        %752 = vmatmul.mubr.f32.gmra.mxu0 %v685
        %v753 = vpop.f32.mrf.mxu0
        %v754 = vadd.f32 %v682, %v753
        %v755 = vpop.f32.mrf.mxu0
        %756 = vdwg.mxu0
        %v757 = vld [vmem:[%s6] sm:$0xff]
        %v758 = vld [vmem:[%s6 + $0x8] sm:$0xff]
        %v759 = vld [vmem:[%s6 + $0x10] sm:$0xff]
        %v760 = vld [vmem:[%s6 + $0x18] sm:$0xff]
        %v761 = vld [vmem:[%s7] sm:$0x1]
        %v763 = vlaneseq
        %v764 = vshrl.u32 %v763, 7
        %v765 = vsub.s32 0, %v764
        %v766 = vrot.slane %v672, %v765
        %769 = vrot.lane.b32.xlu0 %v754, 96
        %v770 = vpop.permute.xlu0 %769
        %vm771 = vcmask 64512
        %v772 = vsel %vm771, %v754, 0
        %v774 = vsel %vm771, %v770, 0
        %776 = vmatprep.subr.mxu0 0.0
        %777 = vmatpush1.xpose.msra.mxu0 0.0
        %778 = vmatprep.subr.mxu0 0.0
        %779 = vmatpush1.xpose.msra.mxu0 0.0
        %780 = vmatprep.subr.mxu0 0.0
        %781 = vmatpush1.xpose.msra.mxu0 0.0
        %782 = vmatprep.subr.mxu0 0.0
        %783 = vmatpush1.xpose.msra.mxu0 0.0
        %784 = vmatprep.subr.mxu0 0.0
        %785 = vmatpush1.xpose.msra.mxu0 0.0
        %786 = vmatprep.subr.mxu0 0.0
        %787 = vmatpush1.xpose.msra.mxu0 0.0
        %788 = vmatprep.subr.mxu0 0.0
        %789 = vmatpush1.xpose.msra.mxu0 0.0
        %790 = vmatprep.subr.mxu0 0.0
        %791 = vmatpush1.xpose.msra.mxu0 0.0
        %792 = vmatprep.subr.mxu0 0.0
        %793 = vmatpush1.xpose.msra.mxu0 0.0
        %794 = vmatprep.subr.mxu0 0.0
        %795 = vmatpush1.xpose.msra.mxu0 0.0
        %796 = vmatprep.subr.mxu0 0.0
        %797 = vmatpush1.xpose.msra.mxu0 0.0
        %798 = vmatprep.subr.mxu0 0.0
        %799 = vmatpush1.xpose.msra.mxu0 0.0
        %800 = vmatprep.subr.mxu0 0.0
        %801 = vmatpush1.xpose.msra.mxu0 0.0
        %802 = vmatprep.subr.mxu0 0.0
        %803 = vmatpush1.xpose.msra.mxu0 0.0
        %804 = vmatprep.subr.mxu0 0.0
        %805 = vmatpush1.xpose.msra.mxu0 0.0
        %806 = vmatprep.subr.mxu0 0.0
        %807 = vmatpush1.xpose.msra.mxu0 %v774
        %808 = vmatprep.subr.mxu0 0.0
        %809 = vmatpush2.xpose.msra.mxu0 0.0
        %810 = vmatprep.subr.mxu0 0.0
        %811 = vmatpush2.xpose.msra.mxu0 0.0
        %812 = vmatprep.subr.mxu0 0.0
        %813 = vmatpush2.xpose.msra.mxu0 0.0
        %814 = vmatprep.subr.mxu0 0.0
        %815 = vmatpush2.xpose.msra.mxu0 0.0
        %816 = vmatprep.subr.mxu0 0.0
        %817 = vmatpush2.xpose.msra.mxu0 0.0
        %818 = vmatprep.subr.mxu0 0.0
        %819 = vmatpush2.xpose.msra.mxu0 0.0
        %820 = vmatprep.subr.mxu0 0.0
        %821 = vmatpush2.xpose.msra.mxu0 0.0
        %822 = vmatprep.subr.mxu0 0.0
        %823 = vmatpush2.xpose.msra.mxu0 0.0
        %824 = vmatprep.subr.mxu0 0.0
        %825 = vmatpush2.xpose.msra.mxu0 0.0
        %826 = vmatprep.subr.mxu0 0.0
        %827 = vmatpush2.xpose.msra.mxu0 0.0
        %828 = vmatprep.subr.mxu0 0.0
        %829 = vmatpush2.xpose.msra.mxu0 0.0
        %830 = vmatprep.subr.mxu0 0.0
        %831 = vmatpush2.xpose.msra.mxu0 0.0
        %832 = vmatprep.subr.mxu0 0.0
        %833 = vmatpush2.xpose.msra.mxu0 0.0
        %834 = vmatprep.subr.mxu0 0.0
        %835 = vmatpush2.xpose.msra.mxu0 0.0
        %836 = vmatprep.subr.mxu0 0.0
        %837 = vmatpush2.xpose.msra.mxu0 0.0
        %838 = vmatprep.subr.mxu0 0.0
        %839 = vmatpush2.xpose.msra.mxu0 0.0
        %840 = vmatprep.mubr.f32.mxu0 0.0
        %841 = vmatmul.mubr.f32.gmra.mxu0 %v772
        %v842 = vpop.f32.mrf.mxu0
        %v843 = vadd.f32 %v766, %v842
        %v844 = vpop.f32.mrf.mxu0
        %845 = vdwg.mxu0
        %v846 = vsel %vm771, %v843, -inf
        %847 = vmax.xlane.f32.xlu0 %v846
        %v848 = vpop.xlane.xlu0 %847
        %v849 = vsub.f32 %v843, %v848
        %v850 = vmul.f32 %v849, 1.442695
        %v851 = vpow.pop %v850
        %v852 = vsel %vm771, %v851, 0.0
        %853 = vadd.xlane.f32.xlu0 %v852
        %v854 = vpop.xlane.xlu0 %853
        %v855 = vrcp.pop %v854
        %v856 = vmul.f32 %v851, %v855
        %857 = vrot.lane.b32.xlu0 %v754, 64
        %v858 = vpop.permute.xlu0 %857
        %v861 = vsel %vm771, %v856, 0
        %863 = vmatprep.subr.mxu0 0.0
        %864 = vmatpush1.msra.mxu0 0.0
        %865 = vmatprep.subr.mxu0 0.0
        %866 = vmatpush1.msra.mxu0 0.0
        %867 = vmatprep.subr.mxu0 0.0
        %868 = vmatpush1.msra.mxu0 0.0
        %869 = vmatprep.subr.mxu0 0.0
        %870 = vmatpush1.msra.mxu0 0.0
        %871 = vmatprep.subr.mxu0 0.0
        %872 = vmatpush1.msra.mxu0 0.0
        %873 = vmatprep.subr.mxu0 0.0
        %874 = vmatpush1.msra.mxu0 0.0
        %875 = vmatprep.subr.mxu0 0.0
        %876 = vmatpush1.msra.mxu0 0.0
        %877 = vmatprep.subr.mxu0 0.0
        %878 = vmatpush1.msra.mxu0 0.0
        %879 = vmatprep.subr.mxu0 0.0
        %880 = vmatpush1.msra.mxu0 0.0
        %881 = vmatprep.subr.mxu0 0.0
        %882 = vmatpush1.msra.mxu0 0.0
        %883 = vmatprep.subr.mxu0 0.0
        %884 = vmatpush1.msra.mxu0 0.0
        %885 = vmatprep.subr.mxu0 0.0
        %886 = vmatpush1.msra.mxu0 0.0
        %887 = vmatprep.subr.mxu0 0.0
        %888 = vmatpush1.msra.mxu0 0.0
        %889 = vmatprep.subr.mxu0 0.0
        %890 = vmatpush1.msra.mxu0 0.0
        %891 = vmatprep.subr.mxu0 0.0
        %892 = vmatpush1.msra.mxu0 0.0
        %893 = vmatprep.subr.mxu0 0.0
        %894 = vmatpush1.msra.mxu0 %v858
        %895 = vmatprep.subr.mxu0 0.0
        %896 = vmatpush2.msra.mxu0 0.0
        %897 = vmatprep.subr.mxu0 0.0
        %898 = vmatpush2.msra.mxu0 0.0
        %899 = vmatprep.subr.mxu0 0.0
        %900 = vmatpush2.msra.mxu0 0.0
        %901 = vmatprep.subr.mxu0 0.0
        %902 = vmatpush2.msra.mxu0 0.0
        %903 = vmatprep.subr.mxu0 0.0
        %904 = vmatpush2.msra.mxu0 0.0
        %905 = vmatprep.subr.mxu0 0.0
        %906 = vmatpush2.msra.mxu0 0.0
        %907 = vmatprep.subr.mxu0 0.0
        %908 = vmatpush2.msra.mxu0 0.0
        %909 = vmatprep.subr.mxu0 0.0
        %910 = vmatpush2.msra.mxu0 0.0
        %911 = vmatprep.subr.mxu0 0.0
        %912 = vmatpush2.msra.mxu0 0.0
        %913 = vmatprep.subr.mxu0 0.0
        %914 = vmatpush2.msra.mxu0 0.0
        %915 = vmatprep.subr.mxu0 0.0
        %916 = vmatpush2.msra.mxu0 0.0
        %917 = vmatprep.subr.mxu0 0.0
        %918 = vmatpush2.msra.mxu0 0.0
        %919 = vmatprep.subr.mxu0 0.0
        %920 = vmatpush2.msra.mxu0 0.0
        %921 = vmatprep.subr.mxu0 0.0
        %922 = vmatpush2.msra.mxu0 0.0
        %923 = vmatprep.subr.mxu0 0.0
        %924 = vmatpush2.msra.mxu0 0.0
        %925 = vmatprep.subr.mxu0 0.0
        %926 = vmatpush2.msra.mxu0 0.0
        %927 = vmatprep.mubr.f32.mxu0 0.0
        %928 = vmatmul.mubr.f32.gmra.mxu0 %v861
        %v929 = vpop.f32.mrf.mxu0
        %v930 = vadd.f32 0.0, %v929
        %v931 = vpop.f32.mrf.mxu0
        %932 = vdwg.mxu0
        %v934 = vsel %vm771, %v930, 0
        %936 = vmatprep.subr.mxu0 0.0
        %937 = vmatpush1.msra.mxu0 0.0
        %938 = vmatprep.subr.mxu0 0.0
        %939 = vmatpush1.msra.mxu0 0.0
        %940 = vmatprep.subr.mxu0 0.0
        %941 = vmatpush1.msra.mxu0 0.0
        %942 = vmatprep.subr.mxu0 0.0
        %943 = vmatpush1.msra.mxu0 0.0
        %944 = vmatprep.subr.mxu0 0.0
        %945 = vmatpush1.msra.mxu0 0.0
        %946 = vmatprep.subr.mxu0 0.0
        %947 = vmatpush1.msra.mxu0 0.0
        %948 = vmatprep.subr.mxu0 0.0
        %949 = vmatpush1.msra.mxu0 0.0
        %950 = vmatprep.subr.mxu0 0.0
        %951 = vmatpush1.msra.mxu0 0.0
        %952 = vmatprep.subr.mxu0 0.0
        %953 = vmatpush1.msra.mxu0 0.0
        %954 = vmatprep.subr.mxu0 0.0
        %955 = vmatpush1.msra.mxu0 0.0
        %956 = vmatprep.subr.mxu0 0.0
        %957 = vmatpush1.msra.mxu0 0.0
        %958 = vmatprep.subr.mxu0 0.0
        %959 = vmatpush1.msra.mxu0 0.0
        %960 = vmatprep.subr.mxu0 0.0
        %961 = vmatpush1.msra.mxu0 0.0
        %962 = vmatprep.subr.mxu0 0.0
        %963 = vmatpush1.msra.mxu0 0.0
        %964 = vmatprep.subr.mxu0 0.0
        %965 = vmatpush1.msra.mxu0 0.0
        %966 = vmatprep.subr.mxu0 0.0
        %967 = vmatpush1.msra.mxu0 %v757
        %968 = vmatprep.subr.mxu0 0.0
        %969 = vmatpush2.msra.mxu0 0.0
        %970 = vmatprep.subr.mxu0 0.0
        %971 = vmatpush2.msra.mxu0 0.0
        %972 = vmatprep.subr.mxu0 0.0
        %973 = vmatpush2.msra.mxu0 0.0
        %974 = vmatprep.subr.mxu0 0.0
        %975 = vmatpush2.msra.mxu0 0.0
        %976 = vmatprep.subr.mxu0 0.0
        %977 = vmatpush2.msra.mxu0 0.0
        %978 = vmatprep.subr.mxu0 0.0
        %979 = vmatpush2.msra.mxu0 0.0
        %980 = vmatprep.subr.mxu0 0.0
        %981 = vmatpush2.msra.mxu0 0.0
        %982 = vmatprep.subr.mxu0 0.0
        %983 = vmatpush2.msra.mxu0 0.0
        %984 = vmatprep.subr.mxu0 0.0
        %985 = vmatpush2.msra.mxu0 0.0
        %986 = vmatprep.subr.mxu0 0.0
        %987 = vmatpush2.msra.mxu0 0.0
        %988 = vmatprep.subr.mxu0 0.0
        %989 = vmatpush2.msra.mxu0 0.0
        %990 = vmatprep.subr.mxu0 0.0
        %991 = vmatpush2.msra.mxu0 0.0
        %992 = vmatprep.subr.mxu0 0.0
        %993 = vmatpush2.msra.mxu0 0.0
        %994 = vmatprep.subr.mxu0 0.0
        %995 = vmatpush2.msra.mxu0 0.0
        %996 = vmatprep.subr.mxu0 0.0
        %997 = vmatpush2.msra.mxu0 0.0
        %998 = vmatprep.subr.mxu0 0.0
        %999 = vmatpush2.msra.mxu0 0.0
        %1000 = vmatprep.mubr.f32.mxu0 0.0
        %1001 = vmatmul.mubr.f32.gmra.mxu0 %v934
        %v1002 = vpop.f32.mrf.mxu0
        %v1003 = vadd.f32 0.0, %v1002
        %v1004 = vpop.f32.mrf.mxu0
        %1005 = vdwg.mxu0
        %v1007 = vlaneseq
        %v1008 = vshrl.u32 %v1007, 7
        %v1009 = vsub.s32 0, %v1008
        %v1010 = vrot.slane %v761, %v1009
        %v1012 = vadd.f32 %v1010, %v1003
        %1013 = vrot.lane.b32.xlu0 %v754, 120
        %v1014 = vpop.permute.xlu0 %1013
        %1015 = vrot.lane.b32.xlu0 %v754, 88
        %v1016 = vpop.permute.xlu0 %1015
        %v1017 = vsel %vm771, %v1014, 0
        %v1019 = vsel %vm771, %v1016, 0
        %1021 = vmatprep.subr.mxu0 0.0
        %1022 = vmatpush1.xpose.msra.mxu0 0.0
        %1023 = vmatprep.subr.mxu0 0.0
        %1024 = vmatpush1.xpose.msra.mxu0 0.0
        %1025 = vmatprep.subr.mxu0 0.0
        %1026 = vmatpush1.xpose.msra.mxu0 0.0
        %1027 = vmatprep.subr.mxu0 0.0
        %1028 = vmatpush1.xpose.msra.mxu0 0.0
        %1029 = vmatprep.subr.mxu0 0.0
        %1030 = vmatpush1.xpose.msra.mxu0 0.0
        %1031 = vmatprep.subr.mxu0 0.0
        %1032 = vmatpush1.xpose.msra.mxu0 0.0
        %1033 = vmatprep.subr.mxu0 0.0
        %1034 = vmatpush1.xpose.msra.mxu0 0.0
        %1035 = vmatprep.subr.mxu0 0.0
        %1036 = vmatpush1.xpose.msra.mxu0 0.0
        %1037 = vmatprep.subr.mxu0 0.0
        %1038 = vmatpush1.xpose.msra.mxu0 0.0
        %1039 = vmatprep.subr.mxu0 0.0
        %1040 = vmatpush1.xpose.msra.mxu0 0.0
        %1041 = vmatprep.subr.mxu0 0.0
        %1042 = vmatpush1.xpose.msra.mxu0 0.0
        %1043 = vmatprep.subr.mxu0 0.0
        %1044 = vmatpush1.xpose.msra.mxu0 0.0
        %1045 = vmatprep.subr.mxu0 0.0
        %1046 = vmatpush1.xpose.msra.mxu0 0.0
        %1047 = vmatprep.subr.mxu0 0.0
        %1048 = vmatpush1.xpose.msra.mxu0 0.0
        %1049 = vmatprep.subr.mxu0 0.0
        %1050 = vmatpush1.xpose.msra.mxu0 0.0
        %1051 = vmatprep.subr.mxu0 0.0
        %1052 = vmatpush1.xpose.msra.mxu0 %v1019
        %1053 = vmatprep.subr.mxu0 0.0
        %1054 = vmatpush2.xpose.msra.mxu0 0.0
        %1055 = vmatprep.subr.mxu0 0.0
        %1056 = vmatpush2.xpose.msra.mxu0 0.0
        %1057 = vmatprep.subr.mxu0 0.0
        %1058 = vmatpush2.xpose.msra.mxu0 0.0
        %1059 = vmatprep.subr.mxu0 0.0
        %1060 = vmatpush2.xpose.msra.mxu0 0.0
        %1061 = vmatprep.subr.mxu0 0.0
        %1062 = vmatpush2.xpose.msra.mxu0 0.0
        %1063 = vmatprep.subr.mxu0 0.0
        %1064 = vmatpush2.xpose.msra.mxu0 0.0
        %1065 = vmatprep.subr.mxu0 0.0
        %1066 = vmatpush2.xpose.msra.mxu0 0.0
        %1067 = vmatprep.subr.mxu0 0.0
        %1068 = vmatpush2.xpose.msra.mxu0 0.0
        %1069 = vmatprep.subr.mxu0 0.0
        %1070 = vmatpush2.xpose.msra.mxu0 0.0
        %1071 = vmatprep.subr.mxu0 0.0
        %1072 = vmatpush2.xpose.msra.mxu0 0.0
        %1073 = vmatprep.subr.mxu0 0.0
        %1074 = vmatpush2.xpose.msra.mxu0 0.0
        %1075 = vmatprep.subr.mxu0 0.0
        %1076 = vmatpush2.xpose.msra.mxu0 0.0
        %1077 = vmatprep.subr.mxu0 0.0
        %1078 = vmatpush2.xpose.msra.mxu0 0.0
        %1079 = vmatprep.subr.mxu0 0.0
        %1080 = vmatpush2.xpose.msra.mxu0 0.0
        %1081 = vmatprep.subr.mxu0 0.0
        %1082 = vmatpush2.xpose.msra.mxu0 0.0
        %1083 = vmatprep.subr.mxu0 0.0
        %1084 = vmatpush2.xpose.msra.mxu0 0.0
        %1085 = vmatprep.mubr.f32.mxu0 0.0
        %1086 = vmatmul.mubr.f32.gmra.mxu0 %v1017
        %v1087 = vpop.f32.mrf.mxu0
        %v1088 = vadd.f32 %v766, %v1087
        %v1089 = vpop.f32.mrf.mxu0
        %1090 = vdwg.mxu0
        %v1091 = vsel %vm771, %v1088, -inf
        %1092 = vmax.xlane.f32.xlu0 %v1091
        %v1093 = vpop.xlane.xlu0 %1092
        %v1094 = vsub.f32 %v1088, %v1093
        %v1095 = vmul.f32 %v1094, 1.442695
        %v1096 = vpow.pop %v1095
        %v1097 = vsel %vm771, %v1096, 0.0
        %1098 = vadd.xlane.f32.xlu0 %v1097
        %v1099 = vpop.xlane.xlu0 %1098
        %v1100 = vrcp.pop %v1099
        %v1101 = vmul.f32 %v1096, %v1100
        %1102 = vrot.lane.b32.xlu0 %v754, 56
        %v1103 = vpop.permute.xlu0 %1102
        %v1106 = vsel %vm771, %v1101, 0
        %1108 = vmatprep.subr.mxu0 0.0
        %1109 = vmatpush1.msra.mxu0 0.0
        %1110 = vmatprep.subr.mxu0 0.0
        %1111 = vmatpush1.msra.mxu0 0.0
        %1112 = vmatprep.subr.mxu0 0.0
        %1113 = vmatpush1.msra.mxu0 0.0
        %1114 = vmatprep.subr.mxu0 0.0
        %1115 = vmatpush1.msra.mxu0 0.0
        %1116 = vmatprep.subr.mxu0 0.0
        %1117 = vmatpush1.msra.mxu0 0.0
        %1118 = vmatprep.subr.mxu0 0.0
        %1119 = vmatpush1.msra.mxu0 0.0
        %1120 = vmatprep.subr.mxu0 0.0
        %1121 = vmatpush1.msra.mxu0 0.0
        %1122 = vmatprep.subr.mxu0 0.0
        %1123 = vmatpush1.msra.mxu0 0.0
        %1124 = vmatprep.subr.mxu0 0.0
        %1125 = vmatpush1.msra.mxu0 0.0
        %1126 = vmatprep.subr.mxu0 0.0
        %1127 = vmatpush1.msra.mxu0 0.0
        %1128 = vmatprep.subr.mxu0 0.0
        %1129 = vmatpush1.msra.mxu0 0.0
        %1130 = vmatprep.subr.mxu0 0.0
        %1131 = vmatpush1.msra.mxu0 0.0
        %1132 = vmatprep.subr.mxu0 0.0
        %1133 = vmatpush1.msra.mxu0 0.0
        %1134 = vmatprep.subr.mxu0 0.0
        %1135 = vmatpush1.msra.mxu0 0.0
        %1136 = vmatprep.subr.mxu0 0.0
        %1137 = vmatpush1.msra.mxu0 0.0
        %1138 = vmatprep.subr.mxu0 0.0
        %1139 = vmatpush1.msra.mxu0 %v1103
        %1140 = vmatprep.subr.mxu0 0.0
        %1141 = vmatpush2.msra.mxu0 0.0
        %1142 = vmatprep.subr.mxu0 0.0
        %1143 = vmatpush2.msra.mxu0 0.0
        %1144 = vmatprep.subr.mxu0 0.0
        %1145 = vmatpush2.msra.mxu0 0.0
        %1146 = vmatprep.subr.mxu0 0.0
        %1147 = vmatpush2.msra.mxu0 0.0
        %1148 = vmatprep.subr.mxu0 0.0
        %1149 = vmatpush2.msra.mxu0 0.0
        %1150 = vmatprep.subr.mxu0 0.0
        %1151 = vmatpush2.msra.mxu0 0.0
        %1152 = vmatprep.subr.mxu0 0.0
        %1153 = vmatpush2.msra.mxu0 0.0
        %1154 = vmatprep.subr.mxu0 0.0
        %1155 = vmatpush2.msra.mxu0 0.0
        %1156 = vmatprep.subr.mxu0 0.0
        %1157 = vmatpush2.msra.mxu0 0.0
        %1158 = vmatprep.subr.mxu0 0.0
        %1159 = vmatpush2.msra.mxu0 0.0
        %1160 = vmatprep.subr.mxu0 0.0
        %1161 = vmatpush2.msra.mxu0 0.0
        %1162 = vmatprep.subr.mxu0 0.0
        %1163 = vmatpush2.msra.mxu0 0.0
        %1164 = vmatprep.subr.mxu0 0.0
        %1165 = vmatpush2.msra.mxu0 0.0
        %1166 = vmatprep.subr.mxu0 0.0
        %1167 = vmatpush2.msra.mxu0 0.0
        %1168 = vmatprep.subr.mxu0 0.0
        %1169 = vmatpush2.msra.mxu0 0.0
        %1170 = vmatprep.subr.mxu0 0.0
        %1171 = vmatpush2.msra.mxu0 0.0
        %1172 = vmatprep.mubr.f32.mxu0 0.0
        %1173 = vmatmul.mubr.f32.gmra.mxu0 %v1106
        %v1174 = vpop.f32.mrf.mxu0
        %v1175 = vadd.f32 0.0, %v1174
        %v1176 = vpop.f32.mrf.mxu0
        %1177 = vdwg.mxu0
        %v1179 = vsel %vm771, %v1175, 0
        %1181 = vmatprep.subr.mxu0 0.0
        %1182 = vmatpush1.msra.mxu0 0.0
        %1183 = vmatprep.subr.mxu0 0.0
        %1184 = vmatpush1.msra.mxu0 0.0
        %1185 = vmatprep.subr.mxu0 0.0
        %1186 = vmatpush1.msra.mxu0 0.0
        %1187 = vmatprep.subr.mxu0 0.0
        %1188 = vmatpush1.msra.mxu0 0.0
        %1189 = vmatprep.subr.mxu0 0.0
        %1190 = vmatpush1.msra.mxu0 0.0
        %1191 = vmatprep.subr.mxu0 0.0
        %1192 = vmatpush1.msra.mxu0 0.0
        %1193 = vmatprep.subr.mxu0 0.0
        %1194 = vmatpush1.msra.mxu0 0.0
        %1195 = vmatprep.subr.mxu0 0.0
        %1196 = vmatpush1.msra.mxu0 0.0
        %1197 = vmatprep.subr.mxu0 0.0
        %1198 = vmatpush1.msra.mxu0 0.0
        %1199 = vmatprep.subr.mxu0 0.0
        %1200 = vmatpush1.msra.mxu0 0.0
        %1201 = vmatprep.subr.mxu0 0.0
        %1202 = vmatpush1.msra.mxu0 0.0
        %1203 = vmatprep.subr.mxu0 0.0
        %1204 = vmatpush1.msra.mxu0 0.0
        %1205 = vmatprep.subr.mxu0 0.0
        %1206 = vmatpush1.msra.mxu0 0.0
        %1207 = vmatprep.subr.mxu0 0.0
        %1208 = vmatpush1.msra.mxu0 0.0
        %1209 = vmatprep.subr.mxu0 0.0
        %1210 = vmatpush1.msra.mxu0 0.0
        %1211 = vmatprep.subr.mxu0 0.0
        %1212 = vmatpush1.msra.mxu0 %v758
        %1213 = vmatprep.subr.mxu0 0.0
        %1214 = vmatpush2.msra.mxu0 0.0
        %1215 = vmatprep.subr.mxu0 0.0
        %1216 = vmatpush2.msra.mxu0 0.0
        %1217 = vmatprep.subr.mxu0 0.0
        %1218 = vmatpush2.msra.mxu0 0.0
        %1219 = vmatprep.subr.mxu0 0.0
        %1220 = vmatpush2.msra.mxu0 0.0
        %1221 = vmatprep.subr.mxu0 0.0
        %1222 = vmatpush2.msra.mxu0 0.0
        %1223 = vmatprep.subr.mxu0 0.0
        %1224 = vmatpush2.msra.mxu0 0.0
        %1225 = vmatprep.subr.mxu0 0.0
        %1226 = vmatpush2.msra.mxu0 0.0
        %1227 = vmatprep.subr.mxu0 0.0
        %1228 = vmatpush2.msra.mxu0 0.0
        %1229 = vmatprep.subr.mxu0 0.0
        %1230 = vmatpush2.msra.mxu0 0.0
        %1231 = vmatprep.subr.mxu0 0.0
        %1232 = vmatpush2.msra.mxu0 0.0
        %1233 = vmatprep.subr.mxu0 0.0
        %1234 = vmatpush2.msra.mxu0 0.0
        %1235 = vmatprep.subr.mxu0 0.0
        %1236 = vmatpush2.msra.mxu0 0.0
        %1237 = vmatprep.subr.mxu0 0.0
        %1238 = vmatpush2.msra.mxu0 0.0
        %1239 = vmatprep.subr.mxu0 0.0
        %1240 = vmatpush2.msra.mxu0 0.0
        %1241 = vmatprep.subr.mxu0 0.0
        %1242 = vmatpush2.msra.mxu0 0.0
        %1243 = vmatprep.subr.mxu0 0.0
        %1244 = vmatpush2.msra.mxu0 0.0
        %1245 = vmatprep.mubr.f32.mxu0 0.0
        %1246 = vmatmul.mubr.f32.gmra.mxu0 %v1179
        %v1247 = vpop.f32.mrf.mxu0
        %v1248 = vadd.f32 0.0, %v1247
        %v1249 = vpop.f32.mrf.mxu0
        %1250 = vdwg.mxu0
        %v1251 = vadd.f32 %v1012, %v1248
        %1252 = vrot.lane.b32.xlu0 %v754, 112
        %v1253 = vpop.permute.xlu0 %1252
        %1254 = vrot.lane.b32.xlu0 %v754, 80
        %v1255 = vpop.permute.xlu0 %1254
        %v1256 = vsel %vm771, %v1253, 0
        %v1258 = vsel %vm771, %v1255, 0
        %1260 = vmatprep.subr.mxu0 0.0
        %1261 = vmatpush1.xpose.msra.mxu0 0.0
        %1262 = vmatprep.subr.mxu0 0.0
        %1263 = vmatpush1.xpose.msra.mxu0 0.0
        %1264 = vmatprep.subr.mxu0 0.0
        %1265 = vmatpush1.xpose.msra.mxu0 0.0
        %1266 = vmatprep.subr.mxu0 0.0
        %1267 = vmatpush1.xpose.msra.mxu0 0.0
        %1268 = vmatprep.subr.mxu0 0.0
        %1269 = vmatpush1.xpose.msra.mxu0 0.0
        %1270 = vmatprep.subr.mxu0 0.0
        %1271 = vmatpush1.xpose.msra.mxu0 0.0
        %1272 = vmatprep.subr.mxu0 0.0
        %1273 = vmatpush1.xpose.msra.mxu0 0.0
        %1274 = vmatprep.subr.mxu0 0.0
        %1275 = vmatpush1.xpose.msra.mxu0 0.0
        %1276 = vmatprep.subr.mxu0 0.0
        %1277 = vmatpush1.xpose.msra.mxu0 0.0
        %1278 = vmatprep.subr.mxu0 0.0
        %1279 = vmatpush1.xpose.msra.mxu0 0.0
        %1280 = vmatprep.subr.mxu0 0.0
        %1281 = vmatpush1.xpose.msra.mxu0 0.0
        %1282 = vmatprep.subr.mxu0 0.0
        %1283 = vmatpush1.xpose.msra.mxu0 0.0
        %1284 = vmatprep.subr.mxu0 0.0
        %1285 = vmatpush1.xpose.msra.mxu0 0.0
        %1286 = vmatprep.subr.mxu0 0.0
        %1287 = vmatpush1.xpose.msra.mxu0 0.0
        %1288 = vmatprep.subr.mxu0 0.0
        %1289 = vmatpush1.xpose.msra.mxu0 0.0
        %1290 = vmatprep.subr.mxu0 0.0
        %1291 = vmatpush1.xpose.msra.mxu0 %v1258
        %1292 = vmatprep.subr.mxu0 0.0
        %1293 = vmatpush2.xpose.msra.mxu0 0.0
        %1294 = vmatprep.subr.mxu0 0.0
        %1295 = vmatpush2.xpose.msra.mxu0 0.0
        %1296 = vmatprep.subr.mxu0 0.0
        %1297 = vmatpush2.xpose.msra.mxu0 0.0
        %1298 = vmatprep.subr.mxu0 0.0
        %1299 = vmatpush2.xpose.msra.mxu0 0.0
        %1300 = vmatprep.subr.mxu0 0.0
        %1301 = vmatpush2.xpose.msra.mxu0 0.0
        %1302 = vmatprep.subr.mxu0 0.0
        %1303 = vmatpush2.xpose.msra.mxu0 0.0
        %1304 = vmatprep.subr.mxu0 0.0
        %1305 = vmatpush2.xpose.msra.mxu0 0.0
        %1306 = vmatprep.subr.mxu0 0.0
        %1307 = vmatpush2.xpose.msra.mxu0 0.0
        %1308 = vmatprep.subr.mxu0 0.0
        %1309 = vmatpush2.xpose.msra.mxu0 0.0
        %1310 = vmatprep.subr.mxu0 0.0
        %1311 = vmatpush2.xpose.msra.mxu0 0.0
        %1312 = vmatprep.subr.mxu0 0.0
        %1313 = vmatpush2.xpose.msra.mxu0 0.0
        %1314 = vmatprep.subr.mxu0 0.0
        %1315 = vmatpush2.xpose.msra.mxu0 0.0
        %1316 = vmatprep.subr.mxu0 0.0
        %1317 = vmatpush2.xpose.msra.mxu0 0.0
        %1318 = vmatprep.subr.mxu0 0.0
        %1319 = vmatpush2.xpose.msra.mxu0 0.0
        %1320 = vmatprep.subr.mxu0 0.0
        %1321 = vmatpush2.xpose.msra.mxu0 0.0
        %1322 = vmatprep.subr.mxu0 0.0
        %1323 = vmatpush2.xpose.msra.mxu0 0.0
        %1324 = vmatprep.mubr.f32.mxu0 0.0
        %1325 = vmatmul.mubr.f32.gmra.mxu0 %v1256
        %v1326 = vpop.f32.mrf.mxu0
        %v1327 = vadd.f32 %v766, %v1326
        %v1328 = vpop.f32.mrf.mxu0
        %1329 = vdwg.mxu0
        %v1330 = vsel %vm771, %v1327, -inf
        %1331 = vmax.xlane.f32.xlu0 %v1330
        %v1332 = vpop.xlane.xlu0 %1331
        %v1333 = vsub.f32 %v1327, %v1332
        %v1334 = vmul.f32 %v1333, 1.442695
        %v1335 = vpow.pop %v1334
        %v1336 = vsel %vm771, %v1335, 0.0
        %1337 = vadd.xlane.f32.xlu0 %v1336
        %v1338 = vpop.xlane.xlu0 %1337
        %v1339 = vrcp.pop %v1338
        %v1340 = vmul.f32 %v1335, %v1339
        %1341 = vrot.lane.b32.xlu0 %v754, 48
        %v1342 = vpop.permute.xlu0 %1341
        %v1345 = vsel %vm771, %v1340, 0
        %1347 = vmatprep.subr.mxu0 0.0
        %1348 = vmatpush1.msra.mxu0 0.0
        %1349 = vmatprep.subr.mxu0 0.0
        %1350 = vmatpush1.msra.mxu0 0.0
        %1351 = vmatprep.subr.mxu0 0.0
        %1352 = vmatpush1.msra.mxu0 0.0
        %1353 = vmatprep.subr.mxu0 0.0
        %1354 = vmatpush1.msra.mxu0 0.0
        %1355 = vmatprep.subr.mxu0 0.0
        %1356 = vmatpush1.msra.mxu0 0.0
        %1357 = vmatprep.subr.mxu0 0.0
        %1358 = vmatpush1.msra.mxu0 0.0
        %1359 = vmatprep.subr.mxu0 0.0
        %1360 = vmatpush1.msra.mxu0 0.0
        %1361 = vmatprep.subr.mxu0 0.0
        %1362 = vmatpush1.msra.mxu0 0.0
        %1363 = vmatprep.subr.mxu0 0.0
        %1364 = vmatpush1.msra.mxu0 0.0
        %1365 = vmatprep.subr.mxu0 0.0
        %1366 = vmatpush1.msra.mxu0 0.0
        %1367 = vmatprep.subr.mxu0 0.0
        %1368 = vmatpush1.msra.mxu0 0.0
        %1369 = vmatprep.subr.mxu0 0.0
        %1370 = vmatpush1.msra.mxu0 0.0
        %1371 = vmatprep.subr.mxu0 0.0
        %1372 = vmatpush1.msra.mxu0 0.0
        %1373 = vmatprep.subr.mxu0 0.0
        %1374 = vmatpush1.msra.mxu0 0.0
        %1375 = vmatprep.subr.mxu0 0.0
        %1376 = vmatpush1.msra.mxu0 0.0
        %1377 = vmatprep.subr.mxu0 0.0
        %1378 = vmatpush1.msra.mxu0 %v1342
        %1379 = vmatprep.subr.mxu0 0.0
        %1380 = vmatpush2.msra.mxu0 0.0
        %1381 = vmatprep.subr.mxu0 0.0
        %1382 = vmatpush2.msra.mxu0 0.0
        %1383 = vmatprep.subr.mxu0 0.0
        %1384 = vmatpush2.msra.mxu0 0.0
        %1385 = vmatprep.subr.mxu0 0.0
        %1386 = vmatpush2.msra.mxu0 0.0
        %1387 = vmatprep.subr.mxu0 0.0
        %1388 = vmatpush2.msra.mxu0 0.0
        %1389 = vmatprep.subr.mxu0 0.0
        %1390 = vmatpush2.msra.mxu0 0.0
        %1391 = vmatprep.subr.mxu0 0.0
        %1392 = vmatpush2.msra.mxu0 0.0
        %1393 = vmatprep.subr.mxu0 0.0
        %1394 = vmatpush2.msra.mxu0 0.0
        %1395 = vmatprep.subr.mxu0 0.0
        %1396 = vmatpush2.msra.mxu0 0.0
        %1397 = vmatprep.subr.mxu0 0.0
        %1398 = vmatpush2.msra.mxu0 0.0
        %1399 = vmatprep.subr.mxu0 0.0
        %1400 = vmatpush2.msra.mxu0 0.0
        %1401 = vmatprep.subr.mxu0 0.0
        %1402 = vmatpush2.msra.mxu0 0.0
        %1403 = vmatprep.subr.mxu0 0.0
        %1404 = vmatpush2.msra.mxu0 0.0
        %1405 = vmatprep.subr.mxu0 0.0
        %1406 = vmatpush2.msra.mxu0 0.0
        %1407 = vmatprep.subr.mxu0 0.0
        %1408 = vmatpush2.msra.mxu0 0.0
        %1409 = vmatprep.subr.mxu0 0.0
        %1410 = vmatpush2.msra.mxu0 0.0
        %1411 = vmatprep.mubr.f32.mxu0 0.0
        %1412 = vmatmul.mubr.f32.gmra.mxu0 %v1345
        %v1413 = vpop.f32.mrf.mxu0
        %v1414 = vadd.f32 0.0, %v1413
        %v1415 = vpop.f32.mrf.mxu0
        %1416 = vdwg.mxu0
        %v1418 = vsel %vm771, %v1414, 0
        %1420 = vmatprep.subr.mxu0 0.0
        %1421 = vmatpush1.msra.mxu0 0.0
        %1422 = vmatprep.subr.mxu0 0.0
        %1423 = vmatpush1.msra.mxu0 0.0
        %1424 = vmatprep.subr.mxu0 0.0
        %1425 = vmatpush1.msra.mxu0 0.0
        %1426 = vmatprep.subr.mxu0 0.0
        %1427 = vmatpush1.msra.mxu0 0.0
        %1428 = vmatprep.subr.mxu0 0.0
        %1429 = vmatpush1.msra.mxu0 0.0
        %1430 = vmatprep.subr.mxu0 0.0
        %1431 = vmatpush1.msra.mxu0 0.0
        %1432 = vmatprep.subr.mxu0 0.0
        %1433 = vmatpush1.msra.mxu0 0.0
        %1434 = vmatprep.subr.mxu0 0.0
        %1435 = vmatpush1.msra.mxu0 0.0
        %1436 = vmatprep.subr.mxu0 0.0
        %1437 = vmatpush1.msra.mxu0 0.0
        %1438 = vmatprep.subr.mxu0 0.0
        %1439 = vmatpush1.msra.mxu0 0.0
        %1440 = vmatprep.subr.mxu0 0.0
        %1441 = vmatpush1.msra.mxu0 0.0
        %1442 = vmatprep.subr.mxu0 0.0
        %1443 = vmatpush1.msra.mxu0 0.0
        %1444 = vmatprep.subr.mxu0 0.0
        %1445 = vmatpush1.msra.mxu0 0.0
        %1446 = vmatprep.subr.mxu0 0.0
        %1447 = vmatpush1.msra.mxu0 0.0
        %1448 = vmatprep.subr.mxu0 0.0
        %1449 = vmatpush1.msra.mxu0 0.0
        %1450 = vmatprep.subr.mxu0 0.0
        %1451 = vmatpush1.msra.mxu0 %v759
        %1452 = vmatprep.subr.mxu0 0.0
        %1453 = vmatpush2.msra.mxu0 0.0
        %1454 = vmatprep.subr.mxu0 0.0
        %1455 = vmatpush2.msra.mxu0 0.0
        %1456 = vmatprep.subr.mxu0 0.0
        %1457 = vmatpush2.msra.mxu0 0.0
        %1458 = vmatprep.subr.mxu0 0.0
        %1459 = vmatpush2.msra.mxu0 0.0
        %1460 = vmatprep.subr.mxu0 0.0
        %1461 = vmatpush2.msra.mxu0 0.0
        %1462 = vmatprep.subr.mxu0 0.0
        %1463 = vmatpush2.msra.mxu0 0.0
        %1464 = vmatprep.subr.mxu0 0.0
        %1465 = vmatpush2.msra.mxu0 0.0
        %1466 = vmatprep.subr.mxu0 0.0
        %1467 = vmatpush2.msra.mxu0 0.0
        %1468 = vmatprep.subr.mxu0 0.0
        %1469 = vmatpush2.msra.mxu0 0.0
        %1470 = vmatprep.subr.mxu0 0.0
        %1471 = vmatpush2.msra.mxu0 0.0
        %1472 = vmatprep.subr.mxu0 0.0
        %1473 = vmatpush2.msra.mxu0 0.0
        %1474 = vmatprep.subr.mxu0 0.0
        %1475 = vmatpush2.msra.mxu0 0.0
        %1476 = vmatprep.subr.mxu0 0.0
        %1477 = vmatpush2.msra.mxu0 0.0
        %1478 = vmatprep.subr.mxu0 0.0
        %1479 = vmatpush2.msra.mxu0 0.0
        %1480 = vmatprep.subr.mxu0 0.0
        %1481 = vmatpush2.msra.mxu0 0.0
        %1482 = vmatprep.subr.mxu0 0.0
        %1483 = vmatpush2.msra.mxu0 0.0
        %1484 = vmatprep.mubr.f32.mxu0 0.0
        %1485 = vmatmul.mubr.f32.gmra.mxu0 %v1418
        %v1486 = vpop.f32.mrf.mxu0
        %v1487 = vadd.f32 0.0, %v1486
        %v1488 = vpop.f32.mrf.mxu0
        %1489 = vdwg.mxu0
        %v1490 = vadd.f32 %v1251, %v1487
        %1491 = vrot.lane.b32.xlu0 %v754, 104
        %v1492 = vpop.permute.xlu0 %1491
        %1493 = vrot.lane.b32.xlu0 %v754, 72
        %v1494 = vpop.permute.xlu0 %1493
        %v1495 = vsel %vm771, %v1492, 0
        %v1497 = vsel %vm771, %v1494, 0
        %1499 = vmatprep.subr.mxu0 0.0
        %1500 = vmatpush1.xpose.msra.mxu0 0.0
        %1501 = vmatprep.subr.mxu0 0.0
        %1502 = vmatpush1.xpose.msra.mxu0 0.0
        %1503 = vmatprep.subr.mxu0 0.0
        %1504 = vmatpush1.xpose.msra.mxu0 0.0
        %1505 = vmatprep.subr.mxu0 0.0
        %1506 = vmatpush1.xpose.msra.mxu0 0.0
        %1507 = vmatprep.subr.mxu0 0.0
        %1508 = vmatpush1.xpose.msra.mxu0 0.0
        %1509 = vmatprep.subr.mxu0 0.0
        %1510 = vmatpush1.xpose.msra.mxu0 0.0
        %1511 = vmatprep.subr.mxu0 0.0
        %1512 = vmatpush1.xpose.msra.mxu0 0.0
        %1513 = vmatprep.subr.mxu0 0.0
        %1514 = vmatpush1.xpose.msra.mxu0 0.0
        %1515 = vmatprep.subr.mxu0 0.0
        %1516 = vmatpush1.xpose.msra.mxu0 0.0
        %1517 = vmatprep.subr.mxu0 0.0
        %1518 = vmatpush1.xpose.msra.mxu0 0.0
        %1519 = vmatprep.subr.mxu0 0.0
        %1520 = vmatpush1.xpose.msra.mxu0 0.0
        %1521 = vmatprep.subr.mxu0 0.0
        %1522 = vmatpush1.xpose.msra.mxu0 0.0
        %1523 = vmatprep.subr.mxu0 0.0
        %1524 = vmatpush1.xpose.msra.mxu0 0.0
        %1525 = vmatprep.subr.mxu0 0.0
        %1526 = vmatpush1.xpose.msra.mxu0 0.0
        %1527 = vmatprep.subr.mxu0 0.0
        %1528 = vmatpush1.xpose.msra.mxu0 0.0
        %1529 = vmatprep.subr.mxu0 0.0
        %1530 = vmatpush1.xpose.msra.mxu0 %v1497
        %1531 = vmatprep.subr.mxu0 0.0
        %1532 = vmatpush2.xpose.msra.mxu0 0.0
        %1533 = vmatprep.subr.mxu0 0.0
        %1534 = vmatpush2.xpose.msra.mxu0 0.0
        %1535 = vmatprep.subr.mxu0 0.0
        %1536 = vmatpush2.xpose.msra.mxu0 0.0
        %1537 = vmatprep.subr.mxu0 0.0
        %1538 = vmatpush2.xpose.msra.mxu0 0.0
        %1539 = vmatprep.subr.mxu0 0.0
        %1540 = vmatpush2.xpose.msra.mxu0 0.0
        %1541 = vmatprep.subr.mxu0 0.0
        %1542 = vmatpush2.xpose.msra.mxu0 0.0
        %1543 = vmatprep.subr.mxu0 0.0
        %1544 = vmatpush2.xpose.msra.mxu0 0.0
        %1545 = vmatprep.subr.mxu0 0.0
        %1546 = vmatpush2.xpose.msra.mxu0 0.0
        %1547 = vmatprep.subr.mxu0 0.0
        %1548 = vmatpush2.xpose.msra.mxu0 0.0
        %1549 = vmatprep.subr.mxu0 0.0
        %1550 = vmatpush2.xpose.msra.mxu0 0.0
        %1551 = vmatprep.subr.mxu0 0.0
        %1552 = vmatpush2.xpose.msra.mxu0 0.0
        %1553 = vmatprep.subr.mxu0 0.0
        %1554 = vmatpush2.xpose.msra.mxu0 0.0
        %1555 = vmatprep.subr.mxu0 0.0
        %1556 = vmatpush2.xpose.msra.mxu0 0.0
        %1557 = vmatprep.subr.mxu0 0.0
        %1558 = vmatpush2.xpose.msra.mxu0 0.0
        %1559 = vmatprep.subr.mxu0 0.0
        %1560 = vmatpush2.xpose.msra.mxu0 0.0
        %1561 = vmatprep.subr.mxu0 0.0
        %1562 = vmatpush2.xpose.msra.mxu0 0.0
        %1563 = vmatprep.mubr.f32.mxu0 0.0
        %1564 = vmatmul.mubr.f32.gmra.mxu0 %v1495
        %v1565 = vpop.f32.mrf.mxu0
        %v1566 = vadd.f32 %v766, %v1565
        %v1567 = vpop.f32.mrf.mxu0
        %1568 = vdwg.mxu0
        %v1569 = vsel %vm771, %v1566, -inf
        %1570 = vmax.xlane.f32.xlu0 %v1569
        %v1571 = vpop.xlane.xlu0 %1570
        %v1572 = vsub.f32 %v1566, %v1571
        %v1573 = vmul.f32 %v1572, 1.442695
        %v1574 = vpow.pop %v1573
        %v1575 = vsel %vm771, %v1574, 0.0
        %1576 = vadd.xlane.f32.xlu0 %v1575
        %v1577 = vpop.xlane.xlu0 %1576
        %v1578 = vrcp.pop %v1577
        %v1579 = vmul.f32 %v1574, %v1578
        %1580 = vrot.lane.b32.xlu0 %v754, 40
        %v1581 = vpop.permute.xlu0 %1580
        %v1584 = vsel %vm771, %v1579, 0
        %1586 = vmatprep.subr.mxu0 0.0
        %1587 = vmatpush1.msra.mxu0 0.0
        %1588 = vmatprep.subr.mxu0 0.0
        %1589 = vmatpush1.msra.mxu0 0.0
        %1590 = vmatprep.subr.mxu0 0.0
        %1591 = vmatpush1.msra.mxu0 0.0
        %1592 = vmatprep.subr.mxu0 0.0
        %1593 = vmatpush1.msra.mxu0 0.0
        %1594 = vmatprep.subr.mxu0 0.0
        %1595 = vmatpush1.msra.mxu0 0.0
        %1596 = vmatprep.subr.mxu0 0.0
        %1597 = vmatpush1.msra.mxu0 0.0
        %1598 = vmatprep.subr.mxu0 0.0
        %1599 = vmatpush1.msra.mxu0 0.0
        %1600 = vmatprep.subr.mxu0 0.0
        %1601 = vmatpush1.msra.mxu0 0.0
        %1602 = vmatprep.subr.mxu0 0.0
        %1603 = vmatpush1.msra.mxu0 0.0
        %1604 = vmatprep.subr.mxu0 0.0
        %1605 = vmatpush1.msra.mxu0 0.0
        %1606 = vmatprep.subr.mxu0 0.0
        %1607 = vmatpush1.msra.mxu0 0.0
        %1608 = vmatprep.subr.mxu0 0.0
        %1609 = vmatpush1.msra.mxu0 0.0
        %1610 = vmatprep.subr.mxu0 0.0
        %1611 = vmatpush1.msra.mxu0 0.0
        %1612 = vmatprep.subr.mxu0 0.0
        %1613 = vmatpush1.msra.mxu0 0.0
        %1614 = vmatprep.subr.mxu0 0.0
        %1615 = vmatpush1.msra.mxu0 0.0
        %1616 = vmatprep.subr.mxu0 0.0
        %1617 = vmatpush1.msra.mxu0 %v1581
        %1618 = vmatprep.subr.mxu0 0.0
        %1619 = vmatpush2.msra.mxu0 0.0
        %1620 = vmatprep.subr.mxu0 0.0
        %1621 = vmatpush2.msra.mxu0 0.0
        %1622 = vmatprep.subr.mxu0 0.0
        %1623 = vmatpush2.msra.mxu0 0.0
        %1624 = vmatprep.subr.mxu0 0.0
        %1625 = vmatpush2.msra.mxu0 0.0
        %1626 = vmatprep.subr.mxu0 0.0
        %1627 = vmatpush2.msra.mxu0 0.0
        %1628 = vmatprep.subr.mxu0 0.0
        %1629 = vmatpush2.msra.mxu0 0.0
        %1630 = vmatprep.subr.mxu0 0.0
        %1631 = vmatpush2.msra.mxu0 0.0
        %1632 = vmatprep.subr.mxu0 0.0
        %1633 = vmatpush2.msra.mxu0 0.0
        %1634 = vmatprep.subr.mxu0 0.0
        %1635 = vmatpush2.msra.mxu0 0.0
        %1636 = vmatprep.subr.mxu0 0.0
        %1637 = vmatpush2.msra.mxu0 0.0
        %1638 = vmatprep.subr.mxu0 0.0
        %1639 = vmatpush2.msra.mxu0 0.0
        %1640 = vmatprep.subr.mxu0 0.0
        %1641 = vmatpush2.msra.mxu0 0.0
        %1642 = vmatprep.subr.mxu0 0.0
        %1643 = vmatpush2.msra.mxu0 0.0
        %1644 = vmatprep.subr.mxu0 0.0
        %1645 = vmatpush2.msra.mxu0 0.0
        %1646 = vmatprep.subr.mxu0 0.0
        %1647 = vmatpush2.msra.mxu0 0.0
        %1648 = vmatprep.subr.mxu0 0.0
        %1649 = vmatpush2.msra.mxu0 0.0
        %1650 = vmatprep.mubr.f32.mxu0 0.0
        %1651 = vmatmul.mubr.f32.gmra.mxu0 %v1584
        %v1652 = vpop.f32.mrf.mxu0
        %v1653 = vadd.f32 0.0, %v1652
        %v1654 = vpop.f32.mrf.mxu0
        %1655 = vdwg.mxu0
        %v1657 = vsel %vm771, %v1653, 0
        %1659 = vmatprep.subr.mxu0 0.0
        %1660 = vmatpush1.msra.mxu0 0.0
        %1661 = vmatprep.subr.mxu0 0.0
        %1662 = vmatpush1.msra.mxu0 0.0
        %1663 = vmatprep.subr.mxu0 0.0
        %1664 = vmatpush1.msra.mxu0 0.0
        %1665 = vmatprep.subr.mxu0 0.0
        %1666 = vmatpush1.msra.mxu0 0.0
        %1667 = vmatprep.subr.mxu0 0.0
        %1668 = vmatpush1.msra.mxu0 0.0
        %1669 = vmatprep.subr.mxu0 0.0
        %1670 = vmatpush1.msra.mxu0 0.0
        %1671 = vmatprep.subr.mxu0 0.0
        %1672 = vmatpush1.msra.mxu0 0.0
        %1673 = vmatprep.subr.mxu0 0.0
        %1674 = vmatpush1.msra.mxu0 0.0
        %1675 = vmatprep.subr.mxu0 0.0
        %1676 = vmatpush1.msra.mxu0 0.0
        %1677 = vmatprep.subr.mxu0 0.0
        %1678 = vmatpush1.msra.mxu0 0.0
        %1679 = vmatprep.subr.mxu0 0.0
        %1680 = vmatpush1.msra.mxu0 0.0
        %1681 = vmatprep.subr.mxu0 0.0
        %1682 = vmatpush1.msra.mxu0 0.0
        %1683 = vmatprep.subr.mxu0 0.0
        %1684 = vmatpush1.msra.mxu0 0.0
        %1685 = vmatprep.subr.mxu0 0.0
        %1686 = vmatpush1.msra.mxu0 0.0
        %1687 = vmatprep.subr.mxu0 0.0
        %1688 = vmatpush1.msra.mxu0 0.0
        %1689 = vmatprep.subr.mxu0 0.0
        %1690 = vmatpush1.msra.mxu0 %v760
        %1691 = vmatprep.subr.mxu0 0.0
        %1692 = vmatpush2.msra.mxu0 0.0
        %1693 = vmatprep.subr.mxu0 0.0
        %1694 = vmatpush2.msra.mxu0 0.0
        %1695 = vmatprep.subr.mxu0 0.0
        %1696 = vmatpush2.msra.mxu0 0.0
        %1697 = vmatprep.subr.mxu0 0.0
        %1698 = vmatpush2.msra.mxu0 0.0
        %1699 = vmatprep.subr.mxu0 0.0
        %1700 = vmatpush2.msra.mxu0 0.0
        %1701 = vmatprep.subr.mxu0 0.0
        %1702 = vmatpush2.msra.mxu0 0.0
        %1703 = vmatprep.subr.mxu0 0.0
        %1704 = vmatpush2.msra.mxu0 0.0
        %1705 = vmatprep.subr.mxu0 0.0
        %1706 = vmatpush2.msra.mxu0 0.0
        %1707 = vmatprep.subr.mxu0 0.0
        %1708 = vmatpush2.msra.mxu0 0.0
        %1709 = vmatprep.subr.mxu0 0.0
        %1710 = vmatpush2.msra.mxu0 0.0
        %1711 = vmatprep.subr.mxu0 0.0
        %1712 = vmatpush2.msra.mxu0 0.0
        %1713 = vmatprep.subr.mxu0 0.0
        %1714 = vmatpush2.msra.mxu0 0.0
        %1715 = vmatprep.subr.mxu0 0.0
        %1716 = vmatpush2.msra.mxu0 0.0
        %1717 = vmatprep.subr.mxu0 0.0
        %1718 = vmatpush2.msra.mxu0 0.0
        %1719 = vmatprep.subr.mxu0 0.0
        %1720 = vmatpush2.msra.mxu0 0.0
        %1721 = vmatprep.subr.mxu0 0.0
        %1722 = vmatpush2.msra.mxu0 0.0
        %1723 = vmatprep.mubr.f32.mxu0 0.0
        %1724 = vmatmul.mubr.f32.gmra.mxu0 %v1657
        %v1725 = vpop.f32.mrf.mxu0
        %v1726 = vadd.f32 0.0, %v1725
        %v1727 = vpop.f32.mrf.mxu0
        %1728 = vdwg.mxu0
        %v1729 = vadd.f32 %v1490, %v1726
        %v1730 = vadd.f32 %v1729, %v669
        %v1731 = vld [vmem:[%s8] sm:$0x1]
        %v1732 = vld [vmem:[%s9] sm:$0x1]
        %v1733 = vsel %vm641, %v1730, 0.0
        %1734 = vadd.xlane.f32.xlu0 %v1733
        %v1735 = vpop.xlane.xlu0 %1734
        %v1736 = vmul.f32 %v1735, %v645
        %v1737 = vsub.f32 %v1730, %v1736
        %v1738 = vmul.f32 %v1737, %v1737
        %v1739 = vsel %vm641, %v1738, 0.0
        %1740 = vadd.xlane.f32.xlu0 %v1739
        %v1741 = vpop.xlane.xlu0 %1740
        %v1742 = vmul.f32 %v1741, %v645
        %v1743 = vadd.f32 %v1742, 1e-12
        %v1744 = vrsqrt.pop %v1743
        %v1745 = vmul.f32 %v1737, %v1744
        %v1747 = vlaneseq
        %v1748 = vshrl.u32 %v1747, 7
        %v1749 = vsub.s32 0, %v1748
        %v1750 = vrot.slane %v1731, %v1749
        %v1752 = vmul.f32 %v1745, %v1750
        %v1754 = vlaneseq
        %v1755 = vshrl.u32 %v1754, 7
        %v1756 = vsub.s32 0, %v1755
        %v1757 = vrot.slane %v1732, %v1756
        %v1759 = vadd.f32 %v1752, %v1757
        %v1760 = vld [vmem:[%s10] sm:$0xff]
        %v1761 = vld [vmem:[%s10 + $0x8] sm:$0xff]
        %v1762 = vld [vmem:[%s10 + $0x10] sm:$0xff]
        %v1763 = vld [vmem:[%s10 + $0x18] sm:$0xff]
        %v1764 = vld [vmem:[%s11] sm:$0x1]
        %v1766 = vlaneseq
        %v1767 = vshrl.u32 %v1766, 7
        %v1768 = vsub.s32 0, %v1767
        %v1769 = vrot.slane %v1764, %v1768
        %v1772 = vsel %vm641, %v1759, 0
        %1774 = vmatprep.subr.mxu0 0.0
        %1775 = vmatpush1.msra.mxu0 0.0
        %1776 = vmatprep.subr.mxu0 0.0
        %1777 = vmatpush1.msra.mxu0 0.0
        %1778 = vmatprep.subr.mxu0 0.0
        %1779 = vmatpush1.msra.mxu0 0.0
        %1780 = vmatprep.subr.mxu0 0.0
        %1781 = vmatpush1.msra.mxu0 0.0
        %1782 = vmatprep.subr.mxu0 0.0
        %1783 = vmatpush1.msra.mxu0 0.0
        %1784 = vmatprep.subr.mxu0 0.0
        %1785 = vmatpush1.msra.mxu0 0.0
        %1786 = vmatprep.subr.mxu0 0.0
        %1787 = vmatpush1.msra.mxu0 0.0
        %1788 = vmatprep.subr.mxu0 0.0
        %1789 = vmatpush1.msra.mxu0 0.0
        %1790 = vmatprep.subr.mxu0 0.0
        %1791 = vmatpush1.msra.mxu0 0.0
        %1792 = vmatprep.subr.mxu0 0.0
        %1793 = vmatpush1.msra.mxu0 0.0
        %1794 = vmatprep.subr.mxu0 0.0
        %1795 = vmatpush1.msra.mxu0 0.0
        %1796 = vmatprep.subr.mxu0 0.0
        %1797 = vmatpush1.msra.mxu0 0.0
        %1798 = vmatprep.subr.mxu0 0.0
        %1799 = vmatpush1.msra.mxu0 %v1763
        %1800 = vmatprep.subr.mxu0 0.0
        %1801 = vmatpush1.msra.mxu0 %v1762
        %1802 = vmatprep.subr.mxu0 0.0
        %1803 = vmatpush1.msra.mxu0 %v1761
        %1804 = vmatprep.subr.mxu0 0.0
        %1805 = vmatpush1.msra.mxu0 %v1760
        %1806 = vmatprep.subr.mxu0 0.0
        %1807 = vmatpush2.msra.mxu0 0.0
        %1808 = vmatprep.subr.mxu0 0.0
        %1809 = vmatpush2.msra.mxu0 0.0
        %1810 = vmatprep.subr.mxu0 0.0
        %1811 = vmatpush2.msra.mxu0 0.0
        %1812 = vmatprep.subr.mxu0 0.0
        %1813 = vmatpush2.msra.mxu0 0.0
        %1814 = vmatprep.subr.mxu0 0.0
        %1815 = vmatpush2.msra.mxu0 0.0
        %1816 = vmatprep.subr.mxu0 0.0
        %1817 = vmatpush2.msra.mxu0 0.0
        %1818 = vmatprep.subr.mxu0 0.0
        %1819 = vmatpush2.msra.mxu0 0.0
        %1820 = vmatprep.subr.mxu0 0.0
        %1821 = vmatpush2.msra.mxu0 0.0
        %1822 = vmatprep.subr.mxu0 0.0
        %1823 = vmatpush2.msra.mxu0 0.0
        %1824 = vmatprep.subr.mxu0 0.0
        %1825 = vmatpush2.msra.mxu0 0.0
        %1826 = vmatprep.subr.mxu0 0.0
        %1827 = vmatpush2.msra.mxu0 0.0
        %1828 = vmatprep.subr.mxu0 0.0
        %1829 = vmatpush2.msra.mxu0 0.0
        %1830 = vmatprep.subr.mxu0 0.0
        %1831 = vmatpush2.msra.mxu0 0.0
        %1832 = vmatprep.subr.mxu0 0.0
        %1833 = vmatpush2.msra.mxu0 0.0
        %1834 = vmatprep.subr.mxu0 0.0
        %1835 = vmatpush2.msra.mxu0 0.0
        %1836 = vmatprep.subr.mxu0 0.0
        %1837 = vmatpush2.msra.mxu0 0.0
        %1838 = vmatprep.mubr.f32.mxu0 0.0
        %1839 = vmatmul.mubr.f32.gmra.mxu0 %v1772
        %v1840 = vpop.f32.mrf.mxu0
        %v1841 = vadd.f32 %v1769, %v1840
        %v1842 = vpop.f32.mrf.mxu0
        %1843 = vdwg.mxu0
        %v1844 = vmul.f32 %v1841, %v1841
        %v1845 = vmul.f32 %v1841, %v1844
        %v1846 = vmul.f32 %v1845, 0.044715
        %v1847 = vadd.f32 %v1841, %v1846
        %v1848 = vmul.f32 %v1847, 0.7978846
        %v1849 = vtanh.pop %v1848
        %v1850 = vadd.f32 %v1849, 1.0
        %v1851 = vmul.f32 %v1850, 0.5
        %v1852 = vmul.f32 %v1841, %v1851
        %v1853 = vld [vmem:[%s12] sm:$0xff]
        %v1854 = vld [vmem:[%s12 + $0x8] sm:$0xff]
        %v1855 = vld [vmem:[%s12 + $0x10] sm:$0xff]
        %v1856 = vld [vmem:[%s12 + $0x18] sm:$0xff]
        %v1857 = vld [vmem:[%s12 + $0x20] sm:$0xff]
        %v1858 = vld [vmem:[%s12 + $0x28] sm:$0xff]
        %v1859 = vld [vmem:[%s12 + $0x30] sm:$0xff]
        %v1860 = vld [vmem:[%s12 + $0x38] sm:$0xff]
        %v1861 = vld [vmem:[%s13] sm:$0x1]
        %v1863 = vlaneseq
        %v1864 = vshrl.u32 %v1863, 7
        %v1865 = vsub.s32 0, %v1864
        %v1866 = vrot.slane %v1861, %v1865
        %vm1868 = vcmask 523264
        %v1870 = vsel %vm1868, %v1852, 0
        %1872 = vmatprep.subr.mxu0 0.0
        %1873 = vmatpush1.msra.mxu0 0.0
        %1874 = vmatprep.subr.mxu0 0.0
        %1875 = vmatpush1.msra.mxu0 0.0
        %1876 = vmatprep.subr.mxu0 0.0
        %1877 = vmatpush1.msra.mxu0 0.0
        %1878 = vmatprep.subr.mxu0 0.0
        %1879 = vmatpush1.msra.mxu0 0.0
        %1880 = vmatprep.subr.mxu0 0.0
        %1881 = vmatpush1.msra.mxu0 0.0
        %1882 = vmatprep.subr.mxu0 0.0
        %1883 = vmatpush1.msra.mxu0 0.0
        %1884 = vmatprep.subr.mxu0 0.0
        %1885 = vmatpush1.msra.mxu0 0.0
        %1886 = vmatprep.subr.mxu0 0.0
        %1887 = vmatpush1.msra.mxu0 0.0
        %1888 = vmatprep.subr.mxu0 0.0
        %1889 = vmatpush1.msra.mxu0 %v1860
        %1890 = vmatprep.subr.mxu0 0.0
        %1891 = vmatpush1.msra.mxu0 %v1859
        %1892 = vmatprep.subr.mxu0 0.0
        %1893 = vmatpush1.msra.mxu0 %v1858
        %1894 = vmatprep.subr.mxu0 0.0
        %1895 = vmatpush1.msra.mxu0 %v1857
        %1896 = vmatprep.subr.mxu0 0.0
        %1897 = vmatpush1.msra.mxu0 %v1856
        %1898 = vmatprep.subr.mxu0 0.0
        %1899 = vmatpush1.msra.mxu0 %v1855
        %1900 = vmatprep.subr.mxu0 0.0
        %1901 = vmatpush1.msra.mxu0 %v1854
        %1902 = vmatprep.subr.mxu0 0.0
        %1903 = vmatpush1.msra.mxu0 %v1853
        %1904 = vmatprep.subr.mxu0 0.0
        %1905 = vmatpush2.msra.mxu0 0.0
        %1906 = vmatprep.subr.mxu0 0.0
        %1907 = vmatpush2.msra.mxu0 0.0
        %1908 = vmatprep.subr.mxu0 0.0
        %1909 = vmatpush2.msra.mxu0 0.0
        %1910 = vmatprep.subr.mxu0 0.0
        %1911 = vmatpush2.msra.mxu0 0.0
        %1912 = vmatprep.subr.mxu0 0.0
        %1913 = vmatpush2.msra.mxu0 0.0
        %1914 = vmatprep.subr.mxu0 0.0
        %1915 = vmatpush2.msra.mxu0 0.0
        %1916 = vmatprep.subr.mxu0 0.0
        %1917 = vmatpush2.msra.mxu0 0.0
        %1918 = vmatprep.subr.mxu0 0.0
        %1919 = vmatpush2.msra.mxu0 0.0
        %1920 = vmatprep.subr.mxu0 0.0
        %1921 = vmatpush2.msra.mxu0 0.0
        %1922 = vmatprep.subr.mxu0 0.0
        %1923 = vmatpush2.msra.mxu0 0.0
        %1924 = vmatprep.subr.mxu0 0.0
        %1925 = vmatpush2.msra.mxu0 0.0
        %1926 = vmatprep.subr.mxu0 0.0
        %1927 = vmatpush2.msra.mxu0 0.0
        %1928 = vmatprep.subr.mxu0 0.0
        %1929 = vmatpush2.msra.mxu0 0.0
        %1930 = vmatprep.subr.mxu0 0.0
        %1931 = vmatpush2.msra.mxu0 0.0
        %1932 = vmatprep.subr.mxu0 0.0
        %1933 = vmatpush2.msra.mxu0 0.0
        %1934 = vmatprep.subr.mxu0 0.0
        %1935 = vmatpush2.msra.mxu0 0.0
        %1936 = vmatprep.mubr.f32.mxu0 0.0
        %1937 = vmatmul.mubr.f32.gmra.mxu0 %v1870
        %v1938 = vpop.f32.mrf.mxu0
        %v1939 = vadd.f32 %v1866, %v1938
        %v1940 = vpop.f32.mrf.mxu0
        %1941 = vdwg.mxu0
        %v1942 = vadd.f32 %v1939, %v1759
        %v1943 = vld [vmem:[%s14] sm:$0x1]
        %v1944 = vld [vmem:[%s15] sm:$0x1]
        %v1945 = vsel %vm641, %v1942, 0.0
        %1946 = vadd.xlane.f32.xlu0 %v1945
        %v1947 = vpop.xlane.xlu0 %1946
        %v1948 = vmul.f32 %v1947, %v645
        %v1949 = vsub.f32 %v1942, %v1948
        %v1950 = vmul.f32 %v1949, %v1949
        %v1951 = vsel %vm641, %v1950, 0.0
        %1952 = vadd.xlane.f32.xlu0 %v1951
        %v1953 = vpop.xlane.xlu0 %1952
        %v1954 = vmul.f32 %v1953, %v645
        %v1955 = vadd.f32 %v1954, 1e-12
        %v1956 = vrsqrt.pop %v1955
        %v1957 = vmul.f32 %v1949, %v1956
        %v1959 = vlaneseq
        %v1960 = vshrl.u32 %v1959, 7
        %v1961 = vsub.s32 0, %v1960
        %v1962 = vrot.slane %v1943, %v1961
        %v1964 = vmul.f32 %v1957, %v1962
        %v1966 = vlaneseq
        %v1967 = vshrl.u32 %v1966, 7
        %v1968 = vsub.s32 0, %v1967
        %v1969 = vrot.slane %v1944, %v1968
        %v1971 = vadd.f32 %v1964, %v1969
        %s1972 = scalar_lea.vmem %s4, 32
        %v1973 = vld [vmem:[%s1972] sm:$0xff]
        %v1974 = vld [vmem:[%s1972 + $0x8] sm:$0xff]
        %v1975 = vld [vmem:[%s1972 + $0x10] sm:$0xff]
        %v1976 = vld [vmem:[%s1972 + $0x18] sm:$0xff]
        %s1977 = scalar_lea.vmem %s5, 1
        %v1978 = vld [vmem:[%s1977] sm:$0x1]
        %v1980 = vlaneseq
        %v1981 = vshrl.u32 %v1980, 7
        %v1982 = vsub.s32 0, %v1981
        %v1983 = vrot.slane %v1978, %v1982
        %v1986 = vsel %vm641, %v1971, 0
        %1988 = vmatprep.subr.mxu0 0.0
        %1989 = vmatpush1.msra.mxu0 0.0
        %1990 = vmatprep.subr.mxu0 0.0
        %1991 = vmatpush1.msra.mxu0 0.0
        %1992 = vmatprep.subr.mxu0 0.0
        %1993 = vmatpush1.msra.mxu0 0.0
        %1994 = vmatprep.subr.mxu0 0.0
        %1995 = vmatpush1.msra.mxu0 0.0
        %1996 = vmatprep.subr.mxu0 0.0
        %1997 = vmatpush1.msra.mxu0 0.0
        %1998 = vmatprep.subr.mxu0 0.0
        %1999 = vmatpush1.msra.mxu0 0.0
        %2000 = vmatprep.subr.mxu0 0.0
        %2001 = vmatpush1.msra.mxu0 0.0
        %2002 = vmatprep.subr.mxu0 0.0
        %2003 = vmatpush1.msra.mxu0 0.0
        %2004 = vmatprep.subr.mxu0 0.0
        %2005 = vmatpush1.msra.mxu0 0.0
        %2006 = vmatprep.subr.mxu0 0.0
        %2007 = vmatpush1.msra.mxu0 0.0
        %2008 = vmatprep.subr.mxu0 0.0
        %2009 = vmatpush1.msra.mxu0 0.0
        %2010 = vmatprep.subr.mxu0 0.0
        %2011 = vmatpush1.msra.mxu0 0.0
        %2012 = vmatprep.subr.mxu0 0.0
        %2013 = vmatpush1.msra.mxu0 %v1976
        %2014 = vmatprep.subr.mxu0 0.0
        %2015 = vmatpush1.msra.mxu0 %v1975
        %2016 = vmatprep.subr.mxu0 0.0
        %2017 = vmatpush1.msra.mxu0 %v1974
        %2018 = vmatprep.subr.mxu0 0.0
        %2019 = vmatpush1.msra.mxu0 %v1973
        %2020 = vmatprep.subr.mxu0 0.0
        %2021 = vmatpush2.msra.mxu0 0.0
        %2022 = vmatprep.subr.mxu0 0.0
        %2023 = vmatpush2.msra.mxu0 0.0
        %2024 = vmatprep.subr.mxu0 0.0
        %2025 = vmatpush2.msra.mxu0 0.0
        %2026 = vmatprep.subr.mxu0 0.0
        %2027 = vmatpush2.msra.mxu0 0.0
        %2028 = vmatprep.subr.mxu0 0.0
        %2029 = vmatpush2.msra.mxu0 0.0
        %2030 = vmatprep.subr.mxu0 0.0
        %2031 = vmatpush2.msra.mxu0 0.0
        %2032 = vmatprep.subr.mxu0 0.0
        %2033 = vmatpush2.msra.mxu0 0.0
        %2034 = vmatprep.subr.mxu0 0.0
        %2035 = vmatpush2.msra.mxu0 0.0
        %2036 = vmatprep.subr.mxu0 0.0
        %2037 = vmatpush2.msra.mxu0 0.0
        %2038 = vmatprep.subr.mxu0 0.0
        %2039 = vmatpush2.msra.mxu0 0.0
        %2040 = vmatprep.subr.mxu0 0.0
        %2041 = vmatpush2.msra.mxu0 0.0
        %2042 = vmatprep.subr.mxu0 0.0
        %2043 = vmatpush2.msra.mxu0 0.0
        %2044 = vmatprep.subr.mxu0 0.0
        %2045 = vmatpush2.msra.mxu0 0.0
        %2046 = vmatprep.subr.mxu0 0.0
        %2047 = vmatpush2.msra.mxu0 0.0
        %2048 = vmatprep.subr.mxu0 0.0
        %2049 = vmatpush2.msra.mxu0 0.0
        %2050 = vmatprep.subr.mxu0 0.0
        %2051 = vmatpush2.msra.mxu0 0.0
        %2052 = vmatprep.mubr.f32.mxu0 0.0
        %2053 = vmatmul.mubr.f32.gmra.mxu0 %v1986
        %v2054 = vpop.f32.mrf.mxu0
        %v2055 = vadd.f32 %v1983, %v2054
        %v2056 = vpop.f32.mrf.mxu0
        %2057 = vdwg.mxu0
        %s2058 = scalar_lea.vmem %s6, 32
        %v2059 = vld [vmem:[%s2058] sm:$0xff]
        %v2060 = vld [vmem:[%s2058 + $0x8] sm:$0xff]
        %v2061 = vld [vmem:[%s2058 + $0x10] sm:$0xff]
        %v2062 = vld [vmem:[%s2058 + $0x18] sm:$0xff]
        %s2063 = scalar_lea.vmem %s7, 1
        %v2064 = vld [vmem:[%s2063] sm:$0x1]
        %2066 = vrot.lane.b32.xlu0 %v2055, 96
        %v2067 = vpop.permute.xlu0 %2066
        %v2068 = vsel %vm771, %v2055, 0
        %v2070 = vsel %vm771, %v2067, 0
        %2072 = vmatprep.subr.mxu0 0.0
        %2073 = vmatpush1.xpose.msra.mxu0 0.0
        %2074 = vmatprep.subr.mxu0 0.0
        %2075 = vmatpush1.xpose.msra.mxu0 0.0
        %2076 = vmatprep.subr.mxu0 0.0
        %2077 = vmatpush1.xpose.msra.mxu0 0.0
        %2078 = vmatprep.subr.mxu0 0.0
        %2079 = vmatpush1.xpose.msra.mxu0 0.0
        %2080 = vmatprep.subr.mxu0 0.0
        %2081 = vmatpush1.xpose.msra.mxu0 0.0
        %2082 = vmatprep.subr.mxu0 0.0
        %2083 = vmatpush1.xpose.msra.mxu0 0.0
        %2084 = vmatprep.subr.mxu0 0.0
        %2085 = vmatpush1.xpose.msra.mxu0 0.0
        %2086 = vmatprep.subr.mxu0 0.0
        %2087 = vmatpush1.xpose.msra.mxu0 0.0
        %2088 = vmatprep.subr.mxu0 0.0
        %2089 = vmatpush1.xpose.msra.mxu0 0.0
        %2090 = vmatprep.subr.mxu0 0.0
        %2091 = vmatpush1.xpose.msra.mxu0 0.0
        %2092 = vmatprep.subr.mxu0 0.0
        %2093 = vmatpush1.xpose.msra.mxu0 0.0
        %2094 = vmatprep.subr.mxu0 0.0
        %2095 = vmatpush1.xpose.msra.mxu0 0.0
        %2096 = vmatprep.subr.mxu0 0.0
        %2097 = vmatpush1.xpose.msra.mxu0 0.0
        %2098 = vmatprep.subr.mxu0 0.0
        %2099 = vmatpush1.xpose.msra.mxu0 0.0
        %2100 = vmatprep.subr.mxu0 0.0
        %2101 = vmatpush1.xpose.msra.mxu0 0.0
        %2102 = vmatprep.subr.mxu0 0.0
        %2103 = vmatpush1.xpose.msra.mxu0 %v2070
        %2104 = vmatprep.subr.mxu0 0.0
        %2105 = vmatpush2.xpose.msra.mxu0 0.0
        %2106 = vmatprep.subr.mxu0 0.0
        %2107 = vmatpush2.xpose.msra.mxu0 0.0
        %2108 = vmatprep.subr.mxu0 0.0
        %2109 = vmatpush2.xpose.msra.mxu0 0.0
        %2110 = vmatprep.subr.mxu0 0.0
        %2111 = vmatpush2.xpose.msra.mxu0 0.0
        %2112 = vmatprep.subr.mxu0 0.0
        %2113 = vmatpush2.xpose.msra.mxu0 0.0
        %2114 = vmatprep.subr.mxu0 0.0
        %2115 = vmatpush2.xpose.msra.mxu0 0.0
        %2116 = vmatprep.subr.mxu0 0.0
        %2117 = vmatpush2.xpose.msra.mxu0 0.0
        %2118 = vmatprep.subr.mxu0 0.0
        %2119 = vmatpush2.xpose.msra.mxu0 0.0
        %2120 = vmatprep.subr.mxu0 0.0
        %2121 = vmatpush2.xpose.msra.mxu0 0.0
        %2122 = vmatprep.subr.mxu0 0.0
        %2123 = vmatpush2.xpose.msra.mxu0 0.0
        %2124 = vmatprep.subr.mxu0 0.0
        %2125 = vmatpush2.xpose.msra.mxu0 0.0
        %2126 = vmatprep.subr.mxu0 0.0
        %2127 = vmatpush2.xpose.msra.mxu0 0.0
        %2128 = vmatprep.subr.mxu0 0.0
        %2129 = vmatpush2.xpose.msra.mxu0 0.0
        %2130 = vmatprep.subr.mxu0 0.0
        %2131 = vmatpush2.xpose.msra.mxu0 0.0
        %2132 = vmatprep.subr.mxu0 0.0
        %2133 = vmatpush2.xpose.msra.mxu0 0.0
        %2134 = vmatprep.subr.mxu0 0.0
        %2135 = vmatpush2.xpose.msra.mxu0 0.0
        %2136 = vmatprep.mubr.f32.mxu0 0.0
        %2137 = vmatmul.mubr.f32.gmra.mxu0 %v2068
        %v2138 = vpop.f32.mrf.mxu0
        %v2139 = vadd.f32 %v766, %v2138
        %v2140 = vpop.f32.mrf.mxu0
        %2141 = vdwg.mxu0
        %v2142 = vsel %vm771, %v2139, -inf
        %2143 = vmax.xlane.f32.xlu0 %v2142
        %v2144 = vpop.xlane.xlu0 %2143
        %v2145 = vsub.f32 %v2139, %v2144
        %v2146 = vmul.f32 %v2145, 1.442695
        %v2147 = vpow.pop %v2146
        %v2148 = vsel %vm771, %v2147, 0.0
        %2149 = vadd.xlane.f32.xlu0 %v2148
        %v2150 = vpop.xlane.xlu0 %2149
        %v2151 = vrcp.pop %v2150
        %v2152 = vmul.f32 %v2147, %v2151
        %2153 = vrot.lane.b32.xlu0 %v2055, 64
        %v2154 = vpop.permute.xlu0 %2153
        %v2157 = vsel %vm771, %v2152, 0
        %2159 = vmatprep.subr.mxu0 0.0
        %2160 = vmatpush1.msra.mxu0 0.0
        %2161 = vmatprep.subr.mxu0 0.0
        %2162 = vmatpush1.msra.mxu0 0.0
        %2163 = vmatprep.subr.mxu0 0.0
        %2164 = vmatpush1.msra.mxu0 0.0
        %2165 = vmatprep.subr.mxu0 0.0
        %2166 = vmatpush1.msra.mxu0 0.0
        %2167 = vmatprep.subr.mxu0 0.0
        %2168 = vmatpush1.msra.mxu0 0.0
        %2169 = vmatprep.subr.mxu0 0.0
        %2170 = vmatpush1.msra.mxu0 0.0
        %2171 = vmatprep.subr.mxu0 0.0
        %2172 = vmatpush1.msra.mxu0 0.0
        %2173 = vmatprep.subr.mxu0 0.0
        %2174 = vmatpush1.msra.mxu0 0.0
        %2175 = vmatprep.subr.mxu0 0.0
        %2176 = vmatpush1.msra.mxu0 0.0
        %2177 = vmatprep.subr.mxu0 0.0
        %2178 = vmatpush1.msra.mxu0 0.0
        %2179 = vmatprep.subr.mxu0 0.0
        %2180 = vmatpush1.msra.mxu0 0.0
        %2181 = vmatprep.subr.mxu0 0.0
        %2182 = vmatpush1.msra.mxu0 0.0
        %2183 = vmatprep.subr.mxu0 0.0
        %2184 = vmatpush1.msra.mxu0 0.0
        %2185 = vmatprep.subr.mxu0 0.0
        %2186 = vmatpush1.msra.mxu0 0.0
        %2187 = vmatprep.subr.mxu0 0.0
        %2188 = vmatpush1.msra.mxu0 0.0
        %2189 = vmatprep.subr.mxu0 0.0
        %2190 = vmatpush1.msra.mxu0 %v2154
        %2191 = vmatprep.subr.mxu0 0.0
        %2192 = vmatpush2.msra.mxu0 0.0
        %2193 = vmatprep.subr.mxu0 0.0
        %2194 = vmatpush2.msra.mxu0 0.0
        %2195 = vmatprep.subr.mxu0 0.0
        %2196 = vmatpush2.msra.mxu0 0.0
        %2197 = vmatprep.subr.mxu0 0.0
        %2198 = vmatpush2.msra.mxu0 0.0
        %2199 = vmatprep.subr.mxu0 0.0
        %2200 = vmatpush2.msra.mxu0 0.0
        %2201 = vmatprep.subr.mxu0 0.0
        %2202 = vmatpush2.msra.mxu0 0.0
        %2203 = vmatprep.subr.mxu0 0.0
        %2204 = vmatpush2.msra.mxu0 0.0
        %2205 = vmatprep.subr.mxu0 0.0
        %2206 = vmatpush2.msra.mxu0 0.0
        %2207 = vmatprep.subr.mxu0 0.0
        %2208 = vmatpush2.msra.mxu0 0.0
        %2209 = vmatprep.subr.mxu0 0.0
        %2210 = vmatpush2.msra.mxu0 0.0
        %2211 = vmatprep.subr.mxu0 0.0
        %2212 = vmatpush2.msra.mxu0 0.0
        %2213 = vmatprep.subr.mxu0 0.0
        %2214 = vmatpush2.msra.mxu0 0.0
        %2215 = vmatprep.subr.mxu0 0.0
        %2216 = vmatpush2.msra.mxu0 0.0
        %2217 = vmatprep.subr.mxu0 0.0
        %2218 = vmatpush2.msra.mxu0 0.0
        %2219 = vmatprep.subr.mxu0 0.0
        %2220 = vmatpush2.msra.mxu0 0.0
        %2221 = vmatprep.subr.mxu0 0.0
        %2222 = vmatpush2.msra.mxu0 0.0
        %2223 = vmatprep.mubr.f32.mxu0 0.0
        %2224 = vmatmul.mubr.f32.gmra.mxu0 %v2157
        %v2225 = vpop.f32.mrf.mxu0
        %v2226 = vadd.f32 0.0, %v2225
        %v2227 = vpop.f32.mrf.mxu0
        %2228 = vdwg.mxu0
        %v2230 = vsel %vm771, %v2226, 0
        %2232 = vmatprep.subr.mxu0 0.0
        %2233 = vmatpush1.msra.mxu0 0.0
        %2234 = vmatprep.subr.mxu0 0.0
        %2235 = vmatpush1.msra.mxu0 0.0
        %2236 = vmatprep.subr.mxu0 0.0
        %2237 = vmatpush1.msra.mxu0 0.0
        %2238 = vmatprep.subr.mxu0 0.0
        %2239 = vmatpush1.msra.mxu0 0.0
        %2240 = vmatprep.subr.mxu0 0.0
        %2241 = vmatpush1.msra.mxu0 0.0
        %2242 = vmatprep.subr.mxu0 0.0
        %2243 = vmatpush1.msra.mxu0 0.0
        %2244 = vmatprep.subr.mxu0 0.0
        %2245 = vmatpush1.msra.mxu0 0.0
        %2246 = vmatprep.subr.mxu0 0.0
        %2247 = vmatpush1.msra.mxu0 0.0
        %2248 = vmatprep.subr.mxu0 0.0
        %2249 = vmatpush1.msra.mxu0 0.0
        %2250 = vmatprep.subr.mxu0 0.0
        %2251 = vmatpush1.msra.mxu0 0.0
        %2252 = vmatprep.subr.mxu0 0.0
        %2253 = vmatpush1.msra.mxu0 0.0
        %2254 = vmatprep.subr.mxu0 0.0
        %2255 = vmatpush1.msra.mxu0 0.0
        %2256 = vmatprep.subr.mxu0 0.0
        %2257 = vmatpush1.msra.mxu0 0.0
        %2258 = vmatprep.subr.mxu0 0.0
        %2259 = vmatpush1.msra.mxu0 0.0
        %2260 = vmatprep.subr.mxu0 0.0
        %2261 = vmatpush1.msra.mxu0 0.0
        %2262 = vmatprep.subr.mxu0 0.0
        %2263 = vmatpush1.msra.mxu0 %v2059
        %2264 = vmatprep.subr.mxu0 0.0
        %2265 = vmatpush2.msra.mxu0 0.0
        %2266 = vmatprep.subr.mxu0 0.0
        %2267 = vmatpush2.msra.mxu0 0.0
        %2268 = vmatprep.subr.mxu0 0.0
        %2269 = vmatpush2.msra.mxu0 0.0
        %2270 = vmatprep.subr.mxu0 0.0
        %2271 = vmatpush2.msra.mxu0 0.0
        %2272 = vmatprep.subr.mxu0 0.0
        %2273 = vmatpush2.msra.mxu0 0.0
        %2274 = vmatprep.subr.mxu0 0.0
        %2275 = vmatpush2.msra.mxu0 0.0
        %2276 = vmatprep.subr.mxu0 0.0
        %2277 = vmatpush2.msra.mxu0 0.0
        %2278 = vmatprep.subr.mxu0 0.0
        %2279 = vmatpush2.msra.mxu0 0.0
        %2280 = vmatprep.subr.mxu0 0.0
        %2281 = vmatpush2.msra.mxu0 0.0
        %2282 = vmatprep.subr.mxu0 0.0
        %2283 = vmatpush2.msra.mxu0 0.0
        %2284 = vmatprep.subr.mxu0 0.0
        %2285 = vmatpush2.msra.mxu0 0.0
        %2286 = vmatprep.subr.mxu0 0.0
        %2287 = vmatpush2.msra.mxu0 0.0
        %2288 = vmatprep.subr.mxu0 0.0
        %2289 = vmatpush2.msra.mxu0 0.0
        %2290 = vmatprep.subr.mxu0 0.0
        %2291 = vmatpush2.msra.mxu0 0.0
        %2292 = vmatprep.subr.mxu0 0.0
        %2293 = vmatpush2.msra.mxu0 0.0
        %2294 = vmatprep.subr.mxu0 0.0
        %2295 = vmatpush2.msra.mxu0 0.0
        %2296 = vmatprep.mubr.f32.mxu0 0.0
        %2297 = vmatmul.mubr.f32.gmra.mxu0 %v2230
        %v2298 = vpop.f32.mrf.mxu0
        %v2299 = vadd.f32 0.0, %v2298
        %v2300 = vpop.f32.mrf.mxu0
        %2301 = vdwg.mxu0
        %v2303 = vlaneseq
        %v2304 = vshrl.u32 %v2303, 7
        %v2305 = vsub.s32 0, %v2304
        %v2306 = vrot.slane %v2064, %v2305
        %v2308 = vadd.f32 %v2306, %v2299
        %2309 = vrot.lane.b32.xlu0 %v2055, 120
        %v2310 = vpop.permute.xlu0 %2309
        %2311 = vrot.lane.b32.xlu0 %v2055, 88
        %v2312 = vpop.permute.xlu0 %2311
        %v2313 = vsel %vm771, %v2310, 0
        %v2315 = vsel %vm771, %v2312, 0
        %2317 = vmatprep.subr.mxu0 0.0
        %2318 = vmatpush1.xpose.msra.mxu0 0.0
        %2319 = vmatprep.subr.mxu0 0.0
        %2320 = vmatpush1.xpose.msra.mxu0 0.0
        %2321 = vmatprep.subr.mxu0 0.0
        %2322 = vmatpush1.xpose.msra.mxu0 0.0
        %2323 = vmatprep.subr.mxu0 0.0
        %2324 = vmatpush1.xpose.msra.mxu0 0.0
        %2325 = vmatprep.subr.mxu0 0.0
        %2326 = vmatpush1.xpose.msra.mxu0 0.0
        %2327 = vmatprep.subr.mxu0 0.0
        %2328 = vmatpush1.xpose.msra.mxu0 0.0
        %2329 = vmatprep.subr.mxu0 0.0
        %2330 = vmatpush1.xpose.msra.mxu0 0.0
        %2331 = vmatprep.subr.mxu0 0.0
        %2332 = vmatpush1.xpose.msra.mxu0 0.0
        %2333 = vmatprep.subr.mxu0 0.0
        %2334 = vmatpush1.xpose.msra.mxu0 0.0
        %2335 = vmatprep.subr.mxu0 0.0
        %2336 = vmatpush1.xpose.msra.mxu0 0.0
        %2337 = vmatprep.subr.mxu0 0.0
        %2338 = vmatpush1.xpose.msra.mxu0 0.0
        %2339 = vmatprep.subr.mxu0 0.0
        %2340 = vmatpush1.xpose.msra.mxu0 0.0
        %2341 = vmatprep.subr.mxu0 0.0
        %2342 = vmatpush1.xpose.msra.mxu0 0.0
        %2343 = vmatprep.subr.mxu0 0.0
        %2344 = vmatpush1.xpose.msra.mxu0 0.0
        %2345 = vmatprep.subr.mxu0 0.0
        %2346 = vmatpush1.xpose.msra.mxu0 0.0
        %2347 = vmatprep.subr.mxu0 0.0
        %2348 = vmatpush1.xpose.msra.mxu0 %v2315
        %2349 = vmatprep.subr.mxu0 0.0
        %2350 = vmatpush2.xpose.msra.mxu0 0.0
        %2351 = vmatprep.subr.mxu0 0.0
        %2352 = vmatpush2.xpose.msra.mxu0 0.0
        %2353 = vmatprep.subr.mxu0 0.0
        %2354 = vmatpush2.xpose.msra.mxu0 0.0
        %2355 = vmatprep.subr.mxu0 0.0
        %2356 = vmatpush2.xpose.msra.mxu0 0.0
        %2357 = vmatprep.subr.mxu0 0.0
        %2358 = vmatpush2.xpose.msra.mxu0 0.0
        %2359 = vmatprep.subr.mxu0 0.0
        %2360 = vmatpush2.xpose.msra.mxu0 0.0
        %2361 = vmatprep.subr.mxu0 0.0
        %2362 = vmatpush2.xpose.msra.mxu0 0.0
        %2363 = vmatprep.subr.mxu0 0.0
        %2364 = vmatpush2.xpose.msra.mxu0 0.0
        %2365 = vmatprep.subr.mxu0 0.0
        %2366 = vmatpush2.xpose.msra.mxu0 0.0
        %2367 = vmatprep.subr.mxu0 0.0
        %2368 = vmatpush2.xpose.msra.mxu0 0.0
        %2369 = vmatprep.subr.mxu0 0.0
        %2370 = vmatpush2.xpose.msra.mxu0 0.0
        %2371 = vmatprep.subr.mxu0 0.0
        %2372 = vmatpush2.xpose.msra.mxu0 0.0
        %2373 = vmatprep.subr.mxu0 0.0
        %2374 = vmatpush2.xpose.msra.mxu0 0.0
        %2375 = vmatprep.subr.mxu0 0.0
        %2376 = vmatpush2.xpose.msra.mxu0 0.0
        %2377 = vmatprep.subr.mxu0 0.0
        %2378 = vmatpush2.xpose.msra.mxu0 0.0
        %2379 = vmatprep.subr.mxu0 0.0
        %2380 = vmatpush2.xpose.msra.mxu0 0.0
        %2381 = vmatprep.mubr.f32.mxu0 0.0
        %2382 = vmatmul.mubr.f32.gmra.mxu0 %v2313
        %v2383 = vpop.f32.mrf.mxu0
        %v2384 = vadd.f32 %v766, %v2383
        %v2385 = vpop.f32.mrf.mxu0
        %2386 = vdwg.mxu0
        %v2387 = vsel %vm771, %v2384, -inf
        %2388 = vmax.xlane.f32.xlu0 %v2387
        %v2389 = vpop.xlane.xlu0 %2388
        %v2390 = vsub.f32 %v2384, %v2389
        %v2391 = vmul.f32 %v2390, 1.442695
        %v2392 = vpow.pop %v2391
        %v2393 = vsel %vm771, %v2392, 0.0
        %2394 = vadd.xlane.f32.xlu0 %v2393
        %v2395 = vpop.xlane.xlu0 %2394
        %v2396 = vrcp.pop %v2395
        %v2397 = vmul.f32 %v2392, %v2396
        %2398 = vrot.lane.b32.xlu0 %v2055, 56
        %v2399 = vpop.permute.xlu0 %2398
        %v2402 = vsel %vm771, %v2397, 0
        %2404 = vmatprep.subr.mxu0 0.0
        %2405 = vmatpush1.msra.mxu0 0.0
        %2406 = vmatprep.subr.mxu0 0.0
        %2407 = vmatpush1.msra.mxu0 0.0
        %2408 = vmatprep.subr.mxu0 0.0
        %2409 = vmatpush1.msra.mxu0 0.0
        %2410 = vmatprep.subr.mxu0 0.0
        %2411 = vmatpush1.msra.mxu0 0.0
        %2412 = vmatprep.subr.mxu0 0.0
        %2413 = vmatpush1.msra.mxu0 0.0
        %2414 = vmatprep.subr.mxu0 0.0
        %2415 = vmatpush1.msra.mxu0 0.0
        %2416 = vmatprep.subr.mxu0 0.0
        %2417 = vmatpush1.msra.mxu0 0.0
        %2418 = vmatprep.subr.mxu0 0.0
        %2419 = vmatpush1.msra.mxu0 0.0
        %2420 = vmatprep.subr.mxu0 0.0
        %2421 = vmatpush1.msra.mxu0 0.0
        %2422 = vmatprep.subr.mxu0 0.0
        %2423 = vmatpush1.msra.mxu0 0.0
        %2424 = vmatprep.subr.mxu0 0.0
        %2425 = vmatpush1.msra.mxu0 0.0
        %2426 = vmatprep.subr.mxu0 0.0
        %2427 = vmatpush1.msra.mxu0 0.0
        %2428 = vmatprep.subr.mxu0 0.0
        %2429 = vmatpush1.msra.mxu0 0.0
        %2430 = vmatprep.subr.mxu0 0.0
        %2431 = vmatpush1.msra.mxu0 0.0
        %2432 = vmatprep.subr.mxu0 0.0
        %2433 = vmatpush1.msra.mxu0 0.0
        %2434 = vmatprep.subr.mxu0 0.0
        %2435 = vmatpush1.msra.mxu0 %v2399
        %2436 = vmatprep.subr.mxu0 0.0
        %2437 = vmatpush2.msra.mxu0 0.0
        %2438 = vmatprep.subr.mxu0 0.0
        %2439 = vmatpush2.msra.mxu0 0.0
        %2440 = vmatprep.subr.mxu0 0.0
        %2441 = vmatpush2.msra.mxu0 0.0
        %2442 = vmatprep.subr.mxu0 0.0
        %2443 = vmatpush2.msra.mxu0 0.0
        %2444 = vmatprep.subr.mxu0 0.0
        %2445 = vmatpush2.msra.mxu0 0.0
        %2446 = vmatprep.subr.mxu0 0.0
        %2447 = vmatpush2.msra.mxu0 0.0
        %2448 = vmatprep.subr.mxu0 0.0
        %2449 = vmatpush2.msra.mxu0 0.0
        %2450 = vmatprep.subr.mxu0 0.0
        %2451 = vmatpush2.msra.mxu0 0.0
        %2452 = vmatprep.subr.mxu0 0.0
        %2453 = vmatpush2.msra.mxu0 0.0
        %2454 = vmatprep.subr.mxu0 0.0
        %2455 = vmatpush2.msra.mxu0 0.0
        %2456 = vmatprep.subr.mxu0 0.0
        %2457 = vmatpush2.msra.mxu0 0.0
        %2458 = vmatprep.subr.mxu0 0.0
        %2459 = vmatpush2.msra.mxu0 0.0
        %2460 = vmatprep.subr.mxu0 0.0
        %2461 = vmatpush2.msra.mxu0 0.0
        %2462 = vmatprep.subr.mxu0 0.0
        %2463 = vmatpush2.msra.mxu0 0.0
        %2464 = vmatprep.subr.mxu0 0.0
        %2465 = vmatpush2.msra.mxu0 0.0
        %2466 = vmatprep.subr.mxu0 0.0
        %2467 = vmatpush2.msra.mxu0 0.0
        %2468 = vmatprep.mubr.f32.mxu0 0.0
        %2469 = vmatmul.mubr.f32.gmra.mxu0 %v2402
        %v2470 = vpop.f32.mrf.mxu0
        %v2471 = vadd.f32 0.0, %v2470
        %v2472 = vpop.f32.mrf.mxu0
        %2473 = vdwg.mxu0
        %v2475 = vsel %vm771, %v2471, 0
        %2477 = vmatprep.subr.mxu0 0.0
        %2478 = vmatpush1.msra.mxu0 0.0
        %2479 = vmatprep.subr.mxu0 0.0
        %2480 = vmatpush1.msra.mxu0 0.0
        %2481 = vmatprep.subr.mxu0 0.0
        %2482 = vmatpush1.msra.mxu0 0.0
        %2483 = vmatprep.subr.mxu0 0.0
        %2484 = vmatpush1.msra.mxu0 0.0
        %2485 = vmatprep.subr.mxu0 0.0
        %2486 = vmatpush1.msra.mxu0 0.0
        %2487 = vmatprep.subr.mxu0 0.0
        %2488 = vmatpush1.msra.mxu0 0.0
        %2489 = vmatprep.subr.mxu0 0.0
        %2490 = vmatpush1.msra.mxu0 0.0
        %2491 = vmatprep.subr.mxu0 0.0
        %2492 = vmatpush1.msra.mxu0 0.0
        %2493 = vmatprep.subr.mxu0 0.0
        %2494 = vmatpush1.msra.mxu0 0.0
        %2495 = vmatprep.subr.mxu0 0.0
        %2496 = vmatpush1.msra.mxu0 0.0
        %2497 = vmatprep.subr.mxu0 0.0
        %2498 = vmatpush1.msra.mxu0 0.0
        %2499 = vmatprep.subr.mxu0 0.0
        %2500 = vmatpush1.msra.mxu0 0.0
        %2501 = vmatprep.subr.mxu0 0.0
        %2502 = vmatpush1.msra.mxu0 0.0
        %2503 = vmatprep.subr.mxu0 0.0
        %2504 = vmatpush1.msra.mxu0 0.0
        %2505 = vmatprep.subr.mxu0 0.0
        %2506 = vmatpush1.msra.mxu0 0.0
        %2507 = vmatprep.subr.mxu0 0.0
        %2508 = vmatpush1.msra.mxu0 %v2060
        %2509 = vmatprep.subr.mxu0 0.0
        %2510 = vmatpush2.msra.mxu0 0.0
        %2511 = vmatprep.subr.mxu0 0.0
        %2512 = vmatpush2.msra.mxu0 0.0
        %2513 = vmatprep.subr.mxu0 0.0
        %2514 = vmatpush2.msra.mxu0 0.0
        %2515 = vmatprep.subr.mxu0 0.0
        %2516 = vmatpush2.msra.mxu0 0.0
        %2517 = vmatprep.subr.mxu0 0.0
        %2518 = vmatpush2.msra.mxu0 0.0
        %2519 = vmatprep.subr.mxu0 0.0
        %2520 = vmatpush2.msra.mxu0 0.0
        %2521 = vmatprep.subr.mxu0 0.0
        %2522 = vmatpush2.msra.mxu0 0.0
        %2523 = vmatprep.subr.mxu0 0.0
        %2524 = vmatpush2.msra.mxu0 0.0
        %2525 = vmatprep.subr.mxu0 0.0
        %2526 = vmatpush2.msra.mxu0 0.0
        %2527 = vmatprep.subr.mxu0 0.0
        %2528 = vmatpush2.msra.mxu0 0.0
        %2529 = vmatprep.subr.mxu0 0.0
        %2530 = vmatpush2.msra.mxu0 0.0
        %2531 = vmatprep.subr.mxu0 0.0
        %2532 = vmatpush2.msra.mxu0 0.0
        %2533 = vmatprep.subr.mxu0 0.0
        %2534 = vmatpush2.msra.mxu0 0.0
        %2535 = vmatprep.subr.mxu0 0.0
        %2536 = vmatpush2.msra.mxu0 0.0
        %2537 = vmatprep.subr.mxu0 0.0
        %2538 = vmatpush2.msra.mxu0 0.0
        %2539 = vmatprep.subr.mxu0 0.0
        %2540 = vmatpush2.msra.mxu0 0.0
        %2541 = vmatprep.mubr.f32.mxu0 0.0
        %2542 = vmatmul.mubr.f32.gmra.mxu0 %v2475
        %v2543 = vpop.f32.mrf.mxu0
        %v2544 = vadd.f32 0.0, %v2543
        %v2545 = vpop.f32.mrf.mxu0
        %2546 = vdwg.mxu0
        %v2547 = vadd.f32 %v2308, %v2544
        %2548 = vrot.lane.b32.xlu0 %v2055, 112
        %v2549 = vpop.permute.xlu0 %2548
        %2550 = vrot.lane.b32.xlu0 %v2055, 80
        %v2551 = vpop.permute.xlu0 %2550
        %v2552 = vsel %vm771, %v2549, 0
        %v2554 = vsel %vm771, %v2551, 0
        %2556 = vmatprep.subr.mxu0 0.0
        %2557 = vmatpush1.xpose.msra.mxu0 0.0
        %2558 = vmatprep.subr.mxu0 0.0
        %2559 = vmatpush1.xpose.msra.mxu0 0.0
        %2560 = vmatprep.subr.mxu0 0.0
        %2561 = vmatpush1.xpose.msra.mxu0 0.0
        %2562 = vmatprep.subr.mxu0 0.0
        %2563 = vmatpush1.xpose.msra.mxu0 0.0
        %2564 = vmatprep.subr.mxu0 0.0
        %2565 = vmatpush1.xpose.msra.mxu0 0.0
        %2566 = vmatprep.subr.mxu0 0.0
        %2567 = vmatpush1.xpose.msra.mxu0 0.0
        %2568 = vmatprep.subr.mxu0 0.0
        %2569 = vmatpush1.xpose.msra.mxu0 0.0
        %2570 = vmatprep.subr.mxu0 0.0
        %2571 = vmatpush1.xpose.msra.mxu0 0.0
        %2572 = vmatprep.subr.mxu0 0.0
        %2573 = vmatpush1.xpose.msra.mxu0 0.0
        %2574 = vmatprep.subr.mxu0 0.0
        %2575 = vmatpush1.xpose.msra.mxu0 0.0
        %2576 = vmatprep.subr.mxu0 0.0
        %2577 = vmatpush1.xpose.msra.mxu0 0.0
        %2578 = vmatprep.subr.mxu0 0.0
        %2579 = vmatpush1.xpose.msra.mxu0 0.0
        %2580 = vmatprep.subr.mxu0 0.0
        %2581 = vmatpush1.xpose.msra.mxu0 0.0
        %2582 = vmatprep.subr.mxu0 0.0
        %2583 = vmatpush1.xpose.msra.mxu0 0.0
        %2584 = vmatprep.subr.mxu0 0.0
        %2585 = vmatpush1.xpose.msra.mxu0 0.0
        %2586 = vmatprep.subr.mxu0 0.0
        %2587 = vmatpush1.xpose.msra.mxu0 %v2554
        %2588 = vmatprep.subr.mxu0 0.0
        %2589 = vmatpush2.xpose.msra.mxu0 0.0
        %2590 = vmatprep.subr.mxu0 0.0
        %2591 = vmatpush2.xpose.msra.mxu0 0.0
        %2592 = vmatprep.subr.mxu0 0.0
        %2593 = vmatpush2.xpose.msra.mxu0 0.0
        %2594 = vmatprep.subr.mxu0 0.0
        %2595 = vmatpush2.xpose.msra.mxu0 0.0
        %2596 = vmatprep.subr.mxu0 0.0
        %2597 = vmatpush2.xpose.msra.mxu0 0.0
        %2598 = vmatprep.subr.mxu0 0.0
        %2599 = vmatpush2.xpose.msra.mxu0 0.0
        %2600 = vmatprep.subr.mxu0 0.0
        %2601 = vmatpush2.xpose.msra.mxu0 0.0
        %2602 = vmatprep.subr.mxu0 0.0
        %2603 = vmatpush2.xpose.msra.mxu0 0.0
        %2604 = vmatprep.subr.mxu0 0.0
        %2605 = vmatpush2.xpose.msra.mxu0 0.0
        %2606 = vmatprep.subr.mxu0 0.0
        %2607 = vmatpush2.xpose.msra.mxu0 0.0
        %2608 = vmatprep.subr.mxu0 0.0
        %2609 = vmatpush2.xpose.msra.mxu0 0.0
        %2610 = vmatprep.subr.mxu0 0.0
        %2611 = vmatpush2.xpose.msra.mxu0 0.0
        %2612 = vmatprep.subr.mxu0 0.0
        %2613 = vmatpush2.xpose.msra.mxu0 0.0
        %2614 = vmatprep.subr.mxu0 0.0
        %2615 = vmatpush2.xpose.msra.mxu0 0.0
        %2616 = vmatprep.subr.mxu0 0.0
        %2617 = vmatpush2.xpose.msra.mxu0 0.0
        %2618 = vmatprep.subr.mxu0 0.0
        %2619 = vmatpush2.xpose.msra.mxu0 0.0
        %2620 = vmatprep.mubr.f32.mxu0 0.0
        %2621 = vmatmul.mubr.f32.gmra.mxu0 %v2552
        %v2622 = vpop.f32.mrf.mxu0
        %v2623 = vadd.f32 %v766, %v2622
        %v2624 = vpop.f32.mrf.mxu0
        %2625 = vdwg.mxu0
        %v2626 = vsel %vm771, %v2623, -inf
        %2627 = vmax.xlane.f32.xlu0 %v2626
        %v2628 = vpop.xlane.xlu0 %2627
        %v2629 = vsub.f32 %v2623, %v2628
        %v2630 = vmul.f32 %v2629, 1.442695
        %v2631 = vpow.pop %v2630
        %v2632 = vsel %vm771, %v2631, 0.0
        %2633 = vadd.xlane.f32.xlu0 %v2632
        %v2634 = vpop.xlane.xlu0 %2633
        %v2635 = vrcp.pop %v2634
        %v2636 = vmul.f32 %v2631, %v2635
        %2637 = vrot.lane.b32.xlu0 %v2055, 48
        %v2638 = vpop.permute.xlu0 %2637
        %v2641 = vsel %vm771, %v2636, 0
        %2643 = vmatprep.subr.mxu0 0.0
        %2644 = vmatpush1.msra.mxu0 0.0
        %2645 = vmatprep.subr.mxu0 0.0
        %2646 = vmatpush1.msra.mxu0 0.0
        %2647 = vmatprep.subr.mxu0 0.0
        %2648 = vmatpush1.msra.mxu0 0.0
        %2649 = vmatprep.subr.mxu0 0.0
        %2650 = vmatpush1.msra.mxu0 0.0
        %2651 = vmatprep.subr.mxu0 0.0
        %2652 = vmatpush1.msra.mxu0 0.0
        %2653 = vmatprep.subr.mxu0 0.0
        %2654 = vmatpush1.msra.mxu0 0.0
        %2655 = vmatprep.subr.mxu0 0.0
        %2656 = vmatpush1.msra.mxu0 0.0
        %2657 = vmatprep.subr.mxu0 0.0
        %2658 = vmatpush1.msra.mxu0 0.0
        %2659 = vmatprep.subr.mxu0 0.0
        %2660 = vmatpush1.msra.mxu0 0.0
        %2661 = vmatprep.subr.mxu0 0.0
        %2662 = vmatpush1.msra.mxu0 0.0
        %2663 = vmatprep.subr.mxu0 0.0
        %2664 = vmatpush1.msra.mxu0 0.0
        %2665 = vmatprep.subr.mxu0 0.0
        %2666 = vmatpush1.msra.mxu0 0.0
        %2667 = vmatprep.subr.mxu0 0.0
        %2668 = vmatpush1.msra.mxu0 0.0
        %2669 = vmatprep.subr.mxu0 0.0
        %2670 = vmatpush1.msra.mxu0 0.0
        %2671 = vmatprep.subr.mxu0 0.0
        %2672 = vmatpush1.msra.mxu0 0.0
        %2673 = vmatprep.subr.mxu0 0.0
        %2674 = vmatpush1.msra.mxu0 %v2638
        %2675 = vmatprep.subr.mxu0 0.0
        %2676 = vmatpush2.msra.mxu0 0.0
        %2677 = vmatprep.subr.mxu0 0.0
        %2678 = vmatpush2.msra.mxu0 0.0
        %2679 = vmatprep.subr.mxu0 0.0
        %2680 = vmatpush2.msra.mxu0 0.0
        %2681 = vmatprep.subr.mxu0 0.0
        %2682 = vmatpush2.msra.mxu0 0.0
        %2683 = vmatprep.subr.mxu0 0.0
        %2684 = vmatpush2.msra.mxu0 0.0
        %2685 = vmatprep.subr.mxu0 0.0
        %2686 = vmatpush2.msra.mxu0 0.0
        %2687 = vmatprep.subr.mxu0 0.0
        %2688 = vmatpush2.msra.mxu0 0.0
        %2689 = vmatprep.subr.mxu0 0.0
        %2690 = vmatpush2.msra.mxu0 0.0
        %2691 = vmatprep.subr.mxu0 0.0
        %2692 = vmatpush2.msra.mxu0 0.0
        %2693 = vmatprep.subr.mxu0 0.0
        %2694 = vmatpush2.msra.mxu0 0.0
        %2695 = vmatprep.subr.mxu0 0.0
        %2696 = vmatpush2.msra.mxu0 0.0
        %2697 = vmatprep.subr.mxu0 0.0
        %2698 = vmatpush2.msra.mxu0 0.0
        %2699 = vmatprep.subr.mxu0 0.0
        %2700 = vmatpush2.msra.mxu0 0.0
        %2701 = vmatprep.subr.mxu0 0.0
        %2702 = vmatpush2.msra.mxu0 0.0
        %2703 = vmatprep.subr.mxu0 0.0
        %2704 = vmatpush2.msra.mxu0 0.0
        %2705 = vmatprep.subr.mxu0 0.0
        %2706 = vmatpush2.msra.mxu0 0.0
        %2707 = vmatprep.mubr.f32.mxu0 0.0
        %2708 = vmatmul.mubr.f32.gmra.mxu0 %v2641
        %v2709 = vpop.f32.mrf.mxu0
        %v2710 = vadd.f32 0.0, %v2709
        %v2711 = vpop.f32.mrf.mxu0
        %2712 = vdwg.mxu0
        %v2714 = vsel %vm771, %v2710, 0
        %2716 = vmatprep.subr.mxu0 0.0
        %2717 = vmatpush1.msra.mxu0 0.0
        %2718 = vmatprep.subr.mxu0 0.0
        %2719 = vmatpush1.msra.mxu0 0.0
        %2720 = vmatprep.subr.mxu0 0.0
        %2721 = vmatpush1.msra.mxu0 0.0
        %2722 = vmatprep.subr.mxu0 0.0
        %2723 = vmatpush1.msra.mxu0 0.0
        %2724 = vmatprep.subr.mxu0 0.0
        %2725 = vmatpush1.msra.mxu0 0.0
        %2726 = vmatprep.subr.mxu0 0.0
        %2727 = vmatpush1.msra.mxu0 0.0
        %2728 = vmatprep.subr.mxu0 0.0
        %2729 = vmatpush1.msra.mxu0 0.0
        %2730 = vmatprep.subr.mxu0 0.0
        %2731 = vmatpush1.msra.mxu0 0.0
        %2732 = vmatprep.subr.mxu0 0.0
        %2733 = vmatpush1.msra.mxu0 0.0
        %2734 = vmatprep.subr.mxu0 0.0
        %2735 = vmatpush1.msra.mxu0 0.0
        %2736 = vmatprep.subr.mxu0 0.0
        %2737 = vmatpush1.msra.mxu0 0.0
        %2738 = vmatprep.subr.mxu0 0.0
        %2739 = vmatpush1.msra.mxu0 0.0
        %2740 = vmatprep.subr.mxu0 0.0
        %2741 = vmatpush1.msra.mxu0 0.0
        %2742 = vmatprep.subr.mxu0 0.0
        %2743 = vmatpush1.msra.mxu0 0.0
        %2744 = vmatprep.subr.mxu0 0.0
        %2745 = vmatpush1.msra.mxu0 0.0
        %2746 = vmatprep.subr.mxu0 0.0
        %2747 = vmatpush1.msra.mxu0 %v2061
        %2748 = vmatprep.subr.mxu0 0.0
        %2749 = vmatpush2.msra.mxu0 0.0
        %2750 = vmatprep.subr.mxu0 0.0
        %2751 = vmatpush2.msra.mxu0 0.0
        %2752 = vmatprep.subr.mxu0 0.0
        %2753 = vmatpush2.msra.mxu0 0.0
        %2754 = vmatprep.subr.mxu0 0.0
        %2755 = vmatpush2.msra.mxu0 0.0
        %2756 = vmatprep.subr.mxu0 0.0
        %2757 = vmatpush2.msra.mxu0 0.0
        %2758 = vmatprep.subr.mxu0 0.0
        %2759 = vmatpush2.msra.mxu0 0.0
        %2760 = vmatprep.subr.mxu0 0.0
        %2761 = vmatpush2.msra.mxu0 0.0
        %2762 = vmatprep.subr.mxu0 0.0
        %2763 = vmatpush2.msra.mxu0 0.0
        %2764 = vmatprep.subr.mxu0 0.0
        %2765 = vmatpush2.msra.mxu0 0.0
        %2766 = vmatprep.subr.mxu0 0.0
        %2767 = vmatpush2.msra.mxu0 0.0
        %2768 = vmatprep.subr.mxu0 0.0
        %2769 = vmatpush2.msra.mxu0 0.0
        %2770 = vmatprep.subr.mxu0 0.0
        %2771 = vmatpush2.msra.mxu0 0.0
        %2772 = vmatprep.subr.mxu0 0.0
        %2773 = vmatpush2.msra.mxu0 0.0
        %2774 = vmatprep.subr.mxu0 0.0
        %2775 = vmatpush2.msra.mxu0 0.0
        %2776 = vmatprep.subr.mxu0 0.0
        %2777 = vmatpush2.msra.mxu0 0.0
        %2778 = vmatprep.subr.mxu0 0.0
        %2779 = vmatpush2.msra.mxu0 0.0
        %2780 = vmatprep.mubr.f32.mxu0 0.0
        %2781 = vmatmul.mubr.f32.gmra.mxu0 %v2714
        %v2782 = vpop.f32.mrf.mxu0
        %v2783 = vadd.f32 0.0, %v2782
        %v2784 = vpop.f32.mrf.mxu0
        %2785 = vdwg.mxu0
        %v2786 = vadd.f32 %v2547, %v2783
        %2787 = vrot.lane.b32.xlu0 %v2055, 104
        %v2788 = vpop.permute.xlu0 %2787
        %2789 = vrot.lane.b32.xlu0 %v2055, 72
        %v2790 = vpop.permute.xlu0 %2789
        %v2791 = vsel %vm771, %v2788, 0
        %v2793 = vsel %vm771, %v2790, 0
        %2795 = vmatprep.subr.mxu0 0.0
        %2796 = vmatpush1.xpose.msra.mxu0 0.0
        %2797 = vmatprep.subr.mxu0 0.0
        %2798 = vmatpush1.xpose.msra.mxu0 0.0
        %2799 = vmatprep.subr.mxu0 0.0
        %2800 = vmatpush1.xpose.msra.mxu0 0.0
        %2801 = vmatprep.subr.mxu0 0.0
        %2802 = vmatpush1.xpose.msra.mxu0 0.0
        %2803 = vmatprep.subr.mxu0 0.0
        %2804 = vmatpush1.xpose.msra.mxu0 0.0
        %2805 = vmatprep.subr.mxu0 0.0
        %2806 = vmatpush1.xpose.msra.mxu0 0.0
        %2807 = vmatprep.subr.mxu0 0.0
        %2808 = vmatpush1.xpose.msra.mxu0 0.0
        %2809 = vmatprep.subr.mxu0 0.0
        %2810 = vmatpush1.xpose.msra.mxu0 0.0
        %2811 = vmatprep.subr.mxu0 0.0
        %2812 = vmatpush1.xpose.msra.mxu0 0.0
        %2813 = vmatprep.subr.mxu0 0.0
        %2814 = vmatpush1.xpose.msra.mxu0 0.0
        %2815 = vmatprep.subr.mxu0 0.0
        %2816 = vmatpush1.xpose.msra.mxu0 0.0
        %2817 = vmatprep.subr.mxu0 0.0
        %2818 = vmatpush1.xpose.msra.mxu0 0.0
        %2819 = vmatprep.subr.mxu0 0.0
        %2820 = vmatpush1.xpose.msra.mxu0 0.0
        %2821 = vmatprep.subr.mxu0 0.0
        %2822 = vmatpush1.xpose.msra.mxu0 0.0
        %2823 = vmatprep.subr.mxu0 0.0
        %2824 = vmatpush1.xpose.msra.mxu0 0.0
        %2825 = vmatprep.subr.mxu0 0.0
        %2826 = vmatpush1.xpose.msra.mxu0 %v2793
        %2827 = vmatprep.subr.mxu0 0.0
        %2828 = vmatpush2.xpose.msra.mxu0 0.0
        %2829 = vmatprep.subr.mxu0 0.0
        %2830 = vmatpush2.xpose.msra.mxu0 0.0
        %2831 = vmatprep.subr.mxu0 0.0
        %2832 = vmatpush2.xpose.msra.mxu0 0.0
        %2833 = vmatprep.subr.mxu0 0.0
        %2834 = vmatpush2.xpose.msra.mxu0 0.0
        %2835 = vmatprep.subr.mxu0 0.0
        %2836 = vmatpush2.xpose.msra.mxu0 0.0
        %2837 = vmatprep.subr.mxu0 0.0
        %2838 = vmatpush2.xpose.msra.mxu0 0.0
        %2839 = vmatprep.subr.mxu0 0.0
        %2840 = vmatpush2.xpose.msra.mxu0 0.0
        %2841 = vmatprep.subr.mxu0 0.0
        %2842 = vmatpush2.xpose.msra.mxu0 0.0
        %2843 = vmatprep.subr.mxu0 0.0
        %2844 = vmatpush2.xpose.msra.mxu0 0.0
        %2845 = vmatprep.subr.mxu0 0.0
        %2846 = vmatpush2.xpose.msra.mxu0 0.0
        %2847 = vmatprep.subr.mxu0 0.0
        %2848 = vmatpush2.xpose.msra.mxu0 0.0
        %2849 = vmatprep.subr.mxu0 0.0
        %2850 = vmatpush2.xpose.msra.mxu0 0.0
        %2851 = vmatprep.subr.mxu0 0.0
        %2852 = vmatpush2.xpose.msra.mxu0 0.0
        %2853 = vmatprep.subr.mxu0 0.0
        %2854 = vmatpush2.xpose.msra.mxu0 0.0
        %2855 = vmatprep.subr.mxu0 0.0
        %2856 = vmatpush2.xpose.msra.mxu0 0.0
        %2857 = vmatprep.subr.mxu0 0.0
        %2858 = vmatpush2.xpose.msra.mxu0 0.0
        %2859 = vmatprep.mubr.f32.mxu0 0.0
        %2860 = vmatmul.mubr.f32.gmra.mxu0 %v2791
        %v2861 = vpop.f32.mrf.mxu0
        %v2862 = vadd.f32 %v766, %v2861
        %v2863 = vpop.f32.mrf.mxu0
        %2864 = vdwg.mxu0
        %v2865 = vsel %vm771, %v2862, -inf
        %2866 = vmax.xlane.f32.xlu0 %v2865
        %v2867 = vpop.xlane.xlu0 %2866
        %v2868 = vsub.f32 %v2862, %v2867
        %v2869 = vmul.f32 %v2868, 1.442695
        %v2870 = vpow.pop %v2869
        %v2871 = vsel %vm771, %v2870, 0.0
        %2872 = vadd.xlane.f32.xlu0 %v2871
        %v2873 = vpop.xlane.xlu0 %2872
        %v2874 = vrcp.pop %v2873
        %v2875 = vmul.f32 %v2870, %v2874
        %2876 = vrot.lane.b32.xlu0 %v2055, 40
        %v2877 = vpop.permute.xlu0 %2876
        %v2880 = vsel %vm771, %v2875, 0
        %2882 = vmatprep.subr.mxu0 0.0
        %2883 = vmatpush1.msra.mxu0 0.0
        %2884 = vmatprep.subr.mxu0 0.0
        %2885 = vmatpush1.msra.mxu0 0.0
        %2886 = vmatprep.subr.mxu0 0.0
        %2887 = vmatpush1.msra.mxu0 0.0
        %2888 = vmatprep.subr.mxu0 0.0
        %2889 = vmatpush1.msra.mxu0 0.0
        %2890 = vmatprep.subr.mxu0 0.0
        %2891 = vmatpush1.msra.mxu0 0.0
        %2892 = vmatprep.subr.mxu0 0.0
        %2893 = vmatpush1.msra.mxu0 0.0
        %2894 = vmatprep.subr.mxu0 0.0
        %2895 = vmatpush1.msra.mxu0 0.0
        %2896 = vmatprep.subr.mxu0 0.0
        %2897 = vmatpush1.msra.mxu0 0.0
        %2898 = vmatprep.subr.mxu0 0.0
        %2899 = vmatpush1.msra.mxu0 0.0
        %2900 = vmatprep.subr.mxu0 0.0
        %2901 = vmatpush1.msra.mxu0 0.0
        %2902 = vmatprep.subr.mxu0 0.0
        %2903 = vmatpush1.msra.mxu0 0.0
        %2904 = vmatprep.subr.mxu0 0.0
        %2905 = vmatpush1.msra.mxu0 0.0
        %2906 = vmatprep.subr.mxu0 0.0
        %2907 = vmatpush1.msra.mxu0 0.0
        %2908 = vmatprep.subr.mxu0 0.0
        %2909 = vmatpush1.msra.mxu0 0.0
        %2910 = vmatprep.subr.mxu0 0.0
        %2911 = vmatpush1.msra.mxu0 0.0
        %2912 = vmatprep.subr.mxu0 0.0
        %2913 = vmatpush1.msra.mxu0 %v2877
        %2914 = vmatprep.subr.mxu0 0.0
        %2915 = vmatpush2.msra.mxu0 0.0
        %2916 = vmatprep.subr.mxu0 0.0
        %2917 = vmatpush2.msra.mxu0 0.0
        %2918 = vmatprep.subr.mxu0 0.0
        %2919 = vmatpush2.msra.mxu0 0.0
        %2920 = vmatprep.subr.mxu0 0.0
        %2921 = vmatpush2.msra.mxu0 0.0
        %2922 = vmatprep.subr.mxu0 0.0
        %2923 = vmatpush2.msra.mxu0 0.0
        %2924 = vmatprep.subr.mxu0 0.0
        %2925 = vmatpush2.msra.mxu0 0.0
        %2926 = vmatprep.subr.mxu0 0.0
        %2927 = vmatpush2.msra.mxu0 0.0
        %2928 = vmatprep.subr.mxu0 0.0
        %2929 = vmatpush2.msra.mxu0 0.0
        %2930 = vmatprep.subr.mxu0 0.0
        %2931 = vmatpush2.msra.mxu0 0.0
        %2932 = vmatprep.subr.mxu0 0.0
        %2933 = vmatpush2.msra.mxu0 0.0
        %2934 = vmatprep.subr.mxu0 0.0
        %2935 = vmatpush2.msra.mxu0 0.0
        %2936 = vmatprep.subr.mxu0 0.0
        %2937 = vmatpush2.msra.mxu0 0.0
        %2938 = vmatprep.subr.mxu0 0.0
        %2939 = vmatpush2.msra.mxu0 0.0
        %2940 = vmatprep.subr.mxu0 0.0
        %2941 = vmatpush2.msra.mxu0 0.0
        %2942 = vmatprep.subr.mxu0 0.0
        %2943 = vmatpush2.msra.mxu0 0.0
        %2944 = vmatprep.subr.mxu0 0.0
        %2945 = vmatpush2.msra.mxu0 0.0
        %2946 = vmatprep.mubr.f32.mxu0 0.0
        %2947 = vmatmul.mubr.f32.gmra.mxu0 %v2880
        %v2948 = vpop.f32.mrf.mxu0
        %v2949 = vadd.f32 0.0, %v2948
        %v2950 = vpop.f32.mrf.mxu0
        %2951 = vdwg.mxu0
        %v2953 = vsel %vm771, %v2949, 0
        %2955 = vmatprep.subr.mxu0 0.0
        %2956 = vmatpush1.msra.mxu0 0.0
        %2957 = vmatprep.subr.mxu0 0.0
        %2958 = vmatpush1.msra.mxu0 0.0
        %2959 = vmatprep.subr.mxu0 0.0
        %2960 = vmatpush1.msra.mxu0 0.0
        %2961 = vmatprep.subr.mxu0 0.0
        %2962 = vmatpush1.msra.mxu0 0.0
        %2963 = vmatprep.subr.mxu0 0.0
        %2964 = vmatpush1.msra.mxu0 0.0
        %2965 = vmatprep.subr.mxu0 0.0
        %2966 = vmatpush1.msra.mxu0 0.0
        %2967 = vmatprep.subr.mxu0 0.0
        %2968 = vmatpush1.msra.mxu0 0.0
        %2969 = vmatprep.subr.mxu0 0.0
        %2970 = vmatpush1.msra.mxu0 0.0
        %2971 = vmatprep.subr.mxu0 0.0
        %2972 = vmatpush1.msra.mxu0 0.0
        %2973 = vmatprep.subr.mxu0 0.0
        %2974 = vmatpush1.msra.mxu0 0.0
        %2975 = vmatprep.subr.mxu0 0.0
        %2976 = vmatpush1.msra.mxu0 0.0
        %2977 = vmatprep.subr.mxu0 0.0
        %2978 = vmatpush1.msra.mxu0 0.0
        %2979 = vmatprep.subr.mxu0 0.0
        %2980 = vmatpush1.msra.mxu0 0.0
        %2981 = vmatprep.subr.mxu0 0.0
        %2982 = vmatpush1.msra.mxu0 0.0
        %2983 = vmatprep.subr.mxu0 0.0
        %2984 = vmatpush1.msra.mxu0 0.0
        %2985 = vmatprep.subr.mxu0 0.0
        %2986 = vmatpush1.msra.mxu0 %v2062
        %2987 = vmatprep.subr.mxu0 0.0
        %2988 = vmatpush2.msra.mxu0 0.0
        %2989 = vmatprep.subr.mxu0 0.0
        %2990 = vmatpush2.msra.mxu0 0.0
        %2991 = vmatprep.subr.mxu0 0.0
        %2992 = vmatpush2.msra.mxu0 0.0
        %2993 = vmatprep.subr.mxu0 0.0
        %2994 = vmatpush2.msra.mxu0 0.0
        %2995 = vmatprep.subr.mxu0 0.0
        %2996 = vmatpush2.msra.mxu0 0.0
        %2997 = vmatprep.subr.mxu0 0.0
        %2998 = vmatpush2.msra.mxu0 0.0
        %2999 = vmatprep.subr.mxu0 0.0
        %3000 = vmatpush2.msra.mxu0 0.0
        %3001 = vmatprep.subr.mxu0 0.0
        %3002 = vmatpush2.msra.mxu0 0.0
        %3003 = vmatprep.subr.mxu0 0.0
        %3004 = vmatpush2.msra.mxu0 0.0
        %3005 = vmatprep.subr.mxu0 0.0
        %3006 = vmatpush2.msra.mxu0 0.0
        %3007 = vmatprep.subr.mxu0 0.0
        %3008 = vmatpush2.msra.mxu0 0.0
        %3009 = vmatprep.subr.mxu0 0.0
        %3010 = vmatpush2.msra.mxu0 0.0
        %3011 = vmatprep.subr.mxu0 0.0
        %3012 = vmatpush2.msra.mxu0 0.0
        %3013 = vmatprep.subr.mxu0 0.0
        %3014 = vmatpush2.msra.mxu0 0.0
        %3015 = vmatprep.subr.mxu0 0.0
        %3016 = vmatpush2.msra.mxu0 0.0
        %3017 = vmatprep.subr.mxu0 0.0
        %3018 = vmatpush2.msra.mxu0 0.0
        %3019 = vmatprep.mubr.f32.mxu0 0.0
        %3020 = vmatmul.mubr.f32.gmra.mxu0 %v2953
        %v3021 = vpop.f32.mrf.mxu0
        %v3022 = vadd.f32 0.0, %v3021
        %v3023 = vpop.f32.mrf.mxu0
        %3024 = vdwg.mxu0
        %v3025 = vadd.f32 %v2786, %v3022
        %v3026 = vadd.f32 %v3025, %v1971
        %s3027 = scalar_lea.vmem %s8, 1
        %v3028 = vld [vmem:[%s3027] sm:$0x1]
        %s3029 = scalar_lea.vmem %s9, 1
        %v3030 = vld [vmem:[%s3029] sm:$0x1]
        %v3031 = vsel %vm641, %v3026, 0.0
        %3032 = vadd.xlane.f32.xlu0 %v3031
        %v3033 = vpop.xlane.xlu0 %3032
        %v3034 = vmul.f32 %v3033, %v645
        %v3035 = vsub.f32 %v3026, %v3034
        %v3036 = vmul.f32 %v3035, %v3035
        %v3037 = vsel %vm641, %v3036, 0.0
        %3038 = vadd.xlane.f32.xlu0 %v3037
        %v3039 = vpop.xlane.xlu0 %3038
        %v3040 = vmul.f32 %v3039, %v645
        %v3041 = vadd.f32 %v3040, 1e-12
        %v3042 = vrsqrt.pop %v3041
        %v3043 = vmul.f32 %v3035, %v3042
        %v3045 = vlaneseq
        %v3046 = vshrl.u32 %v3045, 7
        %v3047 = vsub.s32 0, %v3046
        %v3048 = vrot.slane %v3028, %v3047
        %v3050 = vmul.f32 %v3043, %v3048
        %v3052 = vlaneseq
        %v3053 = vshrl.u32 %v3052, 7
        %v3054 = vsub.s32 0, %v3053
        %v3055 = vrot.slane %v3030, %v3054
        %v3057 = vadd.f32 %v3050, %v3055
        %s3058 = scalar_lea.vmem %s10, 32
        %v3059 = vld [vmem:[%s3058] sm:$0xff]
        %v3060 = vld [vmem:[%s3058 + $0x8] sm:$0xff]
        %v3061 = vld [vmem:[%s3058 + $0x10] sm:$0xff]
        %v3062 = vld [vmem:[%s3058 + $0x18] sm:$0xff]
        %s3063 = scalar_lea.vmem %s11, 1
        %v3064 = vld [vmem:[%s3063] sm:$0x1]
        %v3066 = vlaneseq
        %v3067 = vshrl.u32 %v3066, 7
        %v3068 = vsub.s32 0, %v3067
        %v3069 = vrot.slane %v3064, %v3068
        %v3072 = vsel %vm641, %v3057, 0
        %3074 = vmatprep.subr.mxu0 0.0
        %3075 = vmatpush1.msra.mxu0 0.0
        %3076 = vmatprep.subr.mxu0 0.0
        %3077 = vmatpush1.msra.mxu0 0.0
        %3078 = vmatprep.subr.mxu0 0.0
        %3079 = vmatpush1.msra.mxu0 0.0
        %3080 = vmatprep.subr.mxu0 0.0
        %3081 = vmatpush1.msra.mxu0 0.0
        %3082 = vmatprep.subr.mxu0 0.0
        %3083 = vmatpush1.msra.mxu0 0.0
        %3084 = vmatprep.subr.mxu0 0.0
        %3085 = vmatpush1.msra.mxu0 0.0
        %3086 = vmatprep.subr.mxu0 0.0
        %3087 = vmatpush1.msra.mxu0 0.0
        %3088 = vmatprep.subr.mxu0 0.0
        %3089 = vmatpush1.msra.mxu0 0.0
        %3090 = vmatprep.subr.mxu0 0.0
        %3091 = vmatpush1.msra.mxu0 0.0
        %3092 = vmatprep.subr.mxu0 0.0
        %3093 = vmatpush1.msra.mxu0 0.0
        %3094 = vmatprep.subr.mxu0 0.0
        %3095 = vmatpush1.msra.mxu0 0.0
        %3096 = vmatprep.subr.mxu0 0.0
        %3097 = vmatpush1.msra.mxu0 0.0
        %3098 = vmatprep.subr.mxu0 0.0
        %3099 = vmatpush1.msra.mxu0 %v3062
        %3100 = vmatprep.subr.mxu0 0.0
        %3101 = vmatpush1.msra.mxu0 %v3061
        %3102 = vmatprep.subr.mxu0 0.0
        %3103 = vmatpush1.msra.mxu0 %v3060
        %3104 = vmatprep.subr.mxu0 0.0
        %3105 = vmatpush1.msra.mxu0 %v3059
        %3106 = vmatprep.subr.mxu0 0.0
        %3107 = vmatpush2.msra.mxu0 0.0
        %3108 = vmatprep.subr.mxu0 0.0
        %3109 = vmatpush2.msra.mxu0 0.0
        %3110 = vmatprep.subr.mxu0 0.0
        %3111 = vmatpush2.msra.mxu0 0.0
        %3112 = vmatprep.subr.mxu0 0.0
        %3113 = vmatpush2.msra.mxu0 0.0
        %3114 = vmatprep.subr.mxu0 0.0
        %3115 = vmatpush2.msra.mxu0 0.0
        %3116 = vmatprep.subr.mxu0 0.0
        %3117 = vmatpush2.msra.mxu0 0.0
        %3118 = vmatprep.subr.mxu0 0.0
        %3119 = vmatpush2.msra.mxu0 0.0
        %3120 = vmatprep.subr.mxu0 0.0
        %3121 = vmatpush2.msra.mxu0 0.0
        %3122 = vmatprep.subr.mxu0 0.0
        %3123 = vmatpush2.msra.mxu0 0.0
        %3124 = vmatprep.subr.mxu0 0.0
        %3125 = vmatpush2.msra.mxu0 0.0
        %3126 = vmatprep.subr.mxu0 0.0
        %3127 = vmatpush2.msra.mxu0 0.0
        %3128 = vmatprep.subr.mxu0 0.0
        %3129 = vmatpush2.msra.mxu0 0.0
        %3130 = vmatprep.subr.mxu0 0.0
        %3131 = vmatpush2.msra.mxu0 0.0
        %3132 = vmatprep.subr.mxu0 0.0
        %3133 = vmatpush2.msra.mxu0 0.0
        %3134 = vmatprep.subr.mxu0 0.0
        %3135 = vmatpush2.msra.mxu0 0.0
        %3136 = vmatprep.subr.mxu0 0.0
        %3137 = vmatpush2.msra.mxu0 0.0
        %3138 = vmatprep.mubr.f32.mxu0 0.0
        %3139 = vmatmul.mubr.f32.gmra.mxu0 %v3072
        %v3140 = vpop.f32.mrf.mxu0
        %v3141 = vadd.f32 %v3069, %v3140
        %v3142 = vpop.f32.mrf.mxu0
        %3143 = vdwg.mxu0
        %v3144 = vmul.f32 %v3141, %v3141
        %v3145 = vmul.f32 %v3141, %v3144
        %v3146 = vmul.f32 %v3145, 0.044715
        %v3147 = vadd.f32 %v3141, %v3146
        %v3148 = vmul.f32 %v3147, 0.7978846
        %v3149 = vtanh.pop %v3148
        %v3150 = vadd.f32 %v3149, 1.0
        %v3151 = vmul.f32 %v3150, 0.5
        %v3152 = vmul.f32 %v3141, %v3151
        %s3153 = scalar_lea.vmem %s12, 64
        %v3154 = vld [vmem:[%s3153] sm:$0xff]
        %v3155 = vld [vmem:[%s3153 + $0x8] sm:$0xff]
        %v3156 = vld [vmem:[%s3153 + $0x10] sm:$0xff]
        %v3157 = vld [vmem:[%s3153 + $0x18] sm:$0xff]
        %v3158 = vld [vmem:[%s3153 + $0x20] sm:$0xff]
        %v3159 = vld [vmem:[%s3153 + $0x28] sm:$0xff]
        %v3160 = vld [vmem:[%s3153 + $0x30] sm:$0xff]
        %v3161 = vld [vmem:[%s3153 + $0x38] sm:$0xff]
        %s3162 = scalar_lea.vmem %s13, 1
        %v3163 = vld [vmem:[%s3162] sm:$0x1]
        %v3165 = vlaneseq
        %v3166 = vshrl.u32 %v3165, 7
        %v3167 = vsub.s32 0, %v3166
        %v3168 = vrot.slane %v3163, %v3167
        %v3171 = vsel %vm1868, %v3152, 0
        %3173 = vmatprep.subr.mxu0 0.0
        %3174 = vmatpush1.msra.mxu0 0.0
        %3175 = vmatprep.subr.mxu0 0.0
        %3176 = vmatpush1.msra.mxu0 0.0
        %3177 = vmatprep.subr.mxu0 0.0
        %3178 = vmatpush1.msra.mxu0 0.0
        %3179 = vmatprep.subr.mxu0 0.0
        %3180 = vmatpush1.msra.mxu0 0.0
        %3181 = vmatprep.subr.mxu0 0.0
        %3182 = vmatpush1.msra.mxu0 0.0
        %3183 = vmatprep.subr.mxu0 0.0
        %3184 = vmatpush1.msra.mxu0 0.0
        %3185 = vmatprep.subr.mxu0 0.0
        %3186 = vmatpush1.msra.mxu0 0.0
        %3187 = vmatprep.subr.mxu0 0.0
        %3188 = vmatpush1.msra.mxu0 0.0
        %3189 = vmatprep.subr.mxu0 0.0
        %3190 = vmatpush1.msra.mxu0 %v3161
        %3191 = vmatprep.subr.mxu0 0.0
        %3192 = vmatpush1.msra.mxu0 %v3160
        %3193 = vmatprep.subr.mxu0 0.0
        %3194 = vmatpush1.msra.mxu0 %v3159
        %3195 = vmatprep.subr.mxu0 0.0
        %3196 = vmatpush1.msra.mxu0 %v3158
        %3197 = vmatprep.subr.mxu0 0.0
        %3198 = vmatpush1.msra.mxu0 %v3157
        %3199 = vmatprep.subr.mxu0 0.0
        %3200 = vmatpush1.msra.mxu0 %v3156
        %3201 = vmatprep.subr.mxu0 0.0
        %3202 = vmatpush1.msra.mxu0 %v3155
        %3203 = vmatprep.subr.mxu0 0.0
        %3204 = vmatpush1.msra.mxu0 %v3154
        %3205 = vmatprep.subr.mxu0 0.0
        %3206 = vmatpush2.msra.mxu0 0.0
        %3207 = vmatprep.subr.mxu0 0.0
        %3208 = vmatpush2.msra.mxu0 0.0
        %3209 = vmatprep.subr.mxu0 0.0
        %3210 = vmatpush2.msra.mxu0 0.0
        %3211 = vmatprep.subr.mxu0 0.0
        %3212 = vmatpush2.msra.mxu0 0.0
        %3213 = vmatprep.subr.mxu0 0.0
        %3214 = vmatpush2.msra.mxu0 0.0
        %3215 = vmatprep.subr.mxu0 0.0
        %3216 = vmatpush2.msra.mxu0 0.0
        %3217 = vmatprep.subr.mxu0 0.0
        %3218 = vmatpush2.msra.mxu0 0.0
        %3219 = vmatprep.subr.mxu0 0.0
        %3220 = vmatpush2.msra.mxu0 0.0
        %3221 = vmatprep.subr.mxu0 0.0
        %3222 = vmatpush2.msra.mxu0 0.0
        %3223 = vmatprep.subr.mxu0 0.0
        %3224 = vmatpush2.msra.mxu0 0.0
        %3225 = vmatprep.subr.mxu0 0.0
        %3226 = vmatpush2.msra.mxu0 0.0
        %3227 = vmatprep.subr.mxu0 0.0
        %3228 = vmatpush2.msra.mxu0 0.0
        %3229 = vmatprep.subr.mxu0 0.0
        %3230 = vmatpush2.msra.mxu0 0.0
        %3231 = vmatprep.subr.mxu0 0.0
        %3232 = vmatpush2.msra.mxu0 0.0
        %3233 = vmatprep.subr.mxu0 0.0
        %3234 = vmatpush2.msra.mxu0 0.0
        %3235 = vmatprep.subr.mxu0 0.0
        %3236 = vmatpush2.msra.mxu0 0.0
        %3237 = vmatprep.mubr.f32.mxu0 0.0
        %3238 = vmatmul.mubr.f32.gmra.mxu0 %v3171
        %v3239 = vpop.f32.mrf.mxu0
        %v3240 = vadd.f32 %v3168, %v3239
        %v3241 = vpop.f32.mrf.mxu0
        %3242 = vdwg.mxu0
        %v3243 = vadd.f32 %v3240, %v3057
        %s3244 = scalar_lea.vmem %s14, 1
        %v3245 = vld [vmem:[%s3244] sm:$0x1]
        %s3246 = scalar_lea.vmem %s15, 1
        %v3247 = vld [vmem:[%s3246] sm:$0x1]
        %v3248 = vsel %vm641, %v3243, 0.0
        %3249 = vadd.xlane.f32.xlu0 %v3248
        %v3250 = vpop.xlane.xlu0 %3249
        %v3251 = vmul.f32 %v3250, %v645
        %v3252 = vsub.f32 %v3243, %v3251
        %v3253 = vmul.f32 %v3252, %v3252
        %v3254 = vsel %vm641, %v3253, 0.0
        %3255 = vadd.xlane.f32.xlu0 %v3254
        %v3256 = vpop.xlane.xlu0 %3255
        %v3257 = vmul.f32 %v3256, %v645
        %v3258 = vadd.f32 %v3257, 1e-12
        %v3259 = vrsqrt.pop %v3258
        %v3260 = vmul.f32 %v3252, %v3259
        %v3262 = vlaneseq
        %v3263 = vshrl.u32 %v3262, 7
        %v3264 = vsub.s32 0, %v3263
        %v3265 = vrot.slane %v3245, %v3264
        %v3267 = vmul.f32 %v3260, %v3265
        %v3269 = vlaneseq
        %v3270 = vshrl.u32 %v3269, 7
        %v3271 = vsub.s32 0, %v3270
        %v3272 = vrot.slane %v3247, %v3271
        %v3274 = vadd.f32 %v3267, %v3272
        %v3275 = vld [vmem:[%s16] sm:$0xff]
        %v3276 = vld [vmem:[%s16 + $0x8] sm:$0xff]
        %v3277 = vld [vmem:[%s16 + $0x10] sm:$0xff]
        %v3278 = vld [vmem:[%s16 + $0x18] sm:$0xff]
        %v3279 = vld [vmem:[%s17] sm:$0x1]
        %v3281 = vsel %vm641, %v3274, 0
        %3283 = vmatprep.subr.mxu0 0.0
        %3284 = vmatpush1.msra.mxu0 0.0
        %3285 = vmatprep.subr.mxu0 0.0
        %3286 = vmatpush1.msra.mxu0 0.0
        %3287 = vmatprep.subr.mxu0 0.0
        %3288 = vmatpush1.msra.mxu0 0.0
        %3289 = vmatprep.subr.mxu0 0.0
        %3290 = vmatpush1.msra.mxu0 0.0
        %3291 = vmatprep.subr.mxu0 0.0
        %3292 = vmatpush1.msra.mxu0 0.0
        %3293 = vmatprep.subr.mxu0 0.0
        %3294 = vmatpush1.msra.mxu0 0.0
        %3295 = vmatprep.subr.mxu0 0.0
        %3296 = vmatpush1.msra.mxu0 0.0
        %3297 = vmatprep.subr.mxu0 0.0
        %3298 = vmatpush1.msra.mxu0 0.0
        %3299 = vmatprep.subr.mxu0 0.0
        %3300 = vmatpush1.msra.mxu0 0.0
        %3301 = vmatprep.subr.mxu0 0.0
        %3302 = vmatpush1.msra.mxu0 0.0
        %3303 = vmatprep.subr.mxu0 0.0
        %3304 = vmatpush1.msra.mxu0 0.0
        %3305 = vmatprep.subr.mxu0 0.0
        %3306 = vmatpush1.msra.mxu0 0.0
        %3307 = vmatprep.subr.mxu0 0.0
        %3308 = vmatpush1.msra.mxu0 %v3278
        %3309 = vmatprep.subr.mxu0 0.0
        %3310 = vmatpush1.msra.mxu0 %v3277
        %3311 = vmatprep.subr.mxu0 0.0
        %3312 = vmatpush1.msra.mxu0 %v3276
        %3313 = vmatprep.subr.mxu0 0.0
        %3314 = vmatpush1.msra.mxu0 %v3275
        %3315 = vmatprep.subr.mxu0 0.0
        %3316 = vmatpush2.msra.mxu0 0.0
        %3317 = vmatprep.subr.mxu0 0.0
        %3318 = vmatpush2.msra.mxu0 0.0
        %3319 = vmatprep.subr.mxu0 0.0
        %3320 = vmatpush2.msra.mxu0 0.0
        %3321 = vmatprep.subr.mxu0 0.0
        %3322 = vmatpush2.msra.mxu0 0.0
        %3323 = vmatprep.subr.mxu0 0.0
        %3324 = vmatpush2.msra.mxu0 0.0
        %3325 = vmatprep.subr.mxu0 0.0
        %3326 = vmatpush2.msra.mxu0 0.0
        %3327 = vmatprep.subr.mxu0 0.0
        %3328 = vmatpush2.msra.mxu0 0.0
        %3329 = vmatprep.subr.mxu0 0.0
        %3330 = vmatpush2.msra.mxu0 0.0
        %3331 = vmatprep.subr.mxu0 0.0
        %3332 = vmatpush2.msra.mxu0 0.0
        %3333 = vmatprep.subr.mxu0 0.0
        %3334 = vmatpush2.msra.mxu0 0.0
        %3335 = vmatprep.subr.mxu0 0.0
        %3336 = vmatpush2.msra.mxu0 0.0
        %3337 = vmatprep.subr.mxu0 0.0
        %3338 = vmatpush2.msra.mxu0 0.0
        %3339 = vmatprep.subr.mxu0 0.0
        %3340 = vmatpush2.msra.mxu0 0.0
        %3341 = vmatprep.subr.mxu0 0.0
        %3342 = vmatpush2.msra.mxu0 0.0
        %3343 = vmatprep.subr.mxu0 0.0
        %3344 = vmatpush2.msra.mxu0 0.0
        %3345 = vmatprep.subr.mxu0 0.0
        %3346 = vmatpush2.msra.mxu0 0.0
        %3347 = vmatprep.mubr.f32.mxu0 0.0
        %3348 = vmatmul.mubr.f32.gmra.mxu0 %v3281
        %v3349 = vpop.f32.mrf.mxu0
        %v3350 = vadd.f32 %v3279, %v3349
        %v3351 = vpop.f32.mrf.mxu0
        %3352 = vdwg.mxu0
        %v3353 = vtanh.pop %v3350
        %v3354 = vld [vmem:[%s18] sm:$0xff]
        %v3355 = vld [vmem:[%s18 + $0x8] sm:$0xff]
        %v3356 = vld [vmem:[%s18 + $0x10] sm:$0xff]
        %v3357 = vld [vmem:[%s18 + $0x18] sm:$0xff]
        %v3358 = vld [vmem:[%s19] sm:$0x1]
        %v3360 = vsel %vm641, %v3353, 0
        %3362 = vmatprep.subr.mxu0 0.0
        %3363 = vmatpush1.msra.mxu0 0.0
        %3364 = vmatprep.subr.mxu0 0.0
        %3365 = vmatpush1.msra.mxu0 0.0
        %3366 = vmatprep.subr.mxu0 0.0
        %3367 = vmatpush1.msra.mxu0 0.0
        %3368 = vmatprep.subr.mxu0 0.0
        %3369 = vmatpush1.msra.mxu0 0.0
        %3370 = vmatprep.subr.mxu0 0.0
        %3371 = vmatpush1.msra.mxu0 0.0
        %3372 = vmatprep.subr.mxu0 0.0
        %3373 = vmatpush1.msra.mxu0 0.0
        %3374 = vmatprep.subr.mxu0 0.0
        %3375 = vmatpush1.msra.mxu0 0.0
        %3376 = vmatprep.subr.mxu0 0.0
        %3377 = vmatpush1.msra.mxu0 0.0
        %3378 = vmatprep.subr.mxu0 0.0
        %3379 = vmatpush1.msra.mxu0 0.0
        %3380 = vmatprep.subr.mxu0 0.0
        %3381 = vmatpush1.msra.mxu0 0.0
        %3382 = vmatprep.subr.mxu0 0.0
        %3383 = vmatpush1.msra.mxu0 0.0
        %3384 = vmatprep.subr.mxu0 0.0
        %3385 = vmatpush1.msra.mxu0 0.0
        %3386 = vmatprep.subr.mxu0 0.0
        %3387 = vmatpush1.msra.mxu0 %v3357
        %3388 = vmatprep.subr.mxu0 0.0
        %3389 = vmatpush1.msra.mxu0 %v3356
        %3390 = vmatprep.subr.mxu0 0.0
        %3391 = vmatpush1.msra.mxu0 %v3355
        %3392 = vmatprep.subr.mxu0 0.0
        %3393 = vmatpush1.msra.mxu0 %v3354
        %3394 = vmatprep.subr.mxu0 0.0
        %3395 = vmatpush2.msra.mxu0 0.0
        %3396 = vmatprep.subr.mxu0 0.0
        %3397 = vmatpush2.msra.mxu0 0.0
        %3398 = vmatprep.subr.mxu0 0.0
        %3399 = vmatpush2.msra.mxu0 0.0
        %3400 = vmatprep.subr.mxu0 0.0
        %3401 = vmatpush2.msra.mxu0 0.0
        %3402 = vmatprep.subr.mxu0 0.0
        %3403 = vmatpush2.msra.mxu0 0.0
        %3404 = vmatprep.subr.mxu0 0.0
        %3405 = vmatpush2.msra.mxu0 0.0
        %3406 = vmatprep.subr.mxu0 0.0
        %3407 = vmatpush2.msra.mxu0 0.0
        %3408 = vmatprep.subr.mxu0 0.0
        %3409 = vmatpush2.msra.mxu0 0.0
        %3410 = vmatprep.subr.mxu0 0.0
        %3411 = vmatpush2.msra.mxu0 0.0
        %3412 = vmatprep.subr.mxu0 0.0
        %3413 = vmatpush2.msra.mxu0 0.0
        %3414 = vmatprep.subr.mxu0 0.0
        %3415 = vmatpush2.msra.mxu0 0.0
        %3416 = vmatprep.subr.mxu0 0.0
        %3417 = vmatpush2.msra.mxu0 0.0
        %3418 = vmatprep.subr.mxu0 0.0
        %3419 = vmatpush2.msra.mxu0 0.0
        %3420 = vmatprep.subr.mxu0 0.0
        %3421 = vmatpush2.msra.mxu0 0.0
        %3422 = vmatprep.subr.mxu0 0.0
        %3423 = vmatpush2.msra.mxu0 0.0
        %3424 = vmatprep.subr.mxu0 0.0
        %3425 = vmatpush2.msra.mxu0 0.0
        %3426 = vmatprep.mubr.f32.mxu0 0.0
        %3427 = vmatmul.mubr.f32.gmra.mxu0 %v3360
        %v3428 = vpop.f32.mrf.mxu0
        %v3429 = vadd.f32 %v3358, %v3428
        %v3430 = vpop.f32.mrf.mxu0
        %3431 = vdwg.mxu0
        %vm3432 = vcmask 8192
        %3433 = vst.msk [vmem:[%s630] sm:$0x1] %vm3432, %v3429
        %s3434 = sand.u32 %s472, 1
        %s3435 = scalar_lea.sflag [#allocation3], %s3434
        %s3436 = sand.u32 %s472, 1
        %s3437 = scalar_lea.vmem [#allocation2], %s3436
        // Predicated region
        $region101: #{bert_wrapper_forward.1} parent=99 // pred_check
          %p3438 = pneg %p482
        $region102: #{bert_wrapper_forward.1} parent=99 // pred_check_branch
          %3440 = sbr.rel (%p3438) target = $region104
        $region103: #{bert_wrapper_forward.1} parent=99 // pred_region
          %s3442 = ssub.s32 16, 16
          %3443 = vsyncadd %s3435, %s3442
          %s3444 = smul.addr %s34, 16
          %s3445 = scalar_lea.hbm %s20, %s3444
          %s3447 = sshll.u32 %s3437, 4
          %s3448 = int_to_ptr.vmem [resolvable:$true] %s3447
          %3450 = dma.vmem_to_hbm [thread:$0]  %s3448, 16, %s3445, %s3435
        $region104: #{bert_wrapper_forward.1} parent=99 // pred_fallthru
          _
      $region100: #{bert_wrapper_forward.1} parent=5 // pred_fallthru
        _
      %p3451 = scmp.le.s32.totalorder 2, %s29
      // Predicated region
      $region105: #{bert_wrapper_forward.1} parent=5 // pred_check
        %p3452 = pneg %p3451
      $region106: #{bert_wrapper_forward.1} parent=5 // pred_check_branch
        %3454 = sbr.rel (%p3452) target = $region108
      $region107: #{bert_wrapper_forward.1} parent=5 // pred_region
        %s3455 = ssub.s32 %s29, 2
        // Predicated region
        $region109: #{bert_wrapper_forward.1} parent=107 // pred_check
          %p3456 = pneg %p488
        $region110: #{bert_wrapper_forward.1} parent=107 // pred_check_branch
          %3458 = sbr.rel (%p3456) target = $region112
        $region111: #{bert_wrapper_forward.1} parent=107 // pred_region
          %s3459 = sand.u32 %s473, 1
          %s3460 = scalar_lea.sflag [#allocation3], %s3459
          %s3461 = sand.u32 %s473, 1
          %s3462 = scalar_lea.vmem [#allocation2], %s3461
          %3463 = dma.done %s3460, 16
        $region112: #{bert_wrapper_forward.1} parent=107 // pred_fallthru
          _
      $region108: #{bert_wrapper_forward.1} parent=5 // pred_fallthru
        _
    $region6: #{bert_wrapper_forward.1} parent=1 // loop_footer
      %s33 = sadd.s32 1, %s29
    $region7: #{bert_wrapper_forward.1} parent=1 // loop_footer_branch
      %28 = sbr.rel target = $region3
    $region8: #{bert_wrapper_forward.1} parent=1 // loop_exit
      _
    %3464 = vsyncpa [#allocation3], 1
    %s3465 = scalar_lea.sflag [#allocation3], 1
    %3466 = vsyncpa %s3465, 1

</llo_original>
